<compile_context>
chip_gen: v5e
topology: v5e:2x2
jax: 0.10.0
libtpu: 0.0.40
codegen_flags: <defaults>
</compile_context>

<pallas_src>
import functools

import jax
import jax.numpy as jnp
from jax.experimental import pallas as pl
from jax.experimental.pallas import tpu as pltpu

HIDDEN = 768
EPS = 1e-12


def _fused_add_ln_linear_kernel(a_ref, b_ref, w_ref, bias_ref, o_ref):
    # a_ref, b_ref: (TM, H) f32 row tiles of the two inputs.
    # w_ref:  (H, H) bf16, (in, out) layout, gamma already folded in.
    # bias_ref: (1, H) f32, beta already folded in.
    s = a_ref[...] + b_ref[...]

    # LayerNorm statistics in f32; avoid the `centered` intermediate:
    #   var = E[s^2] - E[s]^2,  z = s*inv - mean*inv
    mean = jnp.mean(s, axis=-1, keepdims=True)
    mean_sq = jnp.mean(s * s, axis=-1, keepdims=True)
    var = mean_sq - mean * mean
    inv = jax.lax.rsqrt(var + EPS)
    z = s * inv - mean * inv

    # (TM, H) @ (H, H): bf16 MXU operands, f32 accumulation.
    out = jnp.dot(z.astype(jnp.bfloat16), w_ref[...],
                  preferred_element_type=jnp.float32)
    o_ref[...] = (out + bias_ref[...]).astype(o_ref.dtype)


def _pick_tile_m(n_rows, max_tile=512):
    """Largest multiple-of-8 divisor of n_rows (<= max_tile), preferring one
    that yields an even grid (>= 2 steps) so v7x's two TensorCores can split
    the row-parallel axis evenly.  Returns None if no such divisor exists."""
    fallback = None
    t = min(max_tile, n_rows)
    t -= t % 8
    while t >= 8:
        if n_rows % t == 0:
            if (n_rows // t) % 2 == 0:
                return t
            if fallback is None:
                fallback = t
        t -= 8
    return fallback


def prepare_params(gamma, beta, weight, bias):
    """One-time parameter prep (not on the per-call path).

    Folds the LayerNorm affine into the linear layer (all folds in f32,
    weight cast to bf16 afterwards):
        (z*gamma + beta) @ W^T + b  ==  z @ (gamma[:,None] * W^T) + (b + W@beta)
    """
    gamma32 = gamma.astype(jnp.float32)
    beta32 = beta.astype(jnp.float32)
    w32 = weight.astype(jnp.float32)              # (out, in)
    w_fold = (w32.T * gamma32[:, None]).astype(jnp.bfloat16)   # (in, out) bf16
    bias_fold = (bias.astype(jnp.float32) + w32 @ beta32).reshape(1, -1)
    return w_fold, bias_fold


@functools.partial(jax.jit, static_argnames=("tile_m",))
def fused_add_ln_linear(x404, x400, w_fold_bf16, bias_fold, tile_m=None):
    """x404, x400: (B, S, H) f32; w_fold_bf16: (H_in, H_out) bf16 (folded)."""
    B, S, H = x404.shape
    assert H == HIDDEN
    assert w_fold_bf16.shape == (H, H)
    n_rows = B * S

    if tile_m is None:
        tile_m = _pick_tile_m(n_rows)

    a2 = x404.reshape(n_rows, H)
    b2 = x400.reshape(n_rows, H)

    if tile_m is None:
        # Rare fallback: n_rows has no multiple-of-8 divisor -> pad.  Zero rows
        # normalize to z == 0 under the folded affine, so they are benign.
        tile_m = 256
        n_grid = pl.cdiv(n_rows, tile_m)
        n_pad = n_grid * tile_m
        pad_cfg = ((0, n_pad - n_rows), (0, 0))
        a2 = jnp.pad(a2, pad_cfg)
        b2 = jnp.pad(b2, pad_cfg)
    else:
        n_grid = n_rows // tile_m
        n_pad = n_rows

    cost = pl.CostEstimate(
        flops=2 * n_pad * H * H,
        transcendentals=n_pad,                       # one rsqrt per row
        bytes_accessed=(3 * n_pad * H * 4            # two f32 inputs + f32 out
                        + H * H * 2                  # bf16 folded weight
                        + H * 4),                    # folded bias
    )

    out = pl.pallas_call(
        _fused_add_ln_linear_kernel,
        out_shape=jax.ShapeDtypeStruct((n_pad, H), x404.dtype),
        grid_spec=pltpu.PrefetchScalarGridSpec(
            num_scalar_prefetch=0,
            grid=(n_grid,),
            in_specs=[
                pl.BlockSpec((tile_m, H), lambda i: (i, 0)),   # x404 rows
                pl.BlockSpec((tile_m, H), lambda i: (i, 0)),   # x400 rows
                pl.BlockSpec((H, H), lambda i: (0, 0)),        # folded weight (VMEM-resident)
                pl.BlockSpec((1, H), lambda i: (0, 0)),        # folded bias
            ],
            out_specs=pl.BlockSpec((tile_m, H), lambda i: (i, 0)),
        ),
        compiler_params=pltpu.CompilerParams(
            dimension_semantics=("parallel",)),
        cost_estimate=cost,
    )(a2, b2, w_fold_bf16, bias_fold)

    if n_pad != n_rows:
        out = out[:n_rows]
    # TODO(synk): if the consumer of x407 tolerates bf16, make out_shape bf16
    # here to halve the output writeback.
    return out.reshape(B, S, H)


def _reference(x404, x400, gamma, beta, weight, bias):
    s = x404 + x400
    mean = jnp.mean(s, axis=-1, keepdims=True)
    var = jnp.mean((s - mean) ** 2, axis=-1, keepdims=True)
    normed = (s - mean) / jnp.sqrt(var + EPS) * gamma + beta
    return normed @ weight.T + bias


if __name__ == "__main__":
    key = jax.random.PRNGKey(0)
    k1, k2, k3, k4, k5, k6 = jax.random.split(key, 6)

    # Shapes from the module spec: (1, 384, 768).
    B, S, H = 1, 384, HIDDEN

    x404 = jax.random.normal(k1, (B, S, H), dtype=jnp.float32)
    x400 = jax.random.normal(k2, (B, S, H), dtype=jnp.float32)

    # Non-trivial affine params so the gamma/beta fold is actually exercised.
    gamma = 1.0 + 0.1 * jax.random.normal(k5, (H,), dtype=jnp.float32)
    beta = 0.05 * jax.random.normal(k6, (H,), dtype=jnp.float32)
    weight = jax.random.normal(k3, (H, H), dtype=jnp.float32) * 0.02  # (out, in)
    bias = jax.random.normal(k4, (H,), dtype=jnp.float32) * 0.02

    # One-time parameter prep (off the per-call path): fold LN affine into the
    # linear weight/bias, transpose to (in, out), cast weight to bf16.
    w_fold_bf16, bias_fold = prepare_params(gamma, beta, weight, bias)

    out = fused_add_ln_linear(x404, x400, w_fold_bf16, bias_fold)
    out = jax.block_until_ready(out)

    ref = _reference(x404, x400, gamma, beta, weight, bias)
    assert out.shape == (B, S, H)
    # bf16 GEMM operands with f32 accumulation -> ~1e-2 level agreement vs f32.
    assert jnp.allclose(out, ref, atol=3e-2, rtol=3e-2), float(
        jnp.max(jnp.abs(out - ref)))

    print("KERNEL_OK")
</pallas_src>

<mosaic_0001>
module attributes {stable_mosaic.version = 11 : i64} {
  func.func @_fused_add_ln_linear_kernel(%arg0: i32, %arg1: memref<192x768xf32, #tpu.memory_space<vmem>>, %arg2: memref<192x768xf32, #tpu.memory_space<vmem>>, %arg3: memref<768x768xbf16, #tpu.memory_space<vmem>>, %arg4: memref<1x768xf32, #tpu.memory_space<vmem>>, %arg5: memref<192x768xf32, #tpu.memory_space<vmem>>) attributes {dimension_semantics = [#tpu.dimension_semantics<parallel>], iteration_bounds = array<i64: 2>, scalar_prefetch = 0 : i64, scratch_operands = 0 : i64, tpu.core_type = #tpu.core_type<tc>, window_params = [{transform_indices = @transform_0, window_bounds = array<i64: 192, 768>}, {transform_indices = @transform_1, window_bounds = array<i64: 192, 768>}, {pipeline_mode = #tpu.pipeline_mode<synchronous>, transform_indices = @transform_2, window_bounds = array<i64: 768, 768>}, {pipeline_mode = #tpu.pipeline_mode<synchronous>, transform_indices = @transform_3, window_bounds = array<i64: 1, 768>}, {transform_indices = @transform_4, window_bounds = array<i64: 192, 768>}]} {
    %c0 = arith.constant 0 : index
    %c0_0 = arith.constant 0 : index
    %0 = vector.load %arg1[%c0, %c0_0] : memref<192x768xf32, #tpu.memory_space<vmem>>, vector<192x768xf32>
    %c0_1 = arith.constant 0 : index
    %c0_2 = arith.constant 0 : index
    %1 = vector.load %arg2[%c0_1, %c0_2] : memref<192x768xf32, #tpu.memory_space<vmem>>, vector<192x768xf32>
    %2 = arith.addf %0, %1 : vector<192x768xf32>
    %cst = arith.constant dense<0.000000e+00> : vector<192xf32>
    %3 = vector.multi_reduction <add>, %2, %cst [1] : vector<192x768xf32> to vector<192xf32>
    %4 = vector.shape_cast %3 : vector<192xf32> to vector<192x1xf32>
    %cst_3 = arith.constant 7.680000e+02 : f32
    %5 = vector.broadcast %cst_3 : f32 to vector<192x1xf32>
    %6 = arith.divf %4, %5 : vector<192x1xf32>
    %7 = arith.mulf %2, %2 : vector<192x768xf32>
    %cst_4 = arith.constant dense<0.000000e+00> : vector<192xf32>
    %8 = vector.multi_reduction <add>, %7, %cst_4 [1] : vector<192x768xf32> to vector<192xf32>
    %9 = vector.shape_cast %8 : vector<192xf32> to vector<192x1xf32>
    %cst_5 = arith.constant 7.680000e+02 : f32
    %10 = vector.broadcast %cst_5 : f32 to vector<192x1xf32>
    %11 = arith.divf %9, %10 : vector<192x1xf32>
    %12 = arith.mulf %6, %6 : vector<192x1xf32>
    %13 = arith.subf %11, %12 : vector<192x1xf32>
    %cst_6 = arith.constant 9.99999996E-13 : f32
    %14 = vector.broadcast %cst_6 : f32 to vector<192x1xf32>
    %15 = arith.addf %13, %14 : vector<192x1xf32>
    %16 = math.rsqrt %15 : vector<192x1xf32>
    %17 = vector.broadcast %16 : vector<192x1xf32> to vector<192x768xf32>
    %18 = arith.mulf %2, %17 : vector<192x768xf32>
    %19 = arith.mulf %6, %16 : vector<192x1xf32>
    %20 = vector.broadcast %19 : vector<192x1xf32> to vector<192x768xf32>
    %21 = arith.subf %18, %20 : vector<192x768xf32>
    %22 = arith.truncf %21 : vector<192x768xf32> to vector<192x768xbf16>
    %c0_7 = arith.constant 0 : index
    %c0_8 = arith.constant 0 : index
    %23 = vector.load %arg3[%c0_7, %c0_8] : memref<768x768xbf16, #tpu.memory_space<vmem>>, vector<768x768xbf16>
    %cst_9 = arith.constant dense<0.000000e+00> : vector<192x768xf32>
    %24 = tpu.matmul %22, %23, %cst_9 {dimension_numbers = #tpu.dot_dimension_numbers<[1], [0], [0], [1], [0, 0, 1, 1], [], []>} : vector<192x768xbf16>, vector<768x768xbf16>, vector<192x768xf32> -> vector<192x768xf32>
    %c0_10 = arith.constant 0 : index
    %c0_11 = arith.constant 0 : index
    %25 = vector.load %arg4[%c0_10, %c0_11] : memref<1x768xf32, #tpu.memory_space<vmem>>, vector<1x768xf32>
    %26 = vector.broadcast %25 : vector<1x768xf32> to vector<192x768xf32>
    %27 = arith.addf %24, %26 : vector<192x768xf32>
    %c0_12 = arith.constant 0 : index
    %c0_13 = arith.constant 0 : index
    %28 = vector.load %arg5[%c0_12, %c0_13] : memref<192x768xf32, #tpu.memory_space<vmem>>, vector<192x768xf32>
    tpu.vector_store %arg5[%c0_12, %c0_13], %27 {strides = array<i32>} : memref<192x768xf32, #tpu.memory_space<vmem>>, vector<192x768xf32>,
    return
  }
  func.func @transform_0(%arg0: i32) -> (i32, i32) {
    %c0_i32 = arith.constant 0 : i32
    %c0_i32_0 = arith.constant 0 : i32
    return %arg0, %c0_i32 : i32, i32
  }
  func.func @transform_1(%arg0: i32) -> (i32, i32) {
    %c0_i32 = arith.constant 0 : i32
    %c0_i32_0 = arith.constant 0 : i32
    return %arg0, %c0_i32 : i32, i32
  }
  func.func @transform_2(%arg0: i32) -> (i32, i32) {
    %c0_i32 = arith.constant 0 : i32
    %c0_i32_0 = arith.constant 0 : i32
    %c0_i32_1 = arith.constant 0 : i32
    return %c0_i32, %c0_i32_0 : i32, i32
  }
  func.func @transform_3(%arg0: i32) -> (i32, i32) {
    %c0_i32 = arith.constant 0 : i32
    %c0_i32_0 = arith.constant 0 : i32
    %c0_i32_1 = arith.constant 0 : i32
    return %c0_i32, %c0_i32_0 : i32, i32
  }
  func.func @transform_4(%arg0: i32) -> (i32, i32) {
    %c0_i32 = arith.constant 0 : i32
    %c0_i32_0 = arith.constant 0 : i32
    return %arg0, %c0_i32 : i32, i32
  }
}

</mosaic_0001>

<llo_original>
// kernel: fused_add_ln_linear.1
$region0: #{fused_add_ln_linear.1}
  #allocation0 [shape = 'u32[]', space=smem, size = 0x4, offset = 0x4, fixed_abs, tag = 'smem constant byte address 0x4 - core index']
  #allocation1 [shape = 'u32[72,128]{1,0:T(1,128)}', space=vmem, size = 0x9000, scoped, tag = 'internal scratch']
  %s0 = inlined_call_operand.hbm [shape: f32[384,768], index: 0, kind: input, shape index: {}]
  %s1 = inlined_call_operand.hbm [shape: f32[384,768], index: 1, kind: input, shape index: {}]
  %s2 = inlined_call_operand.hbm [shape: bf16[768,768], index: 2, kind: input, shape index: {}]
  %s3 = inlined_call_operand.hbm [shape: f32[1,768], index: 3, kind: input, shape index: {}]
  %s4 = inlined_call_operand.hbm [shape: f32[384,768], index: 4, kind: output, shape index: {}]
  %s5 = sld [smem:[#allocation0]]
  $region65: #{fused_add_ln_linear.1} parent=0
    _
  %s7 = ssub.s32 1, %s5
  %s8 = scalar_select 0, %s7, %s5
  $region1: #{fused_add_ln_linear.1} parent=0
    #allocation2 [shape = 'u8[1179648]{0}', space=vmem, size = 0x120000, scoped, tag = 'input window, operand 0']
    #allocation3 [shape = 's32[2]{0}', space=sflag, size = 0x8, scoped, tag = 'scoped memory for fused_add_ln_linear.1']
    #allocation4 [shape = 's32[2]{0}', space=sflag, size = 0x8, scoped, tag = 'scoped memory for fused_add_ln_linear.1']
    #allocation5 [shape = 'u8[1179648]{0}', space=vmem, size = 0x120000, scoped, tag = 'input window, operand 1']
    #allocation6 [shape = 's32[2]{0}', space=sflag, size = 0x8, scoped, tag = 'scoped memory for fused_add_ln_linear.1']
    #allocation7 [shape = 'u8[1179648]{0}', space=vmem, size = 0x120000, scoped, tag = 'input window, operand 2, single buffered']
    #allocation8 [shape = 'u8[3072]{0}', space=vmem, size = 0xc00, scoped, tag = 'input window, operand 3, single buffered']
    #allocation9 [shape = 's32[1]{0}', space=sflag, size = 0x4, scoped, tag = 'scoped memory for fused_add_ln_linear.1']
    #allocation10 [shape = 'u8[1179648]{0}', space=vmem, size = 0x120000, scoped, tag = 'output window, operand 0']
    %9 = vsyncpa [#allocation3], 0
    %s10 = scalar_lea.sflag [#allocation3], 1
    %11 = vsyncpa %s10, 0
    %12 = vsyncpa [#allocation6], 0
    %s13 = scalar_lea.sflag [#allocation6], 1
    %14 = vsyncpa %s13, 0
    %15 = vsyncpa [#allocation9], 0
    %16 = vsyncpa [#allocation4], 0
    %s17 = scalar_lea.sflag [#allocation4], 1
    %18 = vsyncpa %s17, 0
    loop: start=0, step=1, limit=4
    $region2: #{fused_add_ln_linear.1} parent=1 // loop_pre_header
      _
    $region3: #{fused_add_ln_linear.1} parent=1 // loop_header
      %s20 = sphi 0, %s24
      %p21 = scmp.ge.s32.totalorder %s20, 4
      %s30 = sphi 0, %s32
      %s33 = sphi 0, %s30
      %s34 = sphi 0, %s33
      %s50 = sphi 0, %s34
      %s56 = sphi 0, %s58
      %s59 = sphi 0, %s56
      %s60 = sphi 0, %s59
      %s76 = sphi 0, %s60
      %s80 = sphi 0, %s80
      %s82 = sphi 0, %s80
      %s83 = sphi 0, %s82
      %s97 = sphi 0, %s83
      %s101 = sphi 0, %s101
      %s103 = sphi 0, %s101
      %s104 = sphi 0, %s103
      %s118 = sphi 0, %s104
      %s124 = sphi 0, %s126
      %s127 = sphi 0, %s124
      %s128 = sphi 0, %s127
      %s144 = sphi 0, %s128
    $region4: #{fused_add_ln_linear.1} parent=1 // loop_header_branch
      %23 = sbr.rel (%p21) target = $region8
    $region5: #{fused_add_ln_linear.1} parent=1 // loop_body
      %s25 = ssub.s32 %s20, 1
      %s26 = ssub.s32 %s20, 2
      %s27 = sadd.s32 %s20, 1
      %s28 = ssub.s32 %s20, %s27
      %p29 = scmp.eq.s32.totalorder %s28, 0
      %s31 = sadd.s32 %s30, 1
      %s32 = scalar_select %p29, %s30, %s31
      %p35 = pneg %p29
      %p36 = scmp.eq.s32.totalorder %s20, 1
      %p37 = por %p35, %p36
      %p38 = scmp.ne.s32.totalorder %s30, %s33
      %p39 = scmp.eq.s32.totalorder %s20, 0
      %p40 = por %p38, %p39
      %p41 = scmp.ne.s32.totalorder %s30, %s33
      %p42 = scmp.eq.s32.totalorder %s25, 1
      %p43 = por %p41, %p42
      %p44 = scmp.ne.s32.totalorder %s33, %s34
      %p45 = scmp.eq.s32.totalorder %s25, 0
      %p46 = por %p44, %p45
      %p47 = scmp.ne.s32.totalorder %s33, %s34
      %p48 = scmp.eq.s32.totalorder %s26, 1
      %p49 = por %p47, %p48
      %p51 = scmp.ne.s32.totalorder %s34, %s50
      %p52 = scmp.eq.s32.totalorder %s26, 0
      %p53 = por %p51, %p52
      %s54 = ssub.s32 %s20, %s27
      %p55 = scmp.eq.s32.totalorder %s54, 0
      %s57 = sadd.s32 %s56, 1
      %s58 = scalar_select %p55, %s56, %s57
      %p61 = pneg %p55
      %p62 = scmp.eq.s32.totalorder %s20, 1
      %p63 = por %p61, %p62
      %p64 = scmp.ne.s32.totalorder %s56, %s59
      %p65 = scmp.eq.s32.totalorder %s20, 0
      %p66 = por %p64, %p65
      %p67 = scmp.ne.s32.totalorder %s56, %s59
      %p68 = scmp.eq.s32.totalorder %s25, 1
      %p69 = por %p67, %p68
      %p70 = scmp.ne.s32.totalorder %s59, %s60
      %p71 = scmp.eq.s32.totalorder %s25, 0
      %p72 = por %p70, %p71
      %p73 = scmp.ne.s32.totalorder %s59, %s60
      %p74 = scmp.eq.s32.totalorder %s26, 1
      %p75 = por %p73, %p74
      %p77 = scmp.ne.s32.totalorder %s60, %s76
      %p78 = scmp.eq.s32.totalorder %s26, 0
      %p79 = por %p77, %p78
      %s81 = sadd.s32 %s80, 1
      %p84 = scmp.eq.s32.totalorder %s20, 1
      %p85 = scmp.ne.s32.totalorder %s80, %s82
      %p86 = scmp.eq.s32.totalorder %s20, 0
      %p87 = por %p85, %p86
      %p88 = scmp.ne.s32.totalorder %s80, %s82
      %p89 = scmp.eq.s32.totalorder %s25, 1
      %p90 = por %p88, %p89
      %p91 = scmp.ne.s32.totalorder %s82, %s83
      %p92 = scmp.eq.s32.totalorder %s25, 0
      %p93 = por %p91, %p92
      %p94 = scmp.ne.s32.totalorder %s82, %s83
      %p95 = scmp.eq.s32.totalorder %s26, 1
      %p96 = por %p94, %p95
      %p98 = scmp.ne.s32.totalorder %s83, %s97
      %p99 = scmp.eq.s32.totalorder %s26, 0
      %p100 = por %p98, %p99
      %s102 = sadd.s32 %s101, 1
      %p105 = scmp.eq.s32.totalorder %s20, 1
      %p106 = scmp.ne.s32.totalorder %s101, %s103
      %p107 = scmp.eq.s32.totalorder %s20, 0
      %p108 = por %p106, %p107
      %p109 = scmp.ne.s32.totalorder %s101, %s103
      %p110 = scmp.eq.s32.totalorder %s25, 1
      %p111 = por %p109, %p110
      %p112 = scmp.ne.s32.totalorder %s103, %s104
      %p113 = scmp.eq.s32.totalorder %s25, 0
      %p114 = por %p112, %p113
      %p115 = scmp.ne.s32.totalorder %s103, %s104
      %p116 = scmp.eq.s32.totalorder %s26, 1
      %p117 = por %p115, %p116
      %p119 = scmp.ne.s32.totalorder %s104, %s118
      %p120 = scmp.eq.s32.totalorder %s26, 0
      %p121 = por %p119, %p120
      %s122 = ssub.s32 %s20, %s27
      %p123 = scmp.eq.s32.totalorder %s122, 0
      %s125 = sadd.s32 %s124, 1
      %s126 = scalar_select %p123, %s124, %s125
      %p129 = pneg %p123
      %p130 = scmp.eq.s32.totalorder %s20, 1
      %p131 = por %p129, %p130
      %p132 = scmp.ne.s32.totalorder %s124, %s127
      %p133 = scmp.eq.s32.totalorder %s20, 0
      %p134 = por %p132, %p133
      %p135 = scmp.ne.s32.totalorder %s124, %s127
      %p136 = scmp.eq.s32.totalorder %s25, 1
      %p137 = por %p135, %p136
      %p138 = scmp.ne.s32.totalorder %s127, %s128
      %p139 = scmp.eq.s32.totalorder %s25, 0
      %p140 = por %p138, %p139
      %p141 = scmp.ne.s32.totalorder %s127, %s128
      %p142 = scmp.eq.s32.totalorder %s26, 1
      %p143 = por %p141, %p142
      %p145 = scmp.ne.s32.totalorder %s128, %s144
      %p146 = scmp.eq.s32.totalorder %s26, 0
      %p147 = por %p145, %p146
      %p148 = scmp.le.s32.totalorder 1, %s20
      %p149 = scmp.lt.s32.totalorder %s20, 3
      %p150 = pnand %p148, %p149
      %p151 = pneg %p150
      // Predicated region
      $region9: #{fused_add_ln_linear.1} parent=5 // pred_check
        _
      $region10: #{fused_add_ln_linear.1} parent=5 // pred_check_branch
        %153 = sbr.rel (%p150) target = $region12
      $region11: #{fused_add_ln_linear.1} parent=5 // pred_region
        %s154 = ssub.s32 %s20, 1
        // Predicated region
        $region13: #{fused_add_ln_linear.1} parent=11 // pred_check
          %p155 = pneg %p93
        $region14: #{fused_add_ln_linear.1} parent=11 // pred_check_branch
          %157 = sbr.rel (%p155) target = $region16
        $region15: #{fused_add_ln_linear.1} parent=11 // pred_region
          %159 = vsyncadd [#allocation6], 0
          %s160 = sshll.u32 %s2, 4
          %s161 = int_to_ptr.hbm [resolvable:$true] %s160
          %s162 = sshll.u32 [#allocation7], 4
          %s163 = int_to_ptr.vmem [resolvable:$true] %s162
          %168 = dma.hbm_to_vmem [thread:$0]  %s161, 36864, %s163, [#allocation6], 384, 384, 24
        $region16: #{fused_add_ln_linear.1} parent=11 // pred_fallthru
          _
        // Predicated region
        $region17: #{fused_add_ln_linear.1} parent=11 // pred_check
          %p169 = pneg %p114
        $region18: #{fused_add_ln_linear.1} parent=11 // pred_check_branch
          %171 = sbr.rel (%p169) target = $region20
        $region19: #{fused_add_ln_linear.1} parent=11 // pred_region
          %173 = vsyncadd [#allocation9], 0
          %s175 = sshll.u32 %s3, 4
          %s176 = int_to_ptr.hbm [resolvable:$true] %s175
          %s177 = sshll.u32 [#allocation8], 4
          %s178 = int_to_ptr.vmem [resolvable:$true] %s177
          %180 = dma.hbm_to_vmem [thread:$0]  %s176, 96, %s178, [#allocation9]
        $region20: #{fused_add_ln_linear.1} parent=11 // pred_fallthru
          _
      $region12: #{fused_add_ln_linear.1} parent=5 // pred_fallthru
        _
      %p181 = scmp.lt.s32.totalorder %s20, 2
      // Predicated region
      $region21: #{fused_add_ln_linear.1} parent=5 // pred_check
        %p182 = pneg %p181
      $region22: #{fused_add_ln_linear.1} parent=5 // pred_check_branch
        %184 = sbr.rel (%p182) target = $region24
      $region23: #{fused_add_ln_linear.1} parent=5 // pred_region
        // Predicated region
        $region25: #{fused_add_ln_linear.1} parent=23 // pred_check
          %p185 = pneg %p40
        $region26: #{fused_add_ln_linear.1} parent=23 // pred_check_branch
          %187 = sbr.rel (%p185) target = $region28
        $region27: #{fused_add_ln_linear.1} parent=23 // pred_region
          %s188 = sand.u32 %s30, 1
          %s189 = scalar_lea.sflag [#allocation3], %s188
          %s190 = sand.u32 %s30, 1
          %s191 = smul.addr %s190, 1152
          %s192 = scalar_lea.vmem [#allocation2], %s191
          %s193 = smul.u32 24, %s20
          %195 = vsyncadd %s189, 0
          %s196 = smul.addr %s193, 6
          %s197 = smul.addr %s196, 8
          %s198 = scalar_lea.hbm %s0, %s197
          %s199 = sshll.u32 %s198, 4
          %s200 = int_to_ptr.hbm [resolvable:$true] %s199
          %s201 = sshll.u32 %s192, 4
          %s202 = int_to_ptr.vmem [resolvable:$true] %s201
          %207 = dma.hbm_to_vmem [thread:$0]  %s200, 18432, %s202, %s189, 768, 768, 48
        $region28: #{fused_add_ln_linear.1} parent=23 // pred_fallthru
          _
        // Predicated region
        $region29: #{fused_add_ln_linear.1} parent=23 // pred_check
          %p208 = pneg %p66
        $region30: #{fused_add_ln_linear.1} parent=23 // pred_check_branch
          %210 = sbr.rel (%p208) target = $region32
        $region31: #{fused_add_ln_linear.1} parent=23 // pred_region
          %s211 = sand.u32 %s20, 1
          %s212 = scalar_lea.sflag [#allocation6], %s211
          %s213 = sand.u32 %s56, 1
          %s214 = smul.addr %s213, 1152
          %s215 = scalar_lea.vmem [#allocation5], %s214
          %s216 = smul.u32 24, %s20
          %218 = vsyncadd %s212, 0
          %s219 = smul.addr %s216, 6
          %s220 = smul.addr %s219, 8
          %s221 = scalar_lea.hbm %s1, %s220
          %s222 = sshll.u32 %s221, 4
          %s223 = int_to_ptr.hbm [resolvable:$true] %s222
          %s224 = sshll.u32 %s215, 4
          %s225 = int_to_ptr.vmem [resolvable:$true] %s224
          %230 = dma.hbm_to_vmem [thread:$0]  %s223, 18432, %s225, %s212, 768, 768, 48
        $region32: #{fused_add_ln_linear.1} parent=23 // pred_fallthru
          _
      $region24: #{fused_add_ln_linear.1} parent=5 // pred_fallthru
        _
      %p231 = scmp.le.s32.totalorder 1, %s20
      %p232 = scmp.lt.s32.totalorder %s20, 3
      %p233 = pnand %p231, %p232
      %p234 = pneg %p233
      // Predicated region
      $region33: #{fused_add_ln_linear.1} parent=5 // pred_check
        _
      $region34: #{fused_add_ln_linear.1} parent=5 // pred_check_branch
        %236 = sbr.rel (%p233) target = $region36
      $region35: #{fused_add_ln_linear.1} parent=5 // pred_region
        %s237 = ssub.s32 %s20, 1
        %s238 = sand.u32 %s33, 1
        %s239 = scalar_lea.sflag [#allocation3], %s238
        %s240 = sand.u32 %s33, 1
        %s241 = smul.addr %s240, 1152
        %s242 = scalar_lea.vmem [#allocation2], %s241
        // Predicated region
        $region37: #{fused_add_ln_linear.1} parent=35 // pred_check
          %p243 = pneg %p46
        $region38: #{fused_add_ln_linear.1} parent=35 // pred_check_branch
          %245 = sbr.rel (%p243) target = $region40
        $region39: #{fused_add_ln_linear.1} parent=35 // pred_region
          %247 = dma.done %s239, 18432
        $region40: #{fused_add_ln_linear.1} parent=35 // pred_fallthru
          _
        %s248 = sand.u32 %s25, 1
        %s249 = scalar_lea.sflag [#allocation6], %s248
        %s250 = sand.u32 %s59, 1
        %s251 = smul.addr %s250, 1152
        %s252 = scalar_lea.vmem [#allocation5], %s251
        // Predicated region
        $region41: #{fused_add_ln_linear.1} parent=35 // pred_check
          %p253 = pneg %p72
        $region42: #{fused_add_ln_linear.1} parent=35 // pred_check_branch
          %255 = sbr.rel (%p253) target = $region44
        $region43: #{fused_add_ln_linear.1} parent=35 // pred_region
          %257 = dma.done %s249, 18432
        $region44: #{fused_add_ln_linear.1} parent=35 // pred_fallthru
          _
        // Predicated region
        $region45: #{fused_add_ln_linear.1} parent=35 // pred_check
          %p258 = pneg %p93
        $region46: #{fused_add_ln_linear.1} parent=35 // pred_check_branch
          %260 = sbr.rel (%p258) target = $region48
        $region47: #{fused_add_ln_linear.1} parent=35 // pred_region
          %262 = dma.done [#allocation6], 36864
        $region48: #{fused_add_ln_linear.1} parent=35 // pred_fallthru
          _
        // Predicated region
        $region49: #{fused_add_ln_linear.1} parent=35 // pred_check
          %p263 = pneg %p114
        $region50: #{fused_add_ln_linear.1} parent=35 // pred_check_branch
          %265 = sbr.rel (%p263) target = $region52
        $region51: #{fused_add_ln_linear.1} parent=35 // pred_region
          %267 = dma.done [#allocation9], 96
        $region52: #{fused_add_ln_linear.1} parent=35 // pred_fallthru
          _
        %s268 = sand.u32 %s33, 1
        %s269 = scalar_lea.sflag [#allocation3], %s268
        %s270 = sand.u32 %s33, 1
        %s271 = smul.addr %s270, 1152
        %s272 = scalar_lea.vmem [#allocation2], %s271
        %p273 = pneg %p46
        %p274 = pneg %p43
        %s275 = sand.u32 %s25, 1
        %s276 = scalar_lea.sflag [#allocation6], %s275
        %s277 = sand.u32 %s59, 1
        %s278 = smul.addr %s277, 1152
        %s279 = scalar_lea.vmem [#allocation5], %s278
        %p280 = pneg %p72
        %p281 = pneg %p69
        %p282 = pneg %p93
        %p283 = pneg %p90
        %p284 = pneg %p114
        %p285 = pneg %p111
        %p286 = pneg %p140
        %p287 = pneg %p137
        %s288 = sand.u32 %s127, 1
        %s289 = scalar_lea.sflag [#allocation4], %s288
        %s290 = sand.u32 %s127, 1
        %s291 = smul.addr %s290, 1152
        %s292 = scalar_lea.vmem [#allocation10], %s291
        %s293 = smul.u32 24, %s25
        %s294 = smul.u32 24, %s25
        %s295 = smul.u32 24, %s25
        %v296 = vld [vmem:[%s242] sm:$0xff]
        %v297 = vld [vmem:[%s242 + $0x8] sm:$0xff]
        %v298 = vld [vmem:[%s242 + $0x10] sm:$0xff]
        %v299 = vld [vmem:[%s242 + $0x18] sm:$0xff]
        %v300 = vld [vmem:[%s242 + $0x20] sm:$0xff]
        %v301 = vld [vmem:[%s242 + $0x28] sm:$0xff]
        %v302 = vld [vmem:[%s242 + $0x30] sm:$0xff]
        %v303 = vld [vmem:[%s242 + $0x38] sm:$0xff]
        %v304 = vld [vmem:[%s242 + $0x40] sm:$0xff]
        %v305 = vld [vmem:[%s242 + $0x48] sm:$0xff]
        %v306 = vld [vmem:[%s242 + $0x50] sm:$0xff]
        %v307 = vld [vmem:[%s242 + $0x58] sm:$0xff]
        %v308 = vld [vmem:[%s242 + $0x60] sm:$0xff]
        %v309 = vld [vmem:[%s242 + $0x68] sm:$0xff]
        %v310 = vld [vmem:[%s242 + $0x70] sm:$0xff]
        %v311 = vld [vmem:[%s242 + $0x78] sm:$0xff]
        %v312 = vld [vmem:[%s242 + $0x80] sm:$0xff]
        %v313 = vld [vmem:[%s242 + $0x88] sm:$0xff]
        %v314 = vld [vmem:[%s242 + $0x90] sm:$0xff]
        %v315 = vld [vmem:[%s242 + $0x98] sm:$0xff]
        %v316 = vld [vmem:[%s242 + $0xa0] sm:$0xff]
        %v317 = vld [vmem:[%s242 + $0xa8] sm:$0xff]
        %v318 = vld [vmem:[%s242 + $0xb0] sm:$0xff]
        %v319 = vld [vmem:[%s242 + $0xb8] sm:$0xff]
        %v320 = vld [vmem:[%s242 + $0xc0] sm:$0xff]
        %v321 = vld [vmem:[%s242 + $0xc8] sm:$0xff]
        %v322 = vld [vmem:[%s242 + $0xd0] sm:$0xff]
        %v323 = vld [vmem:[%s242 + $0xd8] sm:$0xff]
        %v324 = vld [vmem:[%s242 + $0xe0] sm:$0xff]
        %v325 = vld [vmem:[%s242 + $0xe8] sm:$0xff]
        %v326 = vld [vmem:[%s242 + $0xf0] sm:$0xff]
        %v327 = vld [vmem:[%s242 + $0xf8] sm:$0xff]
        %v328 = vld [vmem:[%s242 + $0x100] sm:$0xff]
        %v329 = vld [vmem:[%s242 + $0x108] sm:$0xff]
        %v330 = vld [vmem:[%s242 + $0x110] sm:$0xff]
        %v331 = vld [vmem:[%s242 + $0x118] sm:$0xff]
        %v332 = vld [vmem:[%s242 + $0x120] sm:$0xff]
        %v333 = vld [vmem:[%s242 + $0x128] sm:$0xff]
        %v334 = vld [vmem:[%s242 + $0x130] sm:$0xff]
        %v335 = vld [vmem:[%s242 + $0x138] sm:$0xff]
        %v336 = vld [vmem:[%s242 + $0x140] sm:$0xff]
        %v337 = vld [vmem:[%s242 + $0x148] sm:$0xff]
        %v338 = vld [vmem:[%s242 + $0x150] sm:$0xff]
        %v339 = vld [vmem:[%s242 + $0x158] sm:$0xff]
        %v340 = vld [vmem:[%s242 + $0x160] sm:$0xff]
        %v341 = vld [vmem:[%s242 + $0x168] sm:$0xff]
        %v342 = vld [vmem:[%s242 + $0x170] sm:$0xff]
        %v343 = vld [vmem:[%s242 + $0x178] sm:$0xff]
        %v344 = vld [vmem:[%s242 + $0x180] sm:$0xff]
        %v345 = vld [vmem:[%s242 + $0x188] sm:$0xff]
        %v346 = vld [vmem:[%s242 + $0x190] sm:$0xff]
        %v347 = vld [vmem:[%s242 + $0x198] sm:$0xff]
        %v348 = vld [vmem:[%s242 + $0x1a0] sm:$0xff]
        %v349 = vld [vmem:[%s242 + $0x1a8] sm:$0xff]
        %v350 = vld [vmem:[%s242 + $0x1b0] sm:$0xff]
        %v351 = vld [vmem:[%s242 + $0x1b8] sm:$0xff]
        %v352 = vld [vmem:[%s242 + $0x1c0] sm:$0xff]
        %v353 = vld [vmem:[%s242 + $0x1c8] sm:$0xff]
        %v354 = vld [vmem:[%s242 + $0x1d0] sm:$0xff]
        %v355 = vld [vmem:[%s242 + $0x1d8] sm:$0xff]
        %v356 = vld [vmem:[%s242 + $0x1e0] sm:$0xff]
        %v357 = vld [vmem:[%s242 + $0x1e8] sm:$0xff]
        %v358 = vld [vmem:[%s242 + $0x1f0] sm:$0xff]
        %v359 = vld [vmem:[%s242 + $0x1f8] sm:$0xff]
        %v360 = vld [vmem:[%s242 + $0x200] sm:$0xff]
        %v361 = vld [vmem:[%s242 + $0x208] sm:$0xff]
        %v362 = vld [vmem:[%s242 + $0x210] sm:$0xff]
        %v363 = vld [vmem:[%s242 + $0x218] sm:$0xff]
        %v364 = vld [vmem:[%s242 + $0x220] sm:$0xff]
        %v365 = vld [vmem:[%s242 + $0x228] sm:$0xff]
        %v366 = vld [vmem:[%s242 + $0x230] sm:$0xff]
        %v367 = vld [vmem:[%s242 + $0x238] sm:$0xff]
        %v368 = vld [vmem:[%s242 + $0x240] sm:$0xff]
        %v369 = vld [vmem:[%s242 + $0x248] sm:$0xff]
        %v370 = vld [vmem:[%s242 + $0x250] sm:$0xff]
        %v371 = vld [vmem:[%s242 + $0x258] sm:$0xff]
        %v372 = vld [vmem:[%s242 + $0x260] sm:$0xff]
        %v373 = vld [vmem:[%s242 + $0x268] sm:$0xff]
        %v374 = vld [vmem:[%s242 + $0x270] sm:$0xff]
        %v375 = vld [vmem:[%s242 + $0x278] sm:$0xff]
        %v376 = vld [vmem:[%s242 + $0x280] sm:$0xff]
        %v377 = vld [vmem:[%s242 + $0x288] sm:$0xff]
        %v378 = vld [vmem:[%s242 + $0x290] sm:$0xff]
        %v379 = vld [vmem:[%s242 + $0x298] sm:$0xff]
        %v380 = vld [vmem:[%s242 + $0x2a0] sm:$0xff]
        %v381 = vld [vmem:[%s242 + $0x2a8] sm:$0xff]
        %v382 = vld [vmem:[%s242 + $0x2b0] sm:$0xff]
        %v383 = vld [vmem:[%s242 + $0x2b8] sm:$0xff]
        %v384 = vld [vmem:[%s242 + $0x2c0] sm:$0xff]
        %v385 = vld [vmem:[%s242 + $0x2c8] sm:$0xff]
        %v386 = vld [vmem:[%s242 + $0x2d0] sm:$0xff]
        %v387 = vld [vmem:[%s242 + $0x2d8] sm:$0xff]
        %v388 = vld [vmem:[%s242 + $0x2e0] sm:$0xff]
        %v389 = vld [vmem:[%s242 + $0x2e8] sm:$0xff]
        %v390 = vld [vmem:[%s242 + $0x2f0] sm:$0xff]
        %v391 = vld [vmem:[%s242 + $0x2f8] sm:$0xff]
        %v392 = vld [vmem:[%s242 + $0x300] sm:$0xff]
        %v393 = vld [vmem:[%s242 + $0x308] sm:$0xff]
        %v394 = vld [vmem:[%s242 + $0x310] sm:$0xff]
        %v395 = vld [vmem:[%s242 + $0x318] sm:$0xff]
        %v396 = vld [vmem:[%s242 + $0x320] sm:$0xff]
        %v397 = vld [vmem:[%s242 + $0x328] sm:$0xff]
        %v398 = vld [vmem:[%s242 + $0x330] sm:$0xff]
        %v399 = vld [vmem:[%s242 + $0x338] sm:$0xff]
        %v400 = vld [vmem:[%s242 + $0x340] sm:$0xff]
        %v401 = vld [vmem:[%s242 + $0x348] sm:$0xff]
        %v402 = vld [vmem:[%s242 + $0x350] sm:$0xff]
        %v403 = vld [vmem:[%s242 + $0x358] sm:$0xff]
        %v404 = vld [vmem:[%s242 + $0x360] sm:$0xff]
        %v405 = vld [vmem:[%s242 + $0x368] sm:$0xff]
        %v406 = vld [vmem:[%s242 + $0x370] sm:$0xff]
        %v407 = vld [vmem:[%s242 + $0x378] sm:$0xff]
        %v408 = vld [vmem:[%s242 + $0x380] sm:$0xff]
        %v409 = vld [vmem:[%s242 + $0x388] sm:$0xff]
        %v410 = vld [vmem:[%s242 + $0x390] sm:$0xff]
        %v411 = vld [vmem:[%s242 + $0x398] sm:$0xff]
        %v412 = vld [vmem:[%s242 + $0x3a0] sm:$0xff]
        %v413 = vld [vmem:[%s242 + $0x3a8] sm:$0xff]
        %v414 = vld [vmem:[%s242 + $0x3b0] sm:$0xff]
        %v415 = vld [vmem:[%s242 + $0x3b8] sm:$0xff]
        %v416 = vld [vmem:[%s242 + $0x3c0] sm:$0xff]
        %v417 = vld [vmem:[%s242 + $0x3c8] sm:$0xff]
        %v418 = vld [vmem:[%s242 + $0x3d0] sm:$0xff]
        %v419 = vld [vmem:[%s242 + $0x3d8] sm:$0xff]
        %v420 = vld [vmem:[%s242 + $0x3e0] sm:$0xff]
        %v421 = vld [vmem:[%s242 + $0x3e8] sm:$0xff]
        %v422 = vld [vmem:[%s242 + $0x3f0] sm:$0xff]
        %v423 = vld [vmem:[%s242 + $0x3f8] sm:$0xff]
        %v424 = vld [vmem:[%s242 + $0x400] sm:$0xff]
        %v425 = vld [vmem:[%s242 + $0x408] sm:$0xff]
        %v426 = vld [vmem:[%s242 + $0x410] sm:$0xff]
        %v427 = vld [vmem:[%s242 + $0x418] sm:$0xff]
        %v428 = vld [vmem:[%s242 + $0x420] sm:$0xff]
        %v429 = vld [vmem:[%s242 + $0x428] sm:$0xff]
        %v430 = vld [vmem:[%s242 + $0x430] sm:$0xff]
        %v431 = vld [vmem:[%s242 + $0x438] sm:$0xff]
        %v432 = vld [vmem:[%s242 + $0x440] sm:$0xff]
        %v433 = vld [vmem:[%s242 + $0x448] sm:$0xff]
        %v434 = vld [vmem:[%s242 + $0x450] sm:$0xff]
        %v435 = vld [vmem:[%s242 + $0x458] sm:$0xff]
        %v436 = vld [vmem:[%s242 + $0x460] sm:$0xff]
        %v437 = vld [vmem:[%s242 + $0x468] sm:$0xff]
        %v438 = vld [vmem:[%s242 + $0x470] sm:$0xff]
        %v439 = vld [vmem:[%s242 + $0x478] sm:$0xff]
        %v440 = vld [vmem:[%s252] sm:$0xff]
        %v441 = vld [vmem:[%s252 + $0x8] sm:$0xff]
        %v442 = vld [vmem:[%s252 + $0x10] sm:$0xff]
        %v443 = vld [vmem:[%s252 + $0x18] sm:$0xff]
        %v444 = vld [vmem:[%s252 + $0x20] sm:$0xff]
        %v445 = vld [vmem:[%s252 + $0x28] sm:$0xff]
        %v446 = vld [vmem:[%s252 + $0x30] sm:$0xff]
        %v447 = vld [vmem:[%s252 + $0x38] sm:$0xff]
        %v448 = vld [vmem:[%s252 + $0x40] sm:$0xff]
        %v449 = vld [vmem:[%s252 + $0x48] sm:$0xff]
        %v450 = vld [vmem:[%s252 + $0x50] sm:$0xff]
        %v451 = vld [vmem:[%s252 + $0x58] sm:$0xff]
        %v452 = vld [vmem:[%s252 + $0x60] sm:$0xff]
        %v453 = vld [vmem:[%s252 + $0x68] sm:$0xff]
        %v454 = vld [vmem:[%s252 + $0x70] sm:$0xff]
        %v455 = vld [vmem:[%s252 + $0x78] sm:$0xff]
        %v456 = vld [vmem:[%s252 + $0x80] sm:$0xff]
        %v457 = vld [vmem:[%s252 + $0x88] sm:$0xff]
        %v458 = vld [vmem:[%s252 + $0x90] sm:$0xff]
        %v459 = vld [vmem:[%s252 + $0x98] sm:$0xff]
        %v460 = vld [vmem:[%s252 + $0xa0] sm:$0xff]
        %v461 = vld [vmem:[%s252 + $0xa8] sm:$0xff]
        %v462 = vld [vmem:[%s252 + $0xb0] sm:$0xff]
        %v463 = vld [vmem:[%s252 + $0xb8] sm:$0xff]
        %v464 = vld [vmem:[%s252 + $0xc0] sm:$0xff]
        %v465 = vld [vmem:[%s252 + $0xc8] sm:$0xff]
        %v466 = vld [vmem:[%s252 + $0xd0] sm:$0xff]
        %v467 = vld [vmem:[%s252 + $0xd8] sm:$0xff]
        %v468 = vld [vmem:[%s252 + $0xe0] sm:$0xff]
        %v469 = vld [vmem:[%s252 + $0xe8] sm:$0xff]
        %v470 = vld [vmem:[%s252 + $0xf0] sm:$0xff]
        %v471 = vld [vmem:[%s252 + $0xf8] sm:$0xff]
        %v472 = vld [vmem:[%s252 + $0x100] sm:$0xff]
        %v473 = vld [vmem:[%s252 + $0x108] sm:$0xff]
        %v474 = vld [vmem:[%s252 + $0x110] sm:$0xff]
        %v475 = vld [vmem:[%s252 + $0x118] sm:$0xff]
        %v476 = vld [vmem:[%s252 + $0x120] sm:$0xff]
        %v477 = vld [vmem:[%s252 + $0x128] sm:$0xff]
        %v478 = vld [vmem:[%s252 + $0x130] sm:$0xff]
        %v479 = vld [vmem:[%s252 + $0x138] sm:$0xff]
        %v480 = vld [vmem:[%s252 + $0x140] sm:$0xff]
        %v481 = vld [vmem:[%s252 + $0x148] sm:$0xff]
        %v482 = vld [vmem:[%s252 + $0x150] sm:$0xff]
        %v483 = vld [vmem:[%s252 + $0x158] sm:$0xff]
        %v484 = vld [vmem:[%s252 + $0x160] sm:$0xff]
        %v485 = vld [vmem:[%s252 + $0x168] sm:$0xff]
        %v486 = vld [vmem:[%s252 + $0x170] sm:$0xff]
        %v487 = vld [vmem:[%s252 + $0x178] sm:$0xff]
        %v488 = vld [vmem:[%s252 + $0x180] sm:$0xff]
        %v489 = vld [vmem:[%s252 + $0x188] sm:$0xff]
        %v490 = vld [vmem:[%s252 + $0x190] sm:$0xff]
        %v491 = vld [vmem:[%s252 + $0x198] sm:$0xff]
        %v492 = vld [vmem:[%s252 + $0x1a0] sm:$0xff]
        %v493 = vld [vmem:[%s252 + $0x1a8] sm:$0xff]
        %v494 = vld [vmem:[%s252 + $0x1b0] sm:$0xff]
        %v495 = vld [vmem:[%s252 + $0x1b8] sm:$0xff]
        %v496 = vld [vmem:[%s252 + $0x1c0] sm:$0xff]
        %v497 = vld [vmem:[%s252 + $0x1c8] sm:$0xff]
        %v498 = vld [vmem:[%s252 + $0x1d0] sm:$0xff]
        %v499 = vld [vmem:[%s252 + $0x1d8] sm:$0xff]
        %v500 = vld [vmem:[%s252 + $0x1e0] sm:$0xff]
        %v501 = vld [vmem:[%s252 + $0x1e8] sm:$0xff]
        %v502 = vld [vmem:[%s252 + $0x1f0] sm:$0xff]
        %v503 = vld [vmem:[%s252 + $0x1f8] sm:$0xff]
        %v504 = vld [vmem:[%s252 + $0x200] sm:$0xff]
        %v505 = vld [vmem:[%s252 + $0x208] sm:$0xff]
        %v506 = vld [vmem:[%s252 + $0x210] sm:$0xff]
        %v507 = vld [vmem:[%s252 + $0x218] sm:$0xff]
        %v508 = vld [vmem:[%s252 + $0x220] sm:$0xff]
        %v509 = vld [vmem:[%s252 + $0x228] sm:$0xff]
        %v510 = vld [vmem:[%s252 + $0x230] sm:$0xff]
        %v511 = vld [vmem:[%s252 + $0x238] sm:$0xff]
        %v512 = vld [vmem:[%s252 + $0x240] sm:$0xff]
        %v513 = vld [vmem:[%s252 + $0x248] sm:$0xff]
        %v514 = vld [vmem:[%s252 + $0x250] sm:$0xff]
        %v515 = vld [vmem:[%s252 + $0x258] sm:$0xff]
        %v516 = vld [vmem:[%s252 + $0x260] sm:$0xff]
        %v517 = vld [vmem:[%s252 + $0x268] sm:$0xff]
        %v518 = vld [vmem:[%s252 + $0x270] sm:$0xff]
        %v519 = vld [vmem:[%s252 + $0x278] sm:$0xff]
        %v520 = vld [vmem:[%s252 + $0x280] sm:$0xff]
        %v521 = vld [vmem:[%s252 + $0x288] sm:$0xff]
        %v522 = vld [vmem:[%s252 + $0x290] sm:$0xff]
        %v523 = vld [vmem:[%s252 + $0x298] sm:$0xff]
        %v524 = vld [vmem:[%s252 + $0x2a0] sm:$0xff]
        %v525 = vld [vmem:[%s252 + $0x2a8] sm:$0xff]
        %v526 = vld [vmem:[%s252 + $0x2b0] sm:$0xff]
        %v527 = vld [vmem:[%s252 + $0x2b8] sm:$0xff]
        %v528 = vld [vmem:[%s252 + $0x2c0] sm:$0xff]
        %v529 = vld [vmem:[%s252 + $0x2c8] sm:$0xff]
        %v530 = vld [vmem:[%s252 + $0x2d0] sm:$0xff]
        %v531 = vld [vmem:[%s252 + $0x2d8] sm:$0xff]
        %v532 = vld [vmem:[%s252 + $0x2e0] sm:$0xff]
        %v533 = vld [vmem:[%s252 + $0x2e8] sm:$0xff]
        %v534 = vld [vmem:[%s252 + $0x2f0] sm:$0xff]
        %v535 = vld [vmem:[%s252 + $0x2f8] sm:$0xff]
        %v536 = vld [vmem:[%s252 + $0x300] sm:$0xff]
        %v537 = vld [vmem:[%s252 + $0x308] sm:$0xff]
        %v538 = vld [vmem:[%s252 + $0x310] sm:$0xff]
        %v539 = vld [vmem:[%s252 + $0x318] sm:$0xff]
        %v540 = vld [vmem:[%s252 + $0x320] sm:$0xff]
        %v541 = vld [vmem:[%s252 + $0x328] sm:$0xff]
        %v542 = vld [vmem:[%s252 + $0x330] sm:$0xff]
        %v543 = vld [vmem:[%s252 + $0x338] sm:$0xff]
        %v544 = vld [vmem:[%s252 + $0x340] sm:$0xff]
        %v545 = vld [vmem:[%s252 + $0x348] sm:$0xff]
        %v546 = vld [vmem:[%s252 + $0x350] sm:$0xff]
        %v547 = vld [vmem:[%s252 + $0x358] sm:$0xff]
        %v548 = vld [vmem:[%s252 + $0x360] sm:$0xff]
        %v549 = vld [vmem:[%s252 + $0x368] sm:$0xff]
        %v550 = vld [vmem:[%s252 + $0x370] sm:$0xff]
        %v551 = vld [vmem:[%s252 + $0x378] sm:$0xff]
        %v552 = vld [vmem:[%s252 + $0x380] sm:$0xff]
        %v553 = vld [vmem:[%s252 + $0x388] sm:$0xff]
        %v554 = vld [vmem:[%s252 + $0x390] sm:$0xff]
        %v555 = vld [vmem:[%s252 + $0x398] sm:$0xff]
        %v556 = vld [vmem:[%s252 + $0x3a0] sm:$0xff]
        %v557 = vld [vmem:[%s252 + $0x3a8] sm:$0xff]
        %v558 = vld [vmem:[%s252 + $0x3b0] sm:$0xff]
        %v559 = vld [vmem:[%s252 + $0x3b8] sm:$0xff]
        %v560 = vld [vmem:[%s252 + $0x3c0] sm:$0xff]
        %v561 = vld [vmem:[%s252 + $0x3c8] sm:$0xff]
        %v562 = vld [vmem:[%s252 + $0x3d0] sm:$0xff]
        %v563 = vld [vmem:[%s252 + $0x3d8] sm:$0xff]
        %v564 = vld [vmem:[%s252 + $0x3e0] sm:$0xff]
        %v565 = vld [vmem:[%s252 + $0x3e8] sm:$0xff]
        %v566 = vld [vmem:[%s252 + $0x3f0] sm:$0xff]
        %v567 = vld [vmem:[%s252 + $0x3f8] sm:$0xff]
        %v568 = vld [vmem:[%s252 + $0x400] sm:$0xff]
        %v569 = vld [vmem:[%s252 + $0x408] sm:$0xff]
        %v570 = vld [vmem:[%s252 + $0x410] sm:$0xff]
        %v571 = vld [vmem:[%s252 + $0x418] sm:$0xff]
        %v572 = vld [vmem:[%s252 + $0x420] sm:$0xff]
        %v573 = vld [vmem:[%s252 + $0x428] sm:$0xff]
        %v574 = vld [vmem:[%s252 + $0x430] sm:$0xff]
        %v575 = vld [vmem:[%s252 + $0x438] sm:$0xff]
        %v576 = vld [vmem:[%s252 + $0x440] sm:$0xff]
        %v577 = vld [vmem:[%s252 + $0x448] sm:$0xff]
        %v578 = vld [vmem:[%s252 + $0x450] sm:$0xff]
        %v579 = vld [vmem:[%s252 + $0x458] sm:$0xff]
        %v580 = vld [vmem:[%s252 + $0x460] sm:$0xff]
        %v581 = vld [vmem:[%s252 + $0x468] sm:$0xff]
        %v582 = vld [vmem:[%s252 + $0x470] sm:$0xff]
        %v583 = vld [vmem:[%s252 + $0x478] sm:$0xff]
        %v584 = vadd.f32 %v296, %v440
        %v585 = vadd.f32 %v297, %v441
        %v586 = vadd.f32 %v298, %v442
        %v587 = vadd.f32 %v299, %v443
        %v588 = vadd.f32 %v300, %v444
        %v589 = vadd.f32 %v301, %v445
        %v590 = vadd.f32 %v302, %v446
        %v591 = vadd.f32 %v303, %v447
        %v592 = vadd.f32 %v304, %v448
        %v593 = vadd.f32 %v305, %v449
        %v594 = vadd.f32 %v306, %v450
        %v595 = vadd.f32 %v307, %v451
        %v596 = vadd.f32 %v308, %v452
        %v597 = vadd.f32 %v309, %v453
        %v598 = vadd.f32 %v310, %v454
        %v599 = vadd.f32 %v311, %v455
        %v600 = vadd.f32 %v312, %v456
        %v601 = vadd.f32 %v313, %v457
        %v602 = vadd.f32 %v314, %v458
        %v603 = vadd.f32 %v315, %v459
        %v604 = vadd.f32 %v316, %v460
        %v605 = vadd.f32 %v317, %v461
        %v606 = vadd.f32 %v318, %v462
        %v607 = vadd.f32 %v319, %v463
        %v608 = vadd.f32 %v320, %v464
        %v609 = vadd.f32 %v321, %v465
        %v610 = vadd.f32 %v322, %v466
        %v611 = vadd.f32 %v323, %v467
        %v612 = vadd.f32 %v324, %v468
        %v613 = vadd.f32 %v325, %v469
        %v614 = vadd.f32 %v326, %v470
        %v615 = vadd.f32 %v327, %v471
        %v616 = vadd.f32 %v328, %v472
        %v617 = vadd.f32 %v329, %v473
        %v618 = vadd.f32 %v330, %v474
        %v619 = vadd.f32 %v331, %v475
        %v620 = vadd.f32 %v332, %v476
        %v621 = vadd.f32 %v333, %v477
        %v622 = vadd.f32 %v334, %v478
        %v623 = vadd.f32 %v335, %v479
        %v624 = vadd.f32 %v336, %v480
        %v625 = vadd.f32 %v337, %v481
        %v626 = vadd.f32 %v338, %v482
        %v627 = vadd.f32 %v339, %v483
        %v628 = vadd.f32 %v340, %v484
        %v629 = vadd.f32 %v341, %v485
        %v630 = vadd.f32 %v342, %v486
        %v631 = vadd.f32 %v343, %v487
        %v632 = vadd.f32 %v344, %v488
        %v633 = vadd.f32 %v345, %v489
        %v634 = vadd.f32 %v346, %v490
        %v635 = vadd.f32 %v347, %v491
        %v636 = vadd.f32 %v348, %v492
        %v637 = vadd.f32 %v349, %v493
        %v638 = vadd.f32 %v350, %v494
        %v639 = vadd.f32 %v351, %v495
        %v640 = vadd.f32 %v352, %v496
        %v641 = vadd.f32 %v353, %v497
        %v642 = vadd.f32 %v354, %v498
        %v643 = vadd.f32 %v355, %v499
        %v644 = vadd.f32 %v356, %v500
        %v645 = vadd.f32 %v357, %v501
        %v646 = vadd.f32 %v358, %v502
        %v647 = vadd.f32 %v359, %v503
        %v648 = vadd.f32 %v360, %v504
        %v649 = vadd.f32 %v361, %v505
        %v650 = vadd.f32 %v362, %v506
        %v651 = vadd.f32 %v363, %v507
        %v652 = vadd.f32 %v364, %v508
        %v653 = vadd.f32 %v365, %v509
        %v654 = vadd.f32 %v366, %v510
        %v655 = vadd.f32 %v367, %v511
        %v656 = vadd.f32 %v368, %v512
        %v657 = vadd.f32 %v369, %v513
        %v658 = vadd.f32 %v370, %v514
        %v659 = vadd.f32 %v371, %v515
        %v660 = vadd.f32 %v372, %v516
        %v661 = vadd.f32 %v373, %v517
        %v662 = vadd.f32 %v374, %v518
        %v663 = vadd.f32 %v375, %v519
        %v664 = vadd.f32 %v376, %v520
        %v665 = vadd.f32 %v377, %v521
        %v666 = vadd.f32 %v378, %v522
        %v667 = vadd.f32 %v379, %v523
        %v668 = vadd.f32 %v380, %v524
        %v669 = vadd.f32 %v381, %v525
        %v670 = vadd.f32 %v382, %v526
        %v671 = vadd.f32 %v383, %v527
        %v672 = vadd.f32 %v384, %v528
        %v673 = vadd.f32 %v385, %v529
        %v674 = vadd.f32 %v386, %v530
        %v675 = vadd.f32 %v387, %v531
        %v676 = vadd.f32 %v388, %v532
        %v677 = vadd.f32 %v389, %v533
        %v678 = vadd.f32 %v390, %v534
        %v679 = vadd.f32 %v391, %v535
        %v680 = vadd.f32 %v392, %v536
        %v681 = vadd.f32 %v393, %v537
        %v682 = vadd.f32 %v394, %v538
        %v683 = vadd.f32 %v395, %v539
        %v684 = vadd.f32 %v396, %v540
        %v685 = vadd.f32 %v397, %v541
        %v686 = vadd.f32 %v398, %v542
        %v687 = vadd.f32 %v399, %v543
        %v688 = vadd.f32 %v400, %v544
        %v689 = vadd.f32 %v401, %v545
        %v690 = vadd.f32 %v402, %v546
        %v691 = vadd.f32 %v403, %v547
        %v692 = vadd.f32 %v404, %v548
        %v693 = vadd.f32 %v405, %v549
        %v694 = vadd.f32 %v406, %v550
        %v695 = vadd.f32 %v407, %v551
        %v696 = vadd.f32 %v408, %v552
        %v697 = vadd.f32 %v409, %v553
        %v698 = vadd.f32 %v410, %v554
        %v699 = vadd.f32 %v411, %v555
        %v700 = vadd.f32 %v412, %v556
        %v701 = vadd.f32 %v413, %v557
        %v702 = vadd.f32 %v414, %v558
        %v703 = vadd.f32 %v415, %v559
        %v704 = vadd.f32 %v416, %v560
        %v705 = vadd.f32 %v417, %v561
        %v706 = vadd.f32 %v418, %v562
        %v707 = vadd.f32 %v419, %v563
        %v708 = vadd.f32 %v420, %v564
        %v709 = vadd.f32 %v421, %v565
        %v710 = vadd.f32 %v422, %v566
        %v711 = vadd.f32 %v423, %v567
        %v712 = vadd.f32 %v424, %v568
        %v713 = vadd.f32 %v425, %v569
        %v714 = vadd.f32 %v426, %v570
        %v715 = vadd.f32 %v427, %v571
        %v716 = vadd.f32 %v428, %v572
        %v717 = vadd.f32 %v429, %v573
        %v718 = vadd.f32 %v430, %v574
        %v719 = vadd.f32 %v431, %v575
        %v720 = vadd.f32 %v432, %v576
        %v721 = vadd.f32 %v433, %v577
        %v722 = vadd.f32 %v434, %v578
        %v723 = vadd.f32 %v435, %v579
        %v724 = vadd.f32 %v436, %v580
        %v725 = vadd.f32 %v437, %v581
        %v726 = vadd.f32 %v438, %v582
        %v727 = vadd.f32 %v439, %v583
        %v728 = vadd.f32 %v584, %v585
        %v729 = vadd.f32 %v728, %v586
        %v730 = vadd.f32 %v729, %v587
        %v731 = vadd.f32 %v730, %v588
        %v732 = vadd.f32 %v731, %v589
        %733 = vadd.xlane.f32.xlu0 %v732
        %v734 = vpop.xlane.xlu0 %733
        %v735 = vadd.f32 %v590, %v591
        %v736 = vadd.f32 %v735, %v592
        %v737 = vadd.f32 %v736, %v593
        %v738 = vadd.f32 %v737, %v594
        %v739 = vadd.f32 %v738, %v595
        %740 = vadd.xlane.f32.xlu0 %v739
        %v741 = vpop.xlane.xlu0 %740
        %v742 = vadd.f32 %v596, %v597
        %v743 = vadd.f32 %v742, %v598
        %v744 = vadd.f32 %v743, %v599
        %v745 = vadd.f32 %v744, %v600
        %v746 = vadd.f32 %v745, %v601
        %747 = vadd.xlane.f32.xlu0 %v746
        %v748 = vpop.xlane.xlu0 %747
        %v749 = vadd.f32 %v602, %v603
        %v750 = vadd.f32 %v749, %v604
        %v751 = vadd.f32 %v750, %v605
        %v752 = vadd.f32 %v751, %v606
        %v753 = vadd.f32 %v752, %v607
        %754 = vadd.xlane.f32.xlu0 %v753
        %v755 = vpop.xlane.xlu0 %754
        %v756 = vadd.f32 %v608, %v609
        %v757 = vadd.f32 %v756, %v610
        %v758 = vadd.f32 %v757, %v611
        %v759 = vadd.f32 %v758, %v612
        %v760 = vadd.f32 %v759, %v613
        %761 = vadd.xlane.f32.xlu0 %v760
        %v762 = vpop.xlane.xlu0 %761
        %v763 = vadd.f32 %v614, %v615
        %v764 = vadd.f32 %v763, %v616
        %v765 = vadd.f32 %v764, %v617
        %v766 = vadd.f32 %v765, %v618
        %v767 = vadd.f32 %v766, %v619
        %768 = vadd.xlane.f32.xlu0 %v767
        %v769 = vpop.xlane.xlu0 %768
        %v770 = vadd.f32 %v620, %v621
        %v771 = vadd.f32 %v770, %v622
        %v772 = vadd.f32 %v771, %v623
        %v773 = vadd.f32 %v772, %v624
        %v774 = vadd.f32 %v773, %v625
        %775 = vadd.xlane.f32.xlu0 %v774
        %v776 = vpop.xlane.xlu0 %775
        %v777 = vadd.f32 %v626, %v627
        %v778 = vadd.f32 %v777, %v628
        %v779 = vadd.f32 %v778, %v629
        %v780 = vadd.f32 %v779, %v630
        %v781 = vadd.f32 %v780, %v631
        %782 = vadd.xlane.f32.xlu0 %v781
        %v783 = vpop.xlane.xlu0 %782
        %v784 = vadd.f32 %v632, %v633
        %v785 = vadd.f32 %v784, %v634
        %v786 = vadd.f32 %v785, %v635
        %v787 = vadd.f32 %v786, %v636
        %v788 = vadd.f32 %v787, %v637
        %789 = vadd.xlane.f32.xlu0 %v788
        %v790 = vpop.xlane.xlu0 %789
        %v791 = vadd.f32 %v638, %v639
        %v792 = vadd.f32 %v791, %v640
        %v793 = vadd.f32 %v792, %v641
        %v794 = vadd.f32 %v793, %v642
        %v795 = vadd.f32 %v794, %v643
        %796 = vadd.xlane.f32.xlu0 %v795
        %v797 = vpop.xlane.xlu0 %796
        %v798 = vadd.f32 %v644, %v645
        %v799 = vadd.f32 %v798, %v646
        %v800 = vadd.f32 %v799, %v647
        %v801 = vadd.f32 %v800, %v648
        %v802 = vadd.f32 %v801, %v649
        %803 = vadd.xlane.f32.xlu0 %v802
        %v804 = vpop.xlane.xlu0 %803
        %v805 = vadd.f32 %v650, %v651
        %v806 = vadd.f32 %v805, %v652
        %v807 = vadd.f32 %v806, %v653
        %v808 = vadd.f32 %v807, %v654
        %v809 = vadd.f32 %v808, %v655
        %810 = vadd.xlane.f32.xlu0 %v809
        %v811 = vpop.xlane.xlu0 %810
        %v812 = vadd.f32 %v656, %v657
        %v813 = vadd.f32 %v812, %v658
        %v814 = vadd.f32 %v813, %v659
        %v815 = vadd.f32 %v814, %v660
        %v816 = vadd.f32 %v815, %v661
        %817 = vadd.xlane.f32.xlu0 %v816
        %v818 = vpop.xlane.xlu0 %817
        %v819 = vadd.f32 %v662, %v663
        %v820 = vadd.f32 %v819, %v664
        %v821 = vadd.f32 %v820, %v665
        %v822 = vadd.f32 %v821, %v666
        %v823 = vadd.f32 %v822, %v667
        %824 = vadd.xlane.f32.xlu0 %v823
        %v825 = vpop.xlane.xlu0 %824
        %v826 = vadd.f32 %v668, %v669
        %v827 = vadd.f32 %v826, %v670
        %v828 = vadd.f32 %v827, %v671
        %v829 = vadd.f32 %v828, %v672
        %v830 = vadd.f32 %v829, %v673
        %831 = vadd.xlane.f32.xlu0 %v830
        %v832 = vpop.xlane.xlu0 %831
        %v833 = vadd.f32 %v674, %v675
        %v834 = vadd.f32 %v833, %v676
        %v835 = vadd.f32 %v834, %v677
        %v836 = vadd.f32 %v835, %v678
        %v837 = vadd.f32 %v836, %v679
        %838 = vadd.xlane.f32.xlu0 %v837
        %v839 = vpop.xlane.xlu0 %838
        %v840 = vadd.f32 %v680, %v681
        %v841 = vadd.f32 %v840, %v682
        %v842 = vadd.f32 %v841, %v683
        %v843 = vadd.f32 %v842, %v684
        %v844 = vadd.f32 %v843, %v685
        %845 = vadd.xlane.f32.xlu0 %v844
        %v846 = vpop.xlane.xlu0 %845
        %v847 = vadd.f32 %v686, %v687
        %v848 = vadd.f32 %v847, %v688
        %v849 = vadd.f32 %v848, %v689
        %v850 = vadd.f32 %v849, %v690
        %v851 = vadd.f32 %v850, %v691
        %852 = vadd.xlane.f32.xlu0 %v851
        %v853 = vpop.xlane.xlu0 %852
        %v854 = vadd.f32 %v692, %v693
        %v855 = vadd.f32 %v854, %v694
        %v856 = vadd.f32 %v855, %v695
        %v857 = vadd.f32 %v856, %v696
        %v858 = vadd.f32 %v857, %v697
        %859 = vadd.xlane.f32.xlu0 %v858
        %v860 = vpop.xlane.xlu0 %859
        %v861 = vadd.f32 %v698, %v699
        %v862 = vadd.f32 %v861, %v700
        %v863 = vadd.f32 %v862, %v701
        %v864 = vadd.f32 %v863, %v702
        %v865 = vadd.f32 %v864, %v703
        %866 = vadd.xlane.f32.xlu0 %v865
        %v867 = vpop.xlane.xlu0 %866
        %v868 = vadd.f32 %v704, %v705
        %v869 = vadd.f32 %v868, %v706
        %v870 = vadd.f32 %v869, %v707
        %v871 = vadd.f32 %v870, %v708
        %v872 = vadd.f32 %v871, %v709
        %873 = vadd.xlane.f32.xlu0 %v872
        %v874 = vpop.xlane.xlu0 %873
        %v875 = vadd.f32 %v710, %v711
        %v876 = vadd.f32 %v875, %v712
        %v877 = vadd.f32 %v876, %v713
        %v878 = vadd.f32 %v877, %v714
        %v879 = vadd.f32 %v878, %v715
        %880 = vadd.xlane.f32.xlu0 %v879
        %v881 = vpop.xlane.xlu0 %880
        %v882 = vadd.f32 %v716, %v717
        %v883 = vadd.f32 %v882, %v718
        %v884 = vadd.f32 %v883, %v719
        %v885 = vadd.f32 %v884, %v720
        %v886 = vadd.f32 %v885, %v721
        %887 = vadd.xlane.f32.xlu0 %v886
        %v888 = vpop.xlane.xlu0 %887
        %v889 = vadd.f32 %v722, %v723
        %v890 = vadd.f32 %v889, %v724
        %v891 = vadd.f32 %v890, %v725
        %v892 = vadd.f32 %v891, %v726
        %v893 = vadd.f32 %v892, %v727
        %894 = vadd.xlane.f32.xlu0 %v893
        %v895 = vpop.xlane.xlu0 %894
        %v896 = vrcp.pop 768.0
        %v897 = vmul.f32 768.0, %v896
        %v898 = vsub.f32 1.0, %v897
        %v899 = vmul.f32 %v896, %v898
        %v900 = vadd.f32 %v896, %v899
        %vm901 = vweird.f32 %v896
        %v902 = vsel %vm901, %v896, %v900
        %v903 = vmul.f32 %v734, %v902
        %v904 = vmul.f32 %v741, %v902
        %v905 = vmul.f32 %v748, %v902
        %v906 = vmul.f32 %v755, %v902
        %v907 = vmul.f32 %v762, %v902
        %v908 = vmul.f32 %v769, %v902
        %v909 = vmul.f32 %v776, %v902
        %v910 = vmul.f32 %v783, %v902
        %v911 = vmul.f32 %v790, %v902
        %v912 = vmul.f32 %v797, %v902
        %v913 = vmul.f32 %v804, %v902
        %v914 = vmul.f32 %v811, %v902
        %v915 = vmul.f32 %v818, %v902
        %v916 = vmul.f32 %v825, %v902
        %v917 = vmul.f32 %v832, %v902
        %v918 = vmul.f32 %v839, %v902
        %v919 = vmul.f32 %v846, %v902
        %v920 = vmul.f32 %v853, %v902
        %v921 = vmul.f32 %v860, %v902
        %v922 = vmul.f32 %v867, %v902
        %v923 = vmul.f32 %v874, %v902
        %v924 = vmul.f32 %v881, %v902
        %v925 = vmul.f32 %v888, %v902
        %v926 = vmul.f32 %v895, %v902
        %v927 = vmul.f32 %v584, %v584
        %v928 = vmul.f32 %v585, %v585
        %v929 = vmul.f32 %v586, %v586
        %v930 = vmul.f32 %v587, %v587
        %v931 = vmul.f32 %v588, %v588
        %v932 = vmul.f32 %v589, %v589
        %v933 = vmul.f32 %v590, %v590
        %v934 = vmul.f32 %v591, %v591
        %v935 = vmul.f32 %v592, %v592
        %v936 = vmul.f32 %v593, %v593
        %v937 = vmul.f32 %v594, %v594
        %v938 = vmul.f32 %v595, %v595
        %v939 = vmul.f32 %v596, %v596
        %v940 = vmul.f32 %v597, %v597
        %v941 = vmul.f32 %v598, %v598
        %v942 = vmul.f32 %v599, %v599
        %v943 = vmul.f32 %v600, %v600
        %v944 = vmul.f32 %v601, %v601
        %v945 = vmul.f32 %v602, %v602
        %v946 = vmul.f32 %v603, %v603
        %v947 = vmul.f32 %v604, %v604
        %v948 = vmul.f32 %v605, %v605
        %v949 = vmul.f32 %v606, %v606
        %v950 = vmul.f32 %v607, %v607
        %v951 = vmul.f32 %v608, %v608
        %v952 = vmul.f32 %v609, %v609
        %v953 = vmul.f32 %v610, %v610
        %v954 = vmul.f32 %v611, %v611
        %v955 = vmul.f32 %v612, %v612
        %v956 = vmul.f32 %v613, %v613
        %v957 = vmul.f32 %v614, %v614
        %v958 = vmul.f32 %v615, %v615
        %v959 = vmul.f32 %v616, %v616
        %v960 = vmul.f32 %v617, %v617
        %v961 = vmul.f32 %v618, %v618
        %v962 = vmul.f32 %v619, %v619
        %v963 = vmul.f32 %v620, %v620
        %v964 = vmul.f32 %v621, %v621
        %v965 = vmul.f32 %v622, %v622
        %v966 = vmul.f32 %v623, %v623
        %v967 = vmul.f32 %v624, %v624
        %v968 = vmul.f32 %v625, %v625
        %v969 = vmul.f32 %v626, %v626
        %v970 = vmul.f32 %v627, %v627
        %v971 = vmul.f32 %v628, %v628
        %v972 = vmul.f32 %v629, %v629
        %v973 = vmul.f32 %v630, %v630
        %v974 = vmul.f32 %v631, %v631
        %v975 = vmul.f32 %v632, %v632
        %v976 = vmul.f32 %v633, %v633
        %v977 = vmul.f32 %v634, %v634
        %v978 = vmul.f32 %v635, %v635
        %v979 = vmul.f32 %v636, %v636
        %v980 = vmul.f32 %v637, %v637
        %v981 = vmul.f32 %v638, %v638
        %v982 = vmul.f32 %v639, %v639
        %v983 = vmul.f32 %v640, %v640
        %v984 = vmul.f32 %v641, %v641
        %v985 = vmul.f32 %v642, %v642
        %v986 = vmul.f32 %v643, %v643
        %v987 = vmul.f32 %v644, %v644
        %v988 = vmul.f32 %v645, %v645
        %v989 = vmul.f32 %v646, %v646
        %v990 = vmul.f32 %v647, %v647
        %v991 = vmul.f32 %v648, %v648
        %v992 = vmul.f32 %v649, %v649
        %v993 = vmul.f32 %v650, %v650
        %v994 = vmul.f32 %v651, %v651
        %v995 = vmul.f32 %v652, %v652
        %v996 = vmul.f32 %v653, %v653
        %v997 = vmul.f32 %v654, %v654
        %v998 = vmul.f32 %v655, %v655
        %v999 = vmul.f32 %v656, %v656
        %v1000 = vmul.f32 %v657, %v657
        %v1001 = vmul.f32 %v658, %v658
        %v1002 = vmul.f32 %v659, %v659
        %v1003 = vmul.f32 %v660, %v660
        %v1004 = vmul.f32 %v661, %v661
        %v1005 = vmul.f32 %v662, %v662
        %v1006 = vmul.f32 %v663, %v663
        %v1007 = vmul.f32 %v664, %v664
        %v1008 = vmul.f32 %v665, %v665
        %v1009 = vmul.f32 %v666, %v666
        %v1010 = vmul.f32 %v667, %v667
        %v1011 = vmul.f32 %v668, %v668
        %v1012 = vmul.f32 %v669, %v669
        %v1013 = vmul.f32 %v670, %v670
        %v1014 = vmul.f32 %v671, %v671
        %v1015 = vmul.f32 %v672, %v672
        %v1016 = vmul.f32 %v673, %v673
        %v1017 = vmul.f32 %v674, %v674
        %v1018 = vmul.f32 %v675, %v675
        %v1019 = vmul.f32 %v676, %v676
        %v1020 = vmul.f32 %v677, %v677
        %v1021 = vmul.f32 %v678, %v678
        %v1022 = vmul.f32 %v679, %v679
        %v1023 = vmul.f32 %v680, %v680
        %v1024 = vmul.f32 %v681, %v681
        %v1025 = vmul.f32 %v682, %v682
        %v1026 = vmul.f32 %v683, %v683
        %v1027 = vmul.f32 %v684, %v684
        %v1028 = vmul.f32 %v685, %v685
        %v1029 = vmul.f32 %v686, %v686
        %v1030 = vmul.f32 %v687, %v687
        %v1031 = vmul.f32 %v688, %v688
        %v1032 = vmul.f32 %v689, %v689
        %v1033 = vmul.f32 %v690, %v690
        %v1034 = vmul.f32 %v691, %v691
        %v1035 = vmul.f32 %v692, %v692
        %v1036 = vmul.f32 %v693, %v693
        %v1037 = vmul.f32 %v694, %v694
        %v1038 = vmul.f32 %v695, %v695
        %v1039 = vmul.f32 %v696, %v696
        %v1040 = vmul.f32 %v697, %v697
        %v1041 = vmul.f32 %v698, %v698
        %v1042 = vmul.f32 %v699, %v699
        %v1043 = vmul.f32 %v700, %v700
        %v1044 = vmul.f32 %v701, %v701
        %v1045 = vmul.f32 %v702, %v702
        %v1046 = vmul.f32 %v703, %v703
        %v1047 = vmul.f32 %v704, %v704
        %v1048 = vmul.f32 %v705, %v705
        %v1049 = vmul.f32 %v706, %v706
        %v1050 = vmul.f32 %v707, %v707
        %v1051 = vmul.f32 %v708, %v708
        %v1052 = vmul.f32 %v709, %v709
        %v1053 = vmul.f32 %v710, %v710
        %v1054 = vmul.f32 %v711, %v711
        %v1055 = vmul.f32 %v712, %v712
        %v1056 = vmul.f32 %v713, %v713
        %v1057 = vmul.f32 %v714, %v714
        %v1058 = vmul.f32 %v715, %v715
        %v1059 = vmul.f32 %v716, %v716
        %v1060 = vmul.f32 %v717, %v717
        %v1061 = vmul.f32 %v718, %v718
        %v1062 = vmul.f32 %v719, %v719
        %v1063 = vmul.f32 %v720, %v720
        %v1064 = vmul.f32 %v721, %v721
        %v1065 = vmul.f32 %v722, %v722
        %v1066 = vmul.f32 %v723, %v723
        %v1067 = vmul.f32 %v724, %v724
        %v1068 = vmul.f32 %v725, %v725
        %v1069 = vmul.f32 %v726, %v726
        %v1070 = vmul.f32 %v727, %v727
        %v1071 = vadd.f32 %v927, %v928
        %v1072 = vadd.f32 %v1071, %v929
        %v1073 = vadd.f32 %v1072, %v930
        %v1074 = vadd.f32 %v1073, %v931
        %v1075 = vadd.f32 %v1074, %v932
        %1076 = vadd.xlane.f32.xlu0 %v1075
        %v1077 = vpop.xlane.xlu0 %1076
        %v1078 = vadd.f32 %v933, %v934
        %v1079 = vadd.f32 %v1078, %v935
        %v1080 = vadd.f32 %v1079, %v936
        %v1081 = vadd.f32 %v1080, %v937
        %v1082 = vadd.f32 %v1081, %v938
        %1083 = vadd.xlane.f32.xlu0 %v1082
        %v1084 = vpop.xlane.xlu0 %1083
        %v1085 = vadd.f32 %v939, %v940
        %v1086 = vadd.f32 %v1085, %v941
        %v1087 = vadd.f32 %v1086, %v942
        %v1088 = vadd.f32 %v1087, %v943
        %v1089 = vadd.f32 %v1088, %v944
        %1090 = vadd.xlane.f32.xlu0 %v1089
        %v1091 = vpop.xlane.xlu0 %1090
        %v1092 = vadd.f32 %v945, %v946
        %v1093 = vadd.f32 %v1092, %v947
        %v1094 = vadd.f32 %v1093, %v948
        %v1095 = vadd.f32 %v1094, %v949
        %v1096 = vadd.f32 %v1095, %v950
        %1097 = vadd.xlane.f32.xlu0 %v1096
        %v1098 = vpop.xlane.xlu0 %1097
        %v1099 = vadd.f32 %v951, %v952
        %v1100 = vadd.f32 %v1099, %v953
        %v1101 = vadd.f32 %v1100, %v954
        %v1102 = vadd.f32 %v1101, %v955
        %v1103 = vadd.f32 %v1102, %v956
        %1104 = vadd.xlane.f32.xlu0 %v1103
        %v1105 = vpop.xlane.xlu0 %1104
        %v1106 = vadd.f32 %v957, %v958
        %v1107 = vadd.f32 %v1106, %v959
        %v1108 = vadd.f32 %v1107, %v960
        %v1109 = vadd.f32 %v1108, %v961
        %v1110 = vadd.f32 %v1109, %v962
        %1111 = vadd.xlane.f32.xlu0 %v1110
        %v1112 = vpop.xlane.xlu0 %1111
        %v1113 = vadd.f32 %v963, %v964
        %v1114 = vadd.f32 %v1113, %v965
        %v1115 = vadd.f32 %v1114, %v966
        %v1116 = vadd.f32 %v1115, %v967
        %v1117 = vadd.f32 %v1116, %v968
        %1118 = vadd.xlane.f32.xlu0 %v1117
        %v1119 = vpop.xlane.xlu0 %1118
        %v1120 = vadd.f32 %v969, %v970
        %v1121 = vadd.f32 %v1120, %v971
        %v1122 = vadd.f32 %v1121, %v972
        %v1123 = vadd.f32 %v1122, %v973
        %v1124 = vadd.f32 %v1123, %v974
        %1125 = vadd.xlane.f32.xlu0 %v1124
        %v1126 = vpop.xlane.xlu0 %1125
        %v1127 = vadd.f32 %v975, %v976
        %v1128 = vadd.f32 %v1127, %v977
        %v1129 = vadd.f32 %v1128, %v978
        %v1130 = vadd.f32 %v1129, %v979
        %v1131 = vadd.f32 %v1130, %v980
        %1132 = vadd.xlane.f32.xlu0 %v1131
        %v1133 = vpop.xlane.xlu0 %1132
        %v1134 = vadd.f32 %v981, %v982
        %v1135 = vadd.f32 %v1134, %v983
        %v1136 = vadd.f32 %v1135, %v984
        %v1137 = vadd.f32 %v1136, %v985
        %v1138 = vadd.f32 %v1137, %v986
        %1139 = vadd.xlane.f32.xlu0 %v1138
        %v1140 = vpop.xlane.xlu0 %1139
        %v1141 = vadd.f32 %v987, %v988
        %v1142 = vadd.f32 %v1141, %v989
        %v1143 = vadd.f32 %v1142, %v990
        %v1144 = vadd.f32 %v1143, %v991
        %v1145 = vadd.f32 %v1144, %v992
        %1146 = vadd.xlane.f32.xlu0 %v1145
        %v1147 = vpop.xlane.xlu0 %1146
        %v1148 = vadd.f32 %v993, %v994
        %v1149 = vadd.f32 %v1148, %v995
        %v1150 = vadd.f32 %v1149, %v996
        %v1151 = vadd.f32 %v1150, %v997
        %v1152 = vadd.f32 %v1151, %v998
        %1153 = vadd.xlane.f32.xlu0 %v1152
        %v1154 = vpop.xlane.xlu0 %1153
        %v1155 = vadd.f32 %v999, %v1000
        %v1156 = vadd.f32 %v1155, %v1001
        %v1157 = vadd.f32 %v1156, %v1002
        %v1158 = vadd.f32 %v1157, %v1003
        %v1159 = vadd.f32 %v1158, %v1004
        %1160 = vadd.xlane.f32.xlu0 %v1159
        %v1161 = vpop.xlane.xlu0 %1160
        %v1162 = vadd.f32 %v1005, %v1006
        %v1163 = vadd.f32 %v1162, %v1007
        %v1164 = vadd.f32 %v1163, %v1008
        %v1165 = vadd.f32 %v1164, %v1009
        %v1166 = vadd.f32 %v1165, %v1010
        %1167 = vadd.xlane.f32.xlu0 %v1166
        %v1168 = vpop.xlane.xlu0 %1167
        %v1169 = vadd.f32 %v1011, %v1012
        %v1170 = vadd.f32 %v1169, %v1013
        %v1171 = vadd.f32 %v1170, %v1014
        %v1172 = vadd.f32 %v1171, %v1015
        %v1173 = vadd.f32 %v1172, %v1016
        %1174 = vadd.xlane.f32.xlu0 %v1173
        %v1175 = vpop.xlane.xlu0 %1174
        %v1176 = vadd.f32 %v1017, %v1018
        %v1177 = vadd.f32 %v1176, %v1019
        %v1178 = vadd.f32 %v1177, %v1020
        %v1179 = vadd.f32 %v1178, %v1021
        %v1180 = vadd.f32 %v1179, %v1022
        %1181 = vadd.xlane.f32.xlu0 %v1180
        %v1182 = vpop.xlane.xlu0 %1181
        %v1183 = vadd.f32 %v1023, %v1024
        %v1184 = vadd.f32 %v1183, %v1025
        %v1185 = vadd.f32 %v1184, %v1026
        %v1186 = vadd.f32 %v1185, %v1027
        %v1187 = vadd.f32 %v1186, %v1028
        %1188 = vadd.xlane.f32.xlu0 %v1187
        %v1189 = vpop.xlane.xlu0 %1188
        %v1190 = vadd.f32 %v1029, %v1030
        %v1191 = vadd.f32 %v1190, %v1031
        %v1192 = vadd.f32 %v1191, %v1032
        %v1193 = vadd.f32 %v1192, %v1033
        %v1194 = vadd.f32 %v1193, %v1034
        %1195 = vadd.xlane.f32.xlu0 %v1194
        %v1196 = vpop.xlane.xlu0 %1195
        %v1197 = vadd.f32 %v1035, %v1036
        %v1198 = vadd.f32 %v1197, %v1037
        %v1199 = vadd.f32 %v1198, %v1038
        %v1200 = vadd.f32 %v1199, %v1039
        %v1201 = vadd.f32 %v1200, %v1040
        %1202 = vadd.xlane.f32.xlu0 %v1201
        %v1203 = vpop.xlane.xlu0 %1202
        %v1204 = vadd.f32 %v1041, %v1042
        %v1205 = vadd.f32 %v1204, %v1043
        %v1206 = vadd.f32 %v1205, %v1044
        %v1207 = vadd.f32 %v1206, %v1045
        %v1208 = vadd.f32 %v1207, %v1046
        %1209 = vadd.xlane.f32.xlu0 %v1208
        %v1210 = vpop.xlane.xlu0 %1209
        %v1211 = vadd.f32 %v1047, %v1048
        %v1212 = vadd.f32 %v1211, %v1049
        %v1213 = vadd.f32 %v1212, %v1050
        %v1214 = vadd.f32 %v1213, %v1051
        %v1215 = vadd.f32 %v1214, %v1052
        %1216 = vadd.xlane.f32.xlu0 %v1215
        %v1217 = vpop.xlane.xlu0 %1216
        %v1218 = vadd.f32 %v1053, %v1054
        %v1219 = vadd.f32 %v1218, %v1055
        %v1220 = vadd.f32 %v1219, %v1056
        %v1221 = vadd.f32 %v1220, %v1057
        %v1222 = vadd.f32 %v1221, %v1058
        %1223 = vadd.xlane.f32.xlu0 %v1222
        %v1224 = vpop.xlane.xlu0 %1223
        %v1225 = vadd.f32 %v1059, %v1060
        %v1226 = vadd.f32 %v1225, %v1061
        %v1227 = vadd.f32 %v1226, %v1062
        %v1228 = vadd.f32 %v1227, %v1063
        %v1229 = vadd.f32 %v1228, %v1064
        %1230 = vadd.xlane.f32.xlu0 %v1229
        %v1231 = vpop.xlane.xlu0 %1230
        %v1232 = vadd.f32 %v1065, %v1066
        %v1233 = vadd.f32 %v1232, %v1067
        %v1234 = vadd.f32 %v1233, %v1068
        %v1235 = vadd.f32 %v1234, %v1069
        %v1236 = vadd.f32 %v1235, %v1070
        %1237 = vadd.xlane.f32.xlu0 %v1236
        %v1238 = vpop.xlane.xlu0 %1237
        %v1239 = vmul.f32 %v1077, %v902
        %v1240 = vmul.f32 %v1084, %v902
        %v1241 = vmul.f32 %v1091, %v902
        %v1242 = vmul.f32 %v1098, %v902
        %v1243 = vmul.f32 %v1105, %v902
        %v1244 = vmul.f32 %v1112, %v902
        %v1245 = vmul.f32 %v1119, %v902
        %v1246 = vmul.f32 %v1126, %v902
        %v1247 = vmul.f32 %v1133, %v902
        %v1248 = vmul.f32 %v1140, %v902
        %v1249 = vmul.f32 %v1147, %v902
        %v1250 = vmul.f32 %v1154, %v902
        %v1251 = vmul.f32 %v1161, %v902
        %v1252 = vmul.f32 %v1168, %v902
        %v1253 = vmul.f32 %v1175, %v902
        %v1254 = vmul.f32 %v1182, %v902
        %v1255 = vmul.f32 %v1189, %v902
        %v1256 = vmul.f32 %v1196, %v902
        %v1257 = vmul.f32 %v1203, %v902
        %v1258 = vmul.f32 %v1210, %v902
        %v1259 = vmul.f32 %v1217, %v902
        %v1260 = vmul.f32 %v1224, %v902
        %v1261 = vmul.f32 %v1231, %v902
        %v1262 = vmul.f32 %v1238, %v902
        %v1263 = vmul.f32 %v903, %v903
        %v1264 = vmul.f32 %v904, %v904
        %v1265 = vmul.f32 %v905, %v905
        %v1266 = vmul.f32 %v906, %v906
        %v1267 = vmul.f32 %v907, %v907
        %v1268 = vmul.f32 %v908, %v908
        %v1269 = vmul.f32 %v909, %v909
        %v1270 = vmul.f32 %v910, %v910
        %v1271 = vmul.f32 %v911, %v911
        %v1272 = vmul.f32 %v912, %v912
        %v1273 = vmul.f32 %v913, %v913
        %v1274 = vmul.f32 %v914, %v914
        %v1275 = vmul.f32 %v915, %v915
        %v1276 = vmul.f32 %v916, %v916
        %v1277 = vmul.f32 %v917, %v917
        %v1278 = vmul.f32 %v918, %v918
        %v1279 = vmul.f32 %v919, %v919
        %v1280 = vmul.f32 %v920, %v920
        %v1281 = vmul.f32 %v921, %v921
        %v1282 = vmul.f32 %v922, %v922
        %v1283 = vmul.f32 %v923, %v923
        %v1284 = vmul.f32 %v924, %v924
        %v1285 = vmul.f32 %v925, %v925
        %v1286 = vmul.f32 %v926, %v926
        %v1287 = vsub.f32 %v1239, %v1263
        %v1288 = vsub.f32 %v1240, %v1264
        %v1289 = vsub.f32 %v1241, %v1265
        %v1290 = vsub.f32 %v1242, %v1266
        %v1291 = vsub.f32 %v1243, %v1267
        %v1292 = vsub.f32 %v1244, %v1268
        %v1293 = vsub.f32 %v1245, %v1269
        %v1294 = vsub.f32 %v1246, %v1270
        %v1295 = vsub.f32 %v1247, %v1271
        %v1296 = vsub.f32 %v1248, %v1272
        %v1297 = vsub.f32 %v1249, %v1273
        %v1298 = vsub.f32 %v1250, %v1274
        %v1299 = vsub.f32 %v1251, %v1275
        %v1300 = vsub.f32 %v1252, %v1276
        %v1301 = vsub.f32 %v1253, %v1277
        %v1302 = vsub.f32 %v1254, %v1278
        %v1303 = vsub.f32 %v1255, %v1279
        %v1304 = vsub.f32 %v1256, %v1280
        %v1305 = vsub.f32 %v1257, %v1281
        %v1306 = vsub.f32 %v1258, %v1282
        %v1307 = vsub.f32 %v1259, %v1283
        %v1308 = vsub.f32 %v1260, %v1284
        %v1309 = vsub.f32 %v1261, %v1285
        %v1310 = vsub.f32 %v1262, %v1286
        %v1311 = vadd.f32 %v1287, 1e-12
        %v1312 = vadd.f32 %v1288, 1e-12
        %v1313 = vadd.f32 %v1289, 1e-12
        %v1314 = vadd.f32 %v1290, 1e-12
        %v1315 = vadd.f32 %v1291, 1e-12
        %v1316 = vadd.f32 %v1292, 1e-12
        %v1317 = vadd.f32 %v1293, 1e-12
        %v1318 = vadd.f32 %v1294, 1e-12
        %v1319 = vadd.f32 %v1295, 1e-12
        %v1320 = vadd.f32 %v1296, 1e-12
        %v1321 = vadd.f32 %v1297, 1e-12
        %v1322 = vadd.f32 %v1298, 1e-12
        %v1323 = vadd.f32 %v1299, 1e-12
        %v1324 = vadd.f32 %v1300, 1e-12
        %v1325 = vadd.f32 %v1301, 1e-12
        %v1326 = vadd.f32 %v1302, 1e-12
        %v1327 = vadd.f32 %v1303, 1e-12
        %v1328 = vadd.f32 %v1304, 1e-12
        %v1329 = vadd.f32 %v1305, 1e-12
        %v1330 = vadd.f32 %v1306, 1e-12
        %v1331 = vadd.f32 %v1307, 1e-12
        %v1332 = vadd.f32 %v1308, 1e-12
        %v1333 = vadd.f32 %v1309, 1e-12
        %v1334 = vadd.f32 %v1310, 1e-12
        %v1335 = vrsqrt.pop %v1311
        %v1336 = vmul.f32 %v1335, %v1311
        %v1337 = vmul.f32 %v1336, %v1335
        %v1338 = vmul.f32 0.5, %v1337
        %v1339 = vsub.f32 1.5, %v1338
        %v1340 = vmul.f32 %v1335, %v1339
        %vm1341 = vweird.f32 %v1311
        %vm1342 = vweird.f32 %v1335
        %vm1343 = vmor %vm1341, %vm1342
        %v1344 = vsel %vm1343, %v1335, %v1340
        %v1345 = vrsqrt.pop %v1312
        %v1346 = vmul.f32 %v1345, %v1312
        %v1347 = vmul.f32 %v1346, %v1345
        %v1348 = vmul.f32 0.5, %v1347
        %v1349 = vsub.f32 1.5, %v1348
        %v1350 = vmul.f32 %v1345, %v1349
        %vm1351 = vweird.f32 %v1312
        %vm1352 = vweird.f32 %v1345
        %vm1353 = vmor %vm1351, %vm1352
        %v1354 = vsel %vm1353, %v1345, %v1350
        %v1355 = vrsqrt.pop %v1313
        %v1356 = vmul.f32 %v1355, %v1313
        %v1357 = vmul.f32 %v1356, %v1355
        %v1358 = vmul.f32 0.5, %v1357
        %v1359 = vsub.f32 1.5, %v1358
        %v1360 = vmul.f32 %v1355, %v1359
        %vm1361 = vweird.f32 %v1313
        %vm1362 = vweird.f32 %v1355
        %vm1363 = vmor %vm1361, %vm1362
        %v1364 = vsel %vm1363, %v1355, %v1360
        %v1365 = vrsqrt.pop %v1314
        %v1366 = vmul.f32 %v1365, %v1314
        %v1367 = vmul.f32 %v1366, %v1365
        %v1368 = vmul.f32 0.5, %v1367
        %v1369 = vsub.f32 1.5, %v1368
        %v1370 = vmul.f32 %v1365, %v1369
        %vm1371 = vweird.f32 %v1314
        %vm1372 = vweird.f32 %v1365
        %vm1373 = vmor %vm1371, %vm1372
        %v1374 = vsel %vm1373, %v1365, %v1370
        %v1375 = vrsqrt.pop %v1315
        %v1376 = vmul.f32 %v1375, %v1315
        %v1377 = vmul.f32 %v1376, %v1375
        %v1378 = vmul.f32 0.5, %v1377
        %v1379 = vsub.f32 1.5, %v1378
        %v1380 = vmul.f32 %v1375, %v1379
        %vm1381 = vweird.f32 %v1315
        %vm1382 = vweird.f32 %v1375
        %vm1383 = vmor %vm1381, %vm1382
        %v1384 = vsel %vm1383, %v1375, %v1380
        %v1385 = vrsqrt.pop %v1316
        %v1386 = vmul.f32 %v1385, %v1316
        %v1387 = vmul.f32 %v1386, %v1385
        %v1388 = vmul.f32 0.5, %v1387
        %v1389 = vsub.f32 1.5, %v1388
        %v1390 = vmul.f32 %v1385, %v1389
        %vm1391 = vweird.f32 %v1316
        %vm1392 = vweird.f32 %v1385
        %vm1393 = vmor %vm1391, %vm1392
        %v1394 = vsel %vm1393, %v1385, %v1390
        %v1395 = vrsqrt.pop %v1317
        %v1396 = vmul.f32 %v1395, %v1317
        %v1397 = vmul.f32 %v1396, %v1395
        %v1398 = vmul.f32 0.5, %v1397
        %v1399 = vsub.f32 1.5, %v1398
        %v1400 = vmul.f32 %v1395, %v1399
        %vm1401 = vweird.f32 %v1317
        %vm1402 = vweird.f32 %v1395
        %vm1403 = vmor %vm1401, %vm1402
        %v1404 = vsel %vm1403, %v1395, %v1400
        %v1405 = vrsqrt.pop %v1318
        %v1406 = vmul.f32 %v1405, %v1318
        %v1407 = vmul.f32 %v1406, %v1405
        %v1408 = vmul.f32 0.5, %v1407
        %v1409 = vsub.f32 1.5, %v1408
        %v1410 = vmul.f32 %v1405, %v1409
        %vm1411 = vweird.f32 %v1318
        %vm1412 = vweird.f32 %v1405
        %vm1413 = vmor %vm1411, %vm1412
        %v1414 = vsel %vm1413, %v1405, %v1410
        %v1415 = vrsqrt.pop %v1319
        %v1416 = vmul.f32 %v1415, %v1319
        %v1417 = vmul.f32 %v1416, %v1415
        %v1418 = vmul.f32 0.5, %v1417
        %v1419 = vsub.f32 1.5, %v1418
        %v1420 = vmul.f32 %v1415, %v1419
        %vm1421 = vweird.f32 %v1319
        %vm1422 = vweird.f32 %v1415
        %vm1423 = vmor %vm1421, %vm1422
        %v1424 = vsel %vm1423, %v1415, %v1420
        %v1425 = vrsqrt.pop %v1320
        %v1426 = vmul.f32 %v1425, %v1320
        %v1427 = vmul.f32 %v1426, %v1425
        %v1428 = vmul.f32 0.5, %v1427
        %v1429 = vsub.f32 1.5, %v1428
        %v1430 = vmul.f32 %v1425, %v1429
        %vm1431 = vweird.f32 %v1320
        %vm1432 = vweird.f32 %v1425
        %vm1433 = vmor %vm1431, %vm1432
        %v1434 = vsel %vm1433, %v1425, %v1430
        %v1435 = vrsqrt.pop %v1321
        %v1436 = vmul.f32 %v1435, %v1321
        %v1437 = vmul.f32 %v1436, %v1435
        %v1438 = vmul.f32 0.5, %v1437
        %v1439 = vsub.f32 1.5, %v1438
        %v1440 = vmul.f32 %v1435, %v1439
        %vm1441 = vweird.f32 %v1321
        %vm1442 = vweird.f32 %v1435
        %vm1443 = vmor %vm1441, %vm1442
        %v1444 = vsel %vm1443, %v1435, %v1440
        %v1445 = vrsqrt.pop %v1322
        %v1446 = vmul.f32 %v1445, %v1322
        %v1447 = vmul.f32 %v1446, %v1445
        %v1448 = vmul.f32 0.5, %v1447
        %v1449 = vsub.f32 1.5, %v1448
        %v1450 = vmul.f32 %v1445, %v1449
        %vm1451 = vweird.f32 %v1322
        %vm1452 = vweird.f32 %v1445
        %vm1453 = vmor %vm1451, %vm1452
        %v1454 = vsel %vm1453, %v1445, %v1450
        %v1455 = vrsqrt.pop %v1323
        %v1456 = vmul.f32 %v1455, %v1323
        %v1457 = vmul.f32 %v1456, %v1455
        %v1458 = vmul.f32 0.5, %v1457
        %v1459 = vsub.f32 1.5, %v1458
        %v1460 = vmul.f32 %v1455, %v1459
        %vm1461 = vweird.f32 %v1323
        %vm1462 = vweird.f32 %v1455
        %vm1463 = vmor %vm1461, %vm1462
        %v1464 = vsel %vm1463, %v1455, %v1460
        %v1465 = vrsqrt.pop %v1324
        %v1466 = vmul.f32 %v1465, %v1324
        %v1467 = vmul.f32 %v1466, %v1465
        %v1468 = vmul.f32 0.5, %v1467
        %v1469 = vsub.f32 1.5, %v1468
        %v1470 = vmul.f32 %v1465, %v1469
        %vm1471 = vweird.f32 %v1324
        %vm1472 = vweird.f32 %v1465
        %vm1473 = vmor %vm1471, %vm1472
        %v1474 = vsel %vm1473, %v1465, %v1470
        %v1475 = vrsqrt.pop %v1325
        %v1476 = vmul.f32 %v1475, %v1325
        %v1477 = vmul.f32 %v1476, %v1475
        %v1478 = vmul.f32 0.5, %v1477
        %v1479 = vsub.f32 1.5, %v1478
        %v1480 = vmul.f32 %v1475, %v1479
        %vm1481 = vweird.f32 %v1325
        %vm1482 = vweird.f32 %v1475
        %vm1483 = vmor %vm1481, %vm1482
        %v1484 = vsel %vm1483, %v1475, %v1480
        %v1485 = vrsqrt.pop %v1326
        %v1486 = vmul.f32 %v1485, %v1326
        %v1487 = vmul.f32 %v1486, %v1485
        %v1488 = vmul.f32 0.5, %v1487
        %v1489 = vsub.f32 1.5, %v1488
        %v1490 = vmul.f32 %v1485, %v1489
        %vm1491 = vweird.f32 %v1326
        %vm1492 = vweird.f32 %v1485
        %vm1493 = vmor %vm1491, %vm1492
        %v1494 = vsel %vm1493, %v1485, %v1490
        %v1495 = vrsqrt.pop %v1327
        %v1496 = vmul.f32 %v1495, %v1327
        %v1497 = vmul.f32 %v1496, %v1495
        %v1498 = vmul.f32 0.5, %v1497
        %v1499 = vsub.f32 1.5, %v1498
        %v1500 = vmul.f32 %v1495, %v1499
        %vm1501 = vweird.f32 %v1327
        %vm1502 = vweird.f32 %v1495
        %vm1503 = vmor %vm1501, %vm1502
        %v1504 = vsel %vm1503, %v1495, %v1500
        %v1505 = vrsqrt.pop %v1328
        %v1506 = vmul.f32 %v1505, %v1328
        %v1507 = vmul.f32 %v1506, %v1505
        %v1508 = vmul.f32 0.5, %v1507
        %v1509 = vsub.f32 1.5, %v1508
        %v1510 = vmul.f32 %v1505, %v1509
        %vm1511 = vweird.f32 %v1328
        %vm1512 = vweird.f32 %v1505
        %vm1513 = vmor %vm1511, %vm1512
        %v1514 = vsel %vm1513, %v1505, %v1510
        %v1515 = vrsqrt.pop %v1329
        %v1516 = vmul.f32 %v1515, %v1329
        %v1517 = vmul.f32 %v1516, %v1515
        %v1518 = vmul.f32 0.5, %v1517
        %v1519 = vsub.f32 1.5, %v1518
        %v1520 = vmul.f32 %v1515, %v1519
        %vm1521 = vweird.f32 %v1329
        %vm1522 = vweird.f32 %v1515
        %vm1523 = vmor %vm1521, %vm1522
        %v1524 = vsel %vm1523, %v1515, %v1520
        %v1525 = vrsqrt.pop %v1330
        %v1526 = vmul.f32 %v1525, %v1330
        %v1527 = vmul.f32 %v1526, %v1525
        %v1528 = vmul.f32 0.5, %v1527
        %v1529 = vsub.f32 1.5, %v1528
        %v1530 = vmul.f32 %v1525, %v1529
        %vm1531 = vweird.f32 %v1330
        %vm1532 = vweird.f32 %v1525
        %vm1533 = vmor %vm1531, %vm1532
        %v1534 = vsel %vm1533, %v1525, %v1530
        %v1535 = vrsqrt.pop %v1331
        %v1536 = vmul.f32 %v1535, %v1331
        %v1537 = vmul.f32 %v1536, %v1535
        %v1538 = vmul.f32 0.5, %v1537
        %v1539 = vsub.f32 1.5, %v1538
        %v1540 = vmul.f32 %v1535, %v1539
        %vm1541 = vweird.f32 %v1331
        %vm1542 = vweird.f32 %v1535
        %vm1543 = vmor %vm1541, %vm1542
        %v1544 = vsel %vm1543, %v1535, %v1540
        %v1545 = vrsqrt.pop %v1332
        %v1546 = vmul.f32 %v1545, %v1332
        %v1547 = vmul.f32 %v1546, %v1545
        %v1548 = vmul.f32 0.5, %v1547
        %v1549 = vsub.f32 1.5, %v1548
        %v1550 = vmul.f32 %v1545, %v1549
        %vm1551 = vweird.f32 %v1332
        %vm1552 = vweird.f32 %v1545
        %vm1553 = vmor %vm1551, %vm1552
        %v1554 = vsel %vm1553, %v1545, %v1550
        %v1555 = vrsqrt.pop %v1333
        %v1556 = vmul.f32 %v1555, %v1333
        %v1557 = vmul.f32 %v1556, %v1555
        %v1558 = vmul.f32 0.5, %v1557
        %v1559 = vsub.f32 1.5, %v1558
        %v1560 = vmul.f32 %v1555, %v1559
        %vm1561 = vweird.f32 %v1333
        %vm1562 = vweird.f32 %v1555
        %vm1563 = vmor %vm1561, %vm1562
        %v1564 = vsel %vm1563, %v1555, %v1560
        %v1565 = vrsqrt.pop %v1334
        %v1566 = vmul.f32 %v1565, %v1334
        %v1567 = vmul.f32 %v1566, %v1565
        %v1568 = vmul.f32 0.5, %v1567
        %v1569 = vsub.f32 1.5, %v1568
        %v1570 = vmul.f32 %v1565, %v1569
        %vm1571 = vweird.f32 %v1334
        %vm1572 = vweird.f32 %v1565
        %vm1573 = vmor %vm1571, %vm1572
        %v1574 = vsel %vm1573, %v1565, %v1570
        %v1575 = vmul.f32 %v584, %v1344
        %v1576 = vmul.f32 %v585, %v1344
        %v1577 = vmul.f32 %v586, %v1344
        %v1578 = vmul.f32 %v587, %v1344
        %v1579 = vmul.f32 %v588, %v1344
        %v1580 = vmul.f32 %v589, %v1344
        %v1581 = vmul.f32 %v590, %v1354
        %v1582 = vmul.f32 %v591, %v1354
        %v1583 = vmul.f32 %v592, %v1354
        %v1584 = vmul.f32 %v593, %v1354
        %v1585 = vmul.f32 %v594, %v1354
        %v1586 = vmul.f32 %v595, %v1354
        %v1587 = vmul.f32 %v596, %v1364
        %v1588 = vmul.f32 %v597, %v1364
        %v1589 = vmul.f32 %v598, %v1364
        %v1590 = vmul.f32 %v599, %v1364
        %v1591 = vmul.f32 %v600, %v1364
        %v1592 = vmul.f32 %v601, %v1364
        %v1593 = vmul.f32 %v602, %v1374
        %v1594 = vmul.f32 %v603, %v1374
        %v1595 = vmul.f32 %v604, %v1374
        %v1596 = vmul.f32 %v605, %v1374
        %v1597 = vmul.f32 %v606, %v1374
        %v1598 = vmul.f32 %v607, %v1374
        %v1599 = vmul.f32 %v608, %v1384
        %v1600 = vmul.f32 %v609, %v1384
        %v1601 = vmul.f32 %v610, %v1384
        %v1602 = vmul.f32 %v611, %v1384
        %v1603 = vmul.f32 %v612, %v1384
        %v1604 = vmul.f32 %v613, %v1384
        %v1605 = vmul.f32 %v614, %v1394
        %v1606 = vmul.f32 %v615, %v1394
        %v1607 = vmul.f32 %v616, %v1394
        %v1608 = vmul.f32 %v617, %v1394
        %v1609 = vmul.f32 %v618, %v1394
        %v1610 = vmul.f32 %v619, %v1394
        %v1611 = vmul.f32 %v620, %v1404
        %v1612 = vmul.f32 %v621, %v1404
        %v1613 = vmul.f32 %v622, %v1404
        %v1614 = vmul.f32 %v623, %v1404
        %v1615 = vmul.f32 %v624, %v1404
        %v1616 = vmul.f32 %v625, %v1404
        %v1617 = vmul.f32 %v626, %v1414
        %v1618 = vmul.f32 %v627, %v1414
        %v1619 = vmul.f32 %v628, %v1414
        %v1620 = vmul.f32 %v629, %v1414
        %v1621 = vmul.f32 %v630, %v1414
        %v1622 = vmul.f32 %v631, %v1414
        %v1623 = vmul.f32 %v632, %v1424
        %v1624 = vmul.f32 %v633, %v1424
        %v1625 = vmul.f32 %v634, %v1424
        %v1626 = vmul.f32 %v635, %v1424
        %v1627 = vmul.f32 %v636, %v1424
        %v1628 = vmul.f32 %v637, %v1424
        %v1629 = vmul.f32 %v638, %v1434
        %v1630 = vmul.f32 %v639, %v1434
        %v1631 = vmul.f32 %v640, %v1434
        %v1632 = vmul.f32 %v641, %v1434
        %v1633 = vmul.f32 %v642, %v1434
        %v1634 = vmul.f32 %v643, %v1434
        %v1635 = vmul.f32 %v644, %v1444
        %v1636 = vmul.f32 %v645, %v1444
        %v1637 = vmul.f32 %v646, %v1444
        %v1638 = vmul.f32 %v647, %v1444
        %v1639 = vmul.f32 %v648, %v1444
        %v1640 = vmul.f32 %v649, %v1444
        %v1641 = vmul.f32 %v650, %v1454
        %v1642 = vmul.f32 %v651, %v1454
        %v1643 = vmul.f32 %v652, %v1454
        %v1644 = vmul.f32 %v653, %v1454
        %v1645 = vmul.f32 %v654, %v1454
        %v1646 = vmul.f32 %v655, %v1454
        %v1647 = vmul.f32 %v656, %v1464
        %v1648 = vmul.f32 %v657, %v1464
        %v1649 = vmul.f32 %v658, %v1464
        %v1650 = vmul.f32 %v659, %v1464
        %v1651 = vmul.f32 %v660, %v1464
        %v1652 = vmul.f32 %v661, %v1464
        %v1653 = vmul.f32 %v662, %v1474
        %v1654 = vmul.f32 %v663, %v1474
        %v1655 = vmul.f32 %v664, %v1474
        %v1656 = vmul.f32 %v665, %v1474
        %v1657 = vmul.f32 %v666, %v1474
        %v1658 = vmul.f32 %v667, %v1474
        %v1659 = vmul.f32 %v668, %v1484
        %v1660 = vmul.f32 %v669, %v1484
        %v1661 = vmul.f32 %v670, %v1484
        %v1662 = vmul.f32 %v671, %v1484
        %v1663 = vmul.f32 %v672, %v1484
        %v1664 = vmul.f32 %v673, %v1484
        %v1665 = vmul.f32 %v674, %v1494
        %v1666 = vmul.f32 %v675, %v1494
        %v1667 = vmul.f32 %v676, %v1494
        %v1668 = vmul.f32 %v677, %v1494
        %v1669 = vmul.f32 %v678, %v1494
        %v1670 = vmul.f32 %v679, %v1494
        %v1671 = vmul.f32 %v680, %v1504
        %v1672 = vmul.f32 %v681, %v1504
        %v1673 = vmul.f32 %v682, %v1504
        %v1674 = vmul.f32 %v683, %v1504
        %v1675 = vmul.f32 %v684, %v1504
        %v1676 = vmul.f32 %v685, %v1504
        %v1677 = vmul.f32 %v686, %v1514
        %v1678 = vmul.f32 %v687, %v1514
        %v1679 = vmul.f32 %v688, %v1514
        %v1680 = vmul.f32 %v689, %v1514
        %v1681 = vmul.f32 %v690, %v1514
        %v1682 = vmul.f32 %v691, %v1514
        %v1683 = vmul.f32 %v692, %v1524
        %v1684 = vmul.f32 %v693, %v1524
        %v1685 = vmul.f32 %v694, %v1524
        %v1686 = vmul.f32 %v695, %v1524
        %v1687 = vmul.f32 %v696, %v1524
        %v1688 = vmul.f32 %v697, %v1524
        %v1689 = vmul.f32 %v698, %v1534
        %v1690 = vmul.f32 %v699, %v1534
        %v1691 = vmul.f32 %v700, %v1534
        %v1692 = vmul.f32 %v701, %v1534
        %v1693 = vmul.f32 %v702, %v1534
        %v1694 = vmul.f32 %v703, %v1534
        %v1695 = vmul.f32 %v704, %v1544
        %v1696 = vmul.f32 %v705, %v1544
        %v1697 = vmul.f32 %v706, %v1544
        %v1698 = vmul.f32 %v707, %v1544
        %v1699 = vmul.f32 %v708, %v1544
        %v1700 = vmul.f32 %v709, %v1544
        %v1701 = vmul.f32 %v710, %v1554
        %v1702 = vmul.f32 %v711, %v1554
        %v1703 = vmul.f32 %v712, %v1554
        %v1704 = vmul.f32 %v713, %v1554
        %v1705 = vmul.f32 %v714, %v1554
        %v1706 = vmul.f32 %v715, %v1554
        %v1707 = vmul.f32 %v716, %v1564
        %v1708 = vmul.f32 %v717, %v1564
        %v1709 = vmul.f32 %v718, %v1564
        %v1710 = vmul.f32 %v719, %v1564
        %v1711 = vmul.f32 %v720, %v1564
        %v1712 = vmul.f32 %v721, %v1564
        %v1713 = vmul.f32 %v722, %v1574
        %v1714 = vmul.f32 %v723, %v1574
        %v1715 = vmul.f32 %v724, %v1574
        %v1716 = vmul.f32 %v725, %v1574
        %v1717 = vmul.f32 %v726, %v1574
        %v1718 = vmul.f32 %v727, %v1574
        %v1719 = vmul.f32 %v903, %v1344
        %v1720 = vmul.f32 %v904, %v1354
        %v1721 = vmul.f32 %v905, %v1364
        %v1722 = vmul.f32 %v906, %v1374
        %v1723 = vmul.f32 %v907, %v1384
        %v1724 = vmul.f32 %v908, %v1394
        %v1725 = vmul.f32 %v909, %v1404
        %v1726 = vmul.f32 %v910, %v1414
        %v1727 = vmul.f32 %v911, %v1424
        %v1728 = vmul.f32 %v912, %v1434
        %v1729 = vmul.f32 %v913, %v1444
        %v1730 = vmul.f32 %v914, %v1454
        %v1731 = vmul.f32 %v915, %v1464
        %v1732 = vmul.f32 %v916, %v1474
        %v1733 = vmul.f32 %v917, %v1484
        %v1734 = vmul.f32 %v918, %v1494
        %v1735 = vmul.f32 %v919, %v1504
        %v1736 = vmul.f32 %v920, %v1514
        %v1737 = vmul.f32 %v921, %v1524
        %v1738 = vmul.f32 %v922, %v1534
        %v1739 = vmul.f32 %v923, %v1544
        %v1740 = vmul.f32 %v924, %v1554
        %v1741 = vmul.f32 %v925, %v1564
        %v1742 = vmul.f32 %v926, %v1574
        %v1743 = vsub.f32 %v1575, %v1719
        %v1744 = vsub.f32 %v1576, %v1719
        %v1745 = vsub.f32 %v1577, %v1719
        %v1746 = vsub.f32 %v1578, %v1719
        %v1747 = vsub.f32 %v1579, %v1719
        %v1748 = vsub.f32 %v1580, %v1719
        %v1749 = vsub.f32 %v1581, %v1720
        %v1750 = vsub.f32 %v1582, %v1720
        %v1751 = vsub.f32 %v1583, %v1720
        %v1752 = vsub.f32 %v1584, %v1720
        %v1753 = vsub.f32 %v1585, %v1720
        %v1754 = vsub.f32 %v1586, %v1720
        %v1755 = vsub.f32 %v1587, %v1721
        %v1756 = vsub.f32 %v1588, %v1721
        %v1757 = vsub.f32 %v1589, %v1721
        %v1758 = vsub.f32 %v1590, %v1721
        %v1759 = vsub.f32 %v1591, %v1721
        %v1760 = vsub.f32 %v1592, %v1721
        %v1761 = vsub.f32 %v1593, %v1722
        %v1762 = vsub.f32 %v1594, %v1722
        %v1763 = vsub.f32 %v1595, %v1722
        %v1764 = vsub.f32 %v1596, %v1722
        %v1765 = vsub.f32 %v1597, %v1722
        %v1766 = vsub.f32 %v1598, %v1722
        %v1767 = vsub.f32 %v1599, %v1723
        %v1768 = vsub.f32 %v1600, %v1723
        %v1769 = vsub.f32 %v1601, %v1723
        %v1770 = vsub.f32 %v1602, %v1723
        %v1771 = vsub.f32 %v1603, %v1723
        %v1772 = vsub.f32 %v1604, %v1723
        %v1773 = vsub.f32 %v1605, %v1724
        %v1774 = vsub.f32 %v1606, %v1724
        %v1775 = vsub.f32 %v1607, %v1724
        %v1776 = vsub.f32 %v1608, %v1724
        %v1777 = vsub.f32 %v1609, %v1724
        %v1778 = vsub.f32 %v1610, %v1724
        %v1779 = vsub.f32 %v1611, %v1725
        %v1780 = vsub.f32 %v1612, %v1725
        %v1781 = vsub.f32 %v1613, %v1725
        %v1782 = vsub.f32 %v1614, %v1725
        %v1783 = vsub.f32 %v1615, %v1725
        %v1784 = vsub.f32 %v1616, %v1725
        %v1785 = vsub.f32 %v1617, %v1726
        %v1786 = vsub.f32 %v1618, %v1726
        %v1787 = vsub.f32 %v1619, %v1726
        %v1788 = vsub.f32 %v1620, %v1726
        %v1789 = vsub.f32 %v1621, %v1726
        %v1790 = vsub.f32 %v1622, %v1726
        %v1791 = vsub.f32 %v1623, %v1727
        %v1792 = vsub.f32 %v1624, %v1727
        %v1793 = vsub.f32 %v1625, %v1727
        %v1794 = vsub.f32 %v1626, %v1727
        %v1795 = vsub.f32 %v1627, %v1727
        %v1796 = vsub.f32 %v1628, %v1727
        %v1797 = vsub.f32 %v1629, %v1728
        %v1798 = vsub.f32 %v1630, %v1728
        %v1799 = vsub.f32 %v1631, %v1728
        %v1800 = vsub.f32 %v1632, %v1728
        %v1801 = vsub.f32 %v1633, %v1728
        %v1802 = vsub.f32 %v1634, %v1728
        %v1803 = vsub.f32 %v1635, %v1729
        %v1804 = vsub.f32 %v1636, %v1729
        %v1805 = vsub.f32 %v1637, %v1729
        %v1806 = vsub.f32 %v1638, %v1729
        %v1807 = vsub.f32 %v1639, %v1729
        %v1808 = vsub.f32 %v1640, %v1729
        %v1809 = vsub.f32 %v1641, %v1730
        %v1810 = vsub.f32 %v1642, %v1730
        %v1811 = vsub.f32 %v1643, %v1730
        %v1812 = vsub.f32 %v1644, %v1730
        %v1813 = vsub.f32 %v1645, %v1730
        %v1814 = vsub.f32 %v1646, %v1730
        %v1815 = vsub.f32 %v1647, %v1731
        %v1816 = vsub.f32 %v1648, %v1731
        %v1817 = vsub.f32 %v1649, %v1731
        %v1818 = vsub.f32 %v1650, %v1731
        %v1819 = vsub.f32 %v1651, %v1731
        %v1820 = vsub.f32 %v1652, %v1731
        %v1821 = vsub.f32 %v1653, %v1732
        %v1822 = vsub.f32 %v1654, %v1732
        %v1823 = vsub.f32 %v1655, %v1732
        %v1824 = vsub.f32 %v1656, %v1732
        %v1825 = vsub.f32 %v1657, %v1732
        %v1826 = vsub.f32 %v1658, %v1732
        %v1827 = vsub.f32 %v1659, %v1733
        %v1828 = vsub.f32 %v1660, %v1733
        %v1829 = vsub.f32 %v1661, %v1733
        %v1830 = vsub.f32 %v1662, %v1733
        %v1831 = vsub.f32 %v1663, %v1733
        %v1832 = vsub.f32 %v1664, %v1733
        %v1833 = vsub.f32 %v1665, %v1734
        %v1834 = vsub.f32 %v1666, %v1734
        %v1835 = vsub.f32 %v1667, %v1734
        %v1836 = vsub.f32 %v1668, %v1734
        %v1837 = vsub.f32 %v1669, %v1734
        %v1838 = vsub.f32 %v1670, %v1734
        %v1839 = vsub.f32 %v1671, %v1735
        %v1840 = vsub.f32 %v1672, %v1735
        %v1841 = vsub.f32 %v1673, %v1735
        %v1842 = vsub.f32 %v1674, %v1735
        %v1843 = vsub.f32 %v1675, %v1735
        %v1844 = vsub.f32 %v1676, %v1735
        %v1845 = vsub.f32 %v1677, %v1736
        %v1846 = vsub.f32 %v1678, %v1736
        %v1847 = vsub.f32 %v1679, %v1736
        %v1848 = vsub.f32 %v1680, %v1736
        %v1849 = vsub.f32 %v1681, %v1736
        %v1850 = vsub.f32 %v1682, %v1736
        %v1851 = vsub.f32 %v1683, %v1737
        %v1852 = vsub.f32 %v1684, %v1737
        %v1853 = vsub.f32 %v1685, %v1737
        %v1854 = vsub.f32 %v1686, %v1737
        %v1855 = vsub.f32 %v1687, %v1737
        %v1856 = vsub.f32 %v1688, %v1737
        %v1857 = vsub.f32 %v1689, %v1738
        %v1858 = vsub.f32 %v1690, %v1738
        %v1859 = vsub.f32 %v1691, %v1738
        %v1860 = vsub.f32 %v1692, %v1738
        %v1861 = vsub.f32 %v1693, %v1738
        %v1862 = vsub.f32 %v1694, %v1738
        %v1863 = vsub.f32 %v1695, %v1739
        %v1864 = vsub.f32 %v1696, %v1739
        %v1865 = vsub.f32 %v1697, %v1739
        %v1866 = vsub.f32 %v1698, %v1739
        %v1867 = vsub.f32 %v1699, %v1739
        %v1868 = vsub.f32 %v1700, %v1739
        %v1869 = vsub.f32 %v1701, %v1740
        %v1870 = vsub.f32 %v1702, %v1740
        %v1871 = vsub.f32 %v1703, %v1740
        %v1872 = vsub.f32 %v1704, %v1740
        %v1873 = vsub.f32 %v1705, %v1740
        %v1874 = vsub.f32 %v1706, %v1740
        %v1875 = vsub.f32 %v1707, %v1741
        %v1876 = vsub.f32 %v1708, %v1741
        %v1877 = vsub.f32 %v1709, %v1741
        %v1878 = vsub.f32 %v1710, %v1741
        %v1879 = vsub.f32 %v1711, %v1741
        %v1880 = vsub.f32 %v1712, %v1741
        %v1881 = vsub.f32 %v1713, %v1742
        %v1882 = vsub.f32 %v1714, %v1742
        %v1883 = vsub.f32 %v1715, %v1742
        %v1884 = vsub.f32 %v1716, %v1742
        %v1885 = vsub.f32 %v1717, %v1742
        %v1886 = vsub.f32 %v1718, %v1742
        %v1887 = vpack.c.bf16 %v1749, %v1743
        %v1888 = vpack.c.bf16 %v1750, %v1744
        %v1889 = vpack.c.bf16 %v1751, %v1745
        %v1890 = vpack.c.bf16 %v1752, %v1746
        %v1891 = vpack.c.bf16 %v1753, %v1747
        %v1892 = vpack.c.bf16 %v1754, %v1748
        %v1893 = vpack.c.bf16 %v1761, %v1755
        %v1894 = vpack.c.bf16 %v1762, %v1756
        %v1895 = vpack.c.bf16 %v1763, %v1757
        %v1896 = vpack.c.bf16 %v1764, %v1758
        %v1897 = vpack.c.bf16 %v1765, %v1759
        %v1898 = vpack.c.bf16 %v1766, %v1760
        %v1899 = vpack.c.bf16 %v1773, %v1767
        %v1900 = vpack.c.bf16 %v1774, %v1768
        %v1901 = vpack.c.bf16 %v1775, %v1769
        %v1902 = vpack.c.bf16 %v1776, %v1770
        %v1903 = vpack.c.bf16 %v1777, %v1771
        %v1904 = vpack.c.bf16 %v1778, %v1772
        %v1905 = vpack.c.bf16 %v1785, %v1779
        %v1906 = vpack.c.bf16 %v1786, %v1780
        %v1907 = vpack.c.bf16 %v1787, %v1781
        %v1908 = vpack.c.bf16 %v1788, %v1782
        %v1909 = vpack.c.bf16 %v1789, %v1783
        %v1910 = vpack.c.bf16 %v1790, %v1784
        %v1911 = vpack.c.bf16 %v1797, %v1791
        %v1912 = vpack.c.bf16 %v1798, %v1792
        %v1913 = vpack.c.bf16 %v1799, %v1793
        %v1914 = vpack.c.bf16 %v1800, %v1794
        %v1915 = vpack.c.bf16 %v1801, %v1795
        %v1916 = vpack.c.bf16 %v1802, %v1796
        %v1917 = vpack.c.bf16 %v1809, %v1803
        %v1918 = vpack.c.bf16 %v1810, %v1804
        %v1919 = vpack.c.bf16 %v1811, %v1805
        %v1920 = vpack.c.bf16 %v1812, %v1806
        %v1921 = vpack.c.bf16 %v1813, %v1807
        %v1922 = vpack.c.bf16 %v1814, %v1808
        %v1923 = vpack.c.bf16 %v1821, %v1815
        %v1924 = vpack.c.bf16 %v1822, %v1816
        %v1925 = vpack.c.bf16 %v1823, %v1817
        %v1926 = vpack.c.bf16 %v1824, %v1818
        %v1927 = vpack.c.bf16 %v1825, %v1819
        %v1928 = vpack.c.bf16 %v1826, %v1820
        %v1929 = vpack.c.bf16 %v1833, %v1827
        %v1930 = vpack.c.bf16 %v1834, %v1828
        %v1931 = vpack.c.bf16 %v1835, %v1829
        %v1932 = vpack.c.bf16 %v1836, %v1830
        %v1933 = vpack.c.bf16 %v1837, %v1831
        %v1934 = vpack.c.bf16 %v1838, %v1832
        %v1935 = vpack.c.bf16 %v1845, %v1839
        %v1936 = vpack.c.bf16 %v1846, %v1840
        %v1937 = vpack.c.bf16 %v1847, %v1841
        %v1938 = vpack.c.bf16 %v1848, %v1842
        %v1939 = vpack.c.bf16 %v1849, %v1843
        %v1940 = vpack.c.bf16 %v1850, %v1844
        %v1941 = vpack.c.bf16 %v1857, %v1851
        %v1942 = vpack.c.bf16 %v1858, %v1852
        %v1943 = vpack.c.bf16 %v1859, %v1853
        %v1944 = vpack.c.bf16 %v1860, %v1854
        %v1945 = vpack.c.bf16 %v1861, %v1855
        %v1946 = vpack.c.bf16 %v1862, %v1856
        %v1947 = vpack.c.bf16 %v1869, %v1863
        %v1948 = vpack.c.bf16 %v1870, %v1864
        %v1949 = vpack.c.bf16 %v1871, %v1865
        %v1950 = vpack.c.bf16 %v1872, %v1866
        %v1951 = vpack.c.bf16 %v1873, %v1867
        %v1952 = vpack.c.bf16 %v1874, %v1868
        %v1953 = vpack.c.bf16 %v1881, %v1875
        %v1954 = vpack.c.bf16 %v1882, %v1876
        %v1955 = vpack.c.bf16 %v1883, %v1877
        %v1956 = vpack.c.bf16 %v1884, %v1878
        %v1957 = vpack.c.bf16 %v1885, %v1879
        %v1958 = vpack.c.bf16 %v1886, %v1880
        %v1959 = vld [vmem:[#allocation7] sm:$0xff]
        %v1960 = vld [vmem:[#allocation7 + $0x8] sm:$0xff]
        %v1961 = vld [vmem:[#allocation7 + $0x10] sm:$0xff]
        %v1962 = vld [vmem:[#allocation7 + $0x18] sm:$0xff]
        %v1963 = vld [vmem:[#allocation7 + $0x20] sm:$0xff]
        %v1964 = vld [vmem:[#allocation7 + $0x28] sm:$0xff]
        %v1965 = vld [vmem:[#allocation7 + $0x30] sm:$0xff]
        %v1966 = vld [vmem:[#allocation7 + $0x38] sm:$0xff]
        %v1967 = vld [vmem:[#allocation7 + $0x40] sm:$0xff]
        %v1968 = vld [vmem:[#allocation7 + $0x48] sm:$0xff]
        %v1969 = vld [vmem:[#allocation7 + $0x50] sm:$0xff]
        %v1970 = vld [vmem:[#allocation7 + $0x58] sm:$0xff]
        %v1971 = vld [vmem:[#allocation7 + $0x60] sm:$0xff]
        %v1972 = vld [vmem:[#allocation7 + $0x68] sm:$0xff]
        %v1973 = vld [vmem:[#allocation7 + $0x70] sm:$0xff]
        %v1974 = vld [vmem:[#allocation7 + $0x78] sm:$0xff]
        %v1975 = vld [vmem:[#allocation7 + $0x80] sm:$0xff]
        %v1976 = vld [vmem:[#allocation7 + $0x88] sm:$0xff]
        %v1977 = vld [vmem:[#allocation7 + $0x90] sm:$0xff]
        %v1978 = vld [vmem:[#allocation7 + $0x98] sm:$0xff]
        %v1979 = vld [vmem:[#allocation7 + $0xa0] sm:$0xff]
        %v1980 = vld [vmem:[#allocation7 + $0xa8] sm:$0xff]
        %v1981 = vld [vmem:[#allocation7 + $0xb0] sm:$0xff]
        %v1982 = vld [vmem:[#allocation7 + $0xb8] sm:$0xff]
        %v1983 = vld [vmem:[#allocation7 + $0xc0] sm:$0xff]
        %v1984 = vld [vmem:[#allocation7 + $0xc8] sm:$0xff]
        %v1985 = vld [vmem:[#allocation7 + $0xd0] sm:$0xff]
        %v1986 = vld [vmem:[#allocation7 + $0xd8] sm:$0xff]
        %v1987 = vld [vmem:[#allocation7 + $0xe0] sm:$0xff]
        %v1988 = vld [vmem:[#allocation7 + $0xe8] sm:$0xff]
        %v1989 = vld [vmem:[#allocation7 + $0xf0] sm:$0xff]
        %v1990 = vld [vmem:[#allocation7 + $0xf8] sm:$0xff]
        %v1991 = vld [vmem:[#allocation7 + $0x100] sm:$0xff]
        %v1992 = vld [vmem:[#allocation7 + $0x108] sm:$0xff]
        %v1993 = vld [vmem:[#allocation7 + $0x110] sm:$0xff]
        %v1994 = vld [vmem:[#allocation7 + $0x118] sm:$0xff]
        %v1995 = vld [vmem:[#allocation7 + $0x120] sm:$0xff]
        %v1996 = vld [vmem:[#allocation7 + $0x128] sm:$0xff]
        %v1997 = vld [vmem:[#allocation7 + $0x130] sm:$0xff]
        %v1998 = vld [vmem:[#allocation7 + $0x138] sm:$0xff]
        %v1999 = vld [vmem:[#allocation7 + $0x140] sm:$0xff]
        %v2000 = vld [vmem:[#allocation7 + $0x148] sm:$0xff]
        %v2001 = vld [vmem:[#allocation7 + $0x150] sm:$0xff]
        %v2002 = vld [vmem:[#allocation7 + $0x158] sm:$0xff]
        %v2003 = vld [vmem:[#allocation7 + $0x160] sm:$0xff]
        %v2004 = vld [vmem:[#allocation7 + $0x168] sm:$0xff]
        %v2005 = vld [vmem:[#allocation7 + $0x170] sm:$0xff]
        %v2006 = vld [vmem:[#allocation7 + $0x178] sm:$0xff]
        %v2007 = vld [vmem:[#allocation7 + $0x180] sm:$0xff]
        %v2008 = vld [vmem:[#allocation7 + $0x188] sm:$0xff]
        %v2009 = vld [vmem:[#allocation7 + $0x190] sm:$0xff]
        %v2010 = vld [vmem:[#allocation7 + $0x198] sm:$0xff]
        %v2011 = vld [vmem:[#allocation7 + $0x1a0] sm:$0xff]
        %v2012 = vld [vmem:[#allocation7 + $0x1a8] sm:$0xff]
        %v2013 = vld [vmem:[#allocation7 + $0x1b0] sm:$0xff]
        %v2014 = vld [vmem:[#allocation7 + $0x1b8] sm:$0xff]
        %v2015 = vld [vmem:[#allocation7 + $0x1c0] sm:$0xff]
        %v2016 = vld [vmem:[#allocation7 + $0x1c8] sm:$0xff]
        %v2017 = vld [vmem:[#allocation7 + $0x1d0] sm:$0xff]
        %v2018 = vld [vmem:[#allocation7 + $0x1d8] sm:$0xff]
        %v2019 = vld [vmem:[#allocation7 + $0x1e0] sm:$0xff]
        %v2020 = vld [vmem:[#allocation7 + $0x1e8] sm:$0xff]
        %v2021 = vld [vmem:[#allocation7 + $0x1f0] sm:$0xff]
        %v2022 = vld [vmem:[#allocation7 + $0x1f8] sm:$0xff]
        %v2023 = vld [vmem:[#allocation7 + $0x200] sm:$0xff]
        %v2024 = vld [vmem:[#allocation7 + $0x208] sm:$0xff]
        %v2025 = vld [vmem:[#allocation7 + $0x210] sm:$0xff]
        %v2026 = vld [vmem:[#allocation7 + $0x218] sm:$0xff]
        %v2027 = vld [vmem:[#allocation7 + $0x220] sm:$0xff]
        %v2028 = vld [vmem:[#allocation7 + $0x228] sm:$0xff]
        %v2029 = vld [vmem:[#allocation7 + $0x230] sm:$0xff]
        %v2030 = vld [vmem:[#allocation7 + $0x238] sm:$0xff]
        %v2031 = vld [vmem:[#allocation7 + $0x240] sm:$0xff]
        %v2032 = vld [vmem:[#allocation7 + $0x248] sm:$0xff]
        %v2033 = vld [vmem:[#allocation7 + $0x250] sm:$0xff]
        %v2034 = vld [vmem:[#allocation7 + $0x258] sm:$0xff]
        %v2035 = vld [vmem:[#allocation7 + $0x260] sm:$0xff]
        %v2036 = vld [vmem:[#allocation7 + $0x268] sm:$0xff]
        %v2037 = vld [vmem:[#allocation7 + $0x270] sm:$0xff]
        %v2038 = vld [vmem:[#allocation7 + $0x278] sm:$0xff]
        %v2039 = vld [vmem:[#allocation7 + $0x280] sm:$0xff]
        %v2040 = vld [vmem:[#allocation7 + $0x288] sm:$0xff]
        %v2041 = vld [vmem:[#allocation7 + $0x290] sm:$0xff]
        %v2042 = vld [vmem:[#allocation7 + $0x298] sm:$0xff]
        %v2043 = vld [vmem:[#allocation7 + $0x2a0] sm:$0xff]
        %v2044 = vld [vmem:[#allocation7 + $0x2a8] sm:$0xff]
        %v2045 = vld [vmem:[#allocation7 + $0x2b0] sm:$0xff]
        %v2046 = vld [vmem:[#allocation7 + $0x2b8] sm:$0xff]
        %v2047 = vld [vmem:[#allocation7 + $0x2c0] sm:$0xff]
        %v2048 = vld [vmem:[#allocation7 + $0x2c8] sm:$0xff]
        %v2049 = vld [vmem:[#allocation7 + $0x2d0] sm:$0xff]
        %v2050 = vld [vmem:[#allocation7 + $0x2d8] sm:$0xff]
        %v2051 = vld [vmem:[#allocation7 + $0x2e0] sm:$0xff]
        %v2052 = vld [vmem:[#allocation7 + $0x2e8] sm:$0xff]
        %v2053 = vld [vmem:[#allocation7 + $0x2f0] sm:$0xff]
        %v2054 = vld [vmem:[#allocation7 + $0x2f8] sm:$0xff]
        %v2055 = vld [vmem:[#allocation7 + $0x300] sm:$0xff]
        %v2056 = vld [vmem:[#allocation7 + $0x308] sm:$0xff]
        %v2057 = vld [vmem:[#allocation7 + $0x310] sm:$0xff]
        %v2058 = vld [vmem:[#allocation7 + $0x318] sm:$0xff]
        %v2059 = vld [vmem:[#allocation7 + $0x320] sm:$0xff]
        %v2060 = vld [vmem:[#allocation7 + $0x328] sm:$0xff]
        %v2061 = vld [vmem:[#allocation7 + $0x330] sm:$0xff]
        %v2062 = vld [vmem:[#allocation7 + $0x338] sm:$0xff]
        %v2063 = vld [vmem:[#allocation7 + $0x340] sm:$0xff]
        %v2064 = vld [vmem:[#allocation7 + $0x348] sm:$0xff]
        %v2065 = vld [vmem:[#allocation7 + $0x350] sm:$0xff]
        %v2066 = vld [vmem:[#allocation7 + $0x358] sm:$0xff]
        %v2067 = vld [vmem:[#allocation7 + $0x360] sm:$0xff]
        %v2068 = vld [vmem:[#allocation7 + $0x368] sm:$0xff]
        %v2069 = vld [vmem:[#allocation7 + $0x370] sm:$0xff]
        %v2070 = vld [vmem:[#allocation7 + $0x378] sm:$0xff]
        %v2071 = vld [vmem:[#allocation7 + $0x380] sm:$0xff]
        %v2072 = vld [vmem:[#allocation7 + $0x388] sm:$0xff]
        %v2073 = vld [vmem:[#allocation7 + $0x390] sm:$0xff]
        %v2074 = vld [vmem:[#allocation7 + $0x398] sm:$0xff]
        %v2075 = vld [vmem:[#allocation7 + $0x3a0] sm:$0xff]
        %v2076 = vld [vmem:[#allocation7 + $0x3a8] sm:$0xff]
        %v2077 = vld [vmem:[#allocation7 + $0x3b0] sm:$0xff]
        %v2078 = vld [vmem:[#allocation7 + $0x3b8] sm:$0xff]
        %v2079 = vld [vmem:[#allocation7 + $0x3c0] sm:$0xff]
        %v2080 = vld [vmem:[#allocation7 + $0x3c8] sm:$0xff]
        %v2081 = vld [vmem:[#allocation7 + $0x3d0] sm:$0xff]
        %v2082 = vld [vmem:[#allocation7 + $0x3d8] sm:$0xff]
        %v2083 = vld [vmem:[#allocation7 + $0x3e0] sm:$0xff]
        %v2084 = vld [vmem:[#allocation7 + $0x3e8] sm:$0xff]
        %v2085 = vld [vmem:[#allocation7 + $0x3f0] sm:$0xff]
        %v2086 = vld [vmem:[#allocation7 + $0x3f8] sm:$0xff]
        %v2087 = vld [vmem:[#allocation7 + $0x400] sm:$0xff]
        %v2088 = vld [vmem:[#allocation7 + $0x408] sm:$0xff]
        %v2089 = vld [vmem:[#allocation7 + $0x410] sm:$0xff]
        %v2090 = vld [vmem:[#allocation7 + $0x418] sm:$0xff]
        %v2091 = vld [vmem:[#allocation7 + $0x420] sm:$0xff]
        %v2092 = vld [vmem:[#allocation7 + $0x428] sm:$0xff]
        %v2093 = vld [vmem:[#allocation7 + $0x430] sm:$0xff]
        %v2094 = vld [vmem:[#allocation7 + $0x438] sm:$0xff]
        %v2095 = vld [vmem:[#allocation7 + $0x440] sm:$0xff]
        %v2096 = vld [vmem:[#allocation7 + $0x448] sm:$0xff]
        %v2097 = vld [vmem:[#allocation7 + $0x450] sm:$0xff]
        %v2098 = vld [vmem:[#allocation7 + $0x458] sm:$0xff]
        %v2099 = vld [vmem:[#allocation7 + $0x460] sm:$0xff]
        %v2100 = vld [vmem:[#allocation7 + $0x468] sm:$0xff]
        %v2101 = vld [vmem:[#allocation7 + $0x470] sm:$0xff]
        %v2102 = vld [vmem:[#allocation7 + $0x478] sm:$0xff]
        %v2103 = vld [vmem:[#allocation7 + $0x480] sm:$0xff]
        %v2104 = vld [vmem:[#allocation7 + $0x488] sm:$0xff]
        %v2105 = vld [vmem:[#allocation7 + $0x490] sm:$0xff]
        %v2106 = vld [vmem:[#allocation7 + $0x498] sm:$0xff]
        %v2107 = vld [vmem:[#allocation7 + $0x4a0] sm:$0xff]
        %v2108 = vld [vmem:[#allocation7 + $0x4a8] sm:$0xff]
        %v2109 = vld [vmem:[#allocation7 + $0x4b0] sm:$0xff]
        %v2110 = vld [vmem:[#allocation7 + $0x4b8] sm:$0xff]
        %v2111 = vld [vmem:[#allocation7 + $0x4c0] sm:$0xff]
        %v2112 = vld [vmem:[#allocation7 + $0x4c8] sm:$0xff]
        %v2113 = vld [vmem:[#allocation7 + $0x4d0] sm:$0xff]
        %v2114 = vld [vmem:[#allocation7 + $0x4d8] sm:$0xff]
        %v2115 = vld [vmem:[#allocation7 + $0x4e0] sm:$0xff]
        %v2116 = vld [vmem:[#allocation7 + $0x4e8] sm:$0xff]
        %v2117 = vld [vmem:[#allocation7 + $0x4f0] sm:$0xff]
        %v2118 = vld [vmem:[#allocation7 + $0x4f8] sm:$0xff]
        %v2119 = vld [vmem:[#allocation7 + $0x500] sm:$0xff]
        %v2120 = vld [vmem:[#allocation7 + $0x508] sm:$0xff]
        %v2121 = vld [vmem:[#allocation7 + $0x510] sm:$0xff]
        %v2122 = vld [vmem:[#allocation7 + $0x518] sm:$0xff]
        %v2123 = vld [vmem:[#allocation7 + $0x520] sm:$0xff]
        %v2124 = vld [vmem:[#allocation7 + $0x528] sm:$0xff]
        %v2125 = vld [vmem:[#allocation7 + $0x530] sm:$0xff]
        %v2126 = vld [vmem:[#allocation7 + $0x538] sm:$0xff]
        %v2127 = vld [vmem:[#allocation7 + $0x540] sm:$0xff]
        %v2128 = vld [vmem:[#allocation7 + $0x548] sm:$0xff]
        %v2129 = vld [vmem:[#allocation7 + $0x550] sm:$0xff]
        %v2130 = vld [vmem:[#allocation7 + $0x558] sm:$0xff]
        %v2131 = vld [vmem:[#allocation7 + $0x560] sm:$0xff]
        %v2132 = vld [vmem:[#allocation7 + $0x568] sm:$0xff]
        %v2133 = vld [vmem:[#allocation7 + $0x570] sm:$0xff]
        %v2134 = vld [vmem:[#allocation7 + $0x578] sm:$0xff]
        %v2135 = vld [vmem:[#allocation7 + $0x580] sm:$0xff]
        %v2136 = vld [vmem:[#allocation7 + $0x588] sm:$0xff]
        %v2137 = vld [vmem:[#allocation7 + $0x590] sm:$0xff]
        %v2138 = vld [vmem:[#allocation7 + $0x598] sm:$0xff]
        %v2139 = vld [vmem:[#allocation7 + $0x5a0] sm:$0xff]
        %v2140 = vld [vmem:[#allocation7 + $0x5a8] sm:$0xff]
        %v2141 = vld [vmem:[#allocation7 + $0x5b0] sm:$0xff]
        %v2142 = vld [vmem:[#allocation7 + $0x5b8] sm:$0xff]
        %v2143 = vld [vmem:[#allocation7 + $0x5c0] sm:$0xff]
        %v2144 = vld [vmem:[#allocation7 + $0x5c8] sm:$0xff]
        %v2145 = vld [vmem:[#allocation7 + $0x5d0] sm:$0xff]
        %v2146 = vld [vmem:[#allocation7 + $0x5d8] sm:$0xff]
        %v2147 = vld [vmem:[#allocation7 + $0x5e0] sm:$0xff]
        %v2148 = vld [vmem:[#allocation7 + $0x5e8] sm:$0xff]
        %v2149 = vld [vmem:[#allocation7 + $0x5f0] sm:$0xff]
        %v2150 = vld [vmem:[#allocation7 + $0x5f8] sm:$0xff]
        %v2151 = vld [vmem:[#allocation7 + $0x600] sm:$0xff]
        %v2152 = vld [vmem:[#allocation7 + $0x608] sm:$0xff]
        %v2153 = vld [vmem:[#allocation7 + $0x610] sm:$0xff]
        %v2154 = vld [vmem:[#allocation7 + $0x618] sm:$0xff]
        %v2155 = vld [vmem:[#allocation7 + $0x620] sm:$0xff]
        %v2156 = vld [vmem:[#allocation7 + $0x628] sm:$0xff]
        %v2157 = vld [vmem:[#allocation7 + $0x630] sm:$0xff]
        %v2158 = vld [vmem:[#allocation7 + $0x638] sm:$0xff]
        %v2159 = vld [vmem:[#allocation7 + $0x640] sm:$0xff]
        %v2160 = vld [vmem:[#allocation7 + $0x648] sm:$0xff]
        %v2161 = vld [vmem:[#allocation7 + $0x650] sm:$0xff]
        %v2162 = vld [vmem:[#allocation7 + $0x658] sm:$0xff]
        %v2163 = vld [vmem:[#allocation7 + $0x660] sm:$0xff]
        %v2164 = vld [vmem:[#allocation7 + $0x668] sm:$0xff]
        %v2165 = vld [vmem:[#allocation7 + $0x670] sm:$0xff]
        %v2166 = vld [vmem:[#allocation7 + $0x678] sm:$0xff]
        %v2167 = vld [vmem:[#allocation7 + $0x680] sm:$0xff]
        %v2168 = vld [vmem:[#allocation7 + $0x688] sm:$0xff]
        %v2169 = vld [vmem:[#allocation7 + $0x690] sm:$0xff]
        %v2170 = vld [vmem:[#allocation7 + $0x698] sm:$0xff]
        %v2171 = vld [vmem:[#allocation7 + $0x6a0] sm:$0xff]
        %v2172 = vld [vmem:[#allocation7 + $0x6a8] sm:$0xff]
        %v2173 = vld [vmem:[#allocation7 + $0x6b0] sm:$0xff]
        %v2174 = vld [vmem:[#allocation7 + $0x6b8] sm:$0xff]
        %v2175 = vld [vmem:[#allocation7 + $0x6c0] sm:$0xff]
        %v2176 = vld [vmem:[#allocation7 + $0x6c8] sm:$0xff]
        %v2177 = vld [vmem:[#allocation7 + $0x6d0] sm:$0xff]
        %v2178 = vld [vmem:[#allocation7 + $0x6d8] sm:$0xff]
        %v2179 = vld [vmem:[#allocation7 + $0x6e0] sm:$0xff]
        %v2180 = vld [vmem:[#allocation7 + $0x6e8] sm:$0xff]
        %v2181 = vld [vmem:[#allocation7 + $0x6f0] sm:$0xff]
        %v2182 = vld [vmem:[#allocation7 + $0x6f8] sm:$0xff]
        %v2183 = vld [vmem:[#allocation7 + $0x700] sm:$0xff]
        %v2184 = vld [vmem:[#allocation7 + $0x708] sm:$0xff]
        %v2185 = vld [vmem:[#allocation7 + $0x710] sm:$0xff]
        %v2186 = vld [vmem:[#allocation7 + $0x718] sm:$0xff]
        %v2187 = vld [vmem:[#allocation7 + $0x720] sm:$0xff]
        %v2188 = vld [vmem:[#allocation7 + $0x728] sm:$0xff]
        %v2189 = vld [vmem:[#allocation7 + $0x730] sm:$0xff]
        %v2190 = vld [vmem:[#allocation7 + $0x738] sm:$0xff]
        %v2191 = vld [vmem:[#allocation7 + $0x740] sm:$0xff]
        %v2192 = vld [vmem:[#allocation7 + $0x748] sm:$0xff]
        %v2193 = vld [vmem:[#allocation7 + $0x750] sm:$0xff]
        %v2194 = vld [vmem:[#allocation7 + $0x758] sm:$0xff]
        %v2195 = vld [vmem:[#allocation7 + $0x760] sm:$0xff]
        %v2196 = vld [vmem:[#allocation7 + $0x768] sm:$0xff]
        %v2197 = vld [vmem:[#allocation7 + $0x770] sm:$0xff]
        %v2198 = vld [vmem:[#allocation7 + $0x778] sm:$0xff]
        %v2199 = vld [vmem:[#allocation7 + $0x780] sm:$0xff]
        %v2200 = vld [vmem:[#allocation7 + $0x788] sm:$0xff]
        %v2201 = vld [vmem:[#allocation7 + $0x790] sm:$0xff]
        %v2202 = vld [vmem:[#allocation7 + $0x798] sm:$0xff]
        %v2203 = vld [vmem:[#allocation7 + $0x7a0] sm:$0xff]
        %v2204 = vld [vmem:[#allocation7 + $0x7a8] sm:$0xff]
        %v2205 = vld [vmem:[#allocation7 + $0x7b0] sm:$0xff]
        %v2206 = vld [vmem:[#allocation7 + $0x7b8] sm:$0xff]
        %v2207 = vld [vmem:[#allocation7 + $0x7c0] sm:$0xff]
        %v2208 = vld [vmem:[#allocation7 + $0x7c8] sm:$0xff]
        %v2209 = vld [vmem:[#allocation7 + $0x7d0] sm:$0xff]
        %v2210 = vld [vmem:[#allocation7 + $0x7d8] sm:$0xff]
        %v2211 = vld [vmem:[#allocation7 + $0x7e0] sm:$0xff]
        %v2212 = vld [vmem:[#allocation7 + $0x7e8] sm:$0xff]
        %v2213 = vld [vmem:[#allocation7 + $0x7f0] sm:$0xff]
        %v2214 = vld [vmem:[#allocation7 + $0x7f8] sm:$0xff]
        %v2215 = vld [vmem:[#allocation7 + $0x800] sm:$0xff]
        %v2216 = vld [vmem:[#allocation7 + $0x808] sm:$0xff]
        %v2217 = vld [vmem:[#allocation7 + $0x810] sm:$0xff]
        %v2218 = vld [vmem:[#allocation7 + $0x818] sm:$0xff]
        %v2219 = vld [vmem:[#allocation7 + $0x820] sm:$0xff]
        %v2220 = vld [vmem:[#allocation7 + $0x828] sm:$0xff]
        %v2221 = vld [vmem:[#allocation7 + $0x830] sm:$0xff]
        %v2222 = vld [vmem:[#allocation7 + $0x838] sm:$0xff]
        %v2223 = vld [vmem:[#allocation7 + $0x840] sm:$0xff]
        %v2224 = vld [vmem:[#allocation7 + $0x848] sm:$0xff]
        %v2225 = vld [vmem:[#allocation7 + $0x850] sm:$0xff]
        %v2226 = vld [vmem:[#allocation7 + $0x858] sm:$0xff]
        %v2227 = vld [vmem:[#allocation7 + $0x860] sm:$0xff]
        %v2228 = vld [vmem:[#allocation7 + $0x868] sm:$0xff]
        %v2229 = vld [vmem:[#allocation7 + $0x870] sm:$0xff]
        %v2230 = vld [vmem:[#allocation7 + $0x878] sm:$0xff]
        %v2231 = vld [vmem:[#allocation7 + $0x880] sm:$0xff]
        %v2232 = vld [vmem:[#allocation7 + $0x888] sm:$0xff]
        %v2233 = vld [vmem:[#allocation7 + $0x890] sm:$0xff]
        %v2234 = vld [vmem:[#allocation7 + $0x898] sm:$0xff]
        %v2235 = vld [vmem:[#allocation7 + $0x8a0] sm:$0xff]
        %v2236 = vld [vmem:[#allocation7 + $0x8a8] sm:$0xff]
        %v2237 = vld [vmem:[#allocation7 + $0x8b0] sm:$0xff]
        %v2238 = vld [vmem:[#allocation7 + $0x8b8] sm:$0xff]
        %v2239 = vld [vmem:[#allocation7 + $0x8c0] sm:$0xff]
        %v2240 = vld [vmem:[#allocation7 + $0x8c8] sm:$0xff]
        %v2241 = vld [vmem:[#allocation7 + $0x8d0] sm:$0xff]
        %v2242 = vld [vmem:[#allocation7 + $0x8d8] sm:$0xff]
        %v2243 = vld [vmem:[#allocation7 + $0x8e0] sm:$0xff]
        %v2244 = vld [vmem:[#allocation7 + $0x8e8] sm:$0xff]
        %v2245 = vld [vmem:[#allocation7 + $0x8f0] sm:$0xff]
        %v2246 = vld [vmem:[#allocation7 + $0x8f8] sm:$0xff]
        %v2247 = vld [vmem:[#allocation8] sm:$0x3f]
        %v2249 = vperm.slane %v2247, 0
        %v2250 = vperm.slane %v2247, 1
        %v2251 = vperm.slane %v2247, 2
        %v2252 = vperm.slane %v2247, 3
        %v2253 = vperm.slane %v2247, 4
        %v2254 = vperm.slane %v2247, 5
        %v2549 = vunpack.c.l.b16 %v1959
        %v2550 = vunpack.c.h.b16 %v1959
        %v2551 = vunpack.c.l.b16 %v1960
        %v2552 = vunpack.c.h.b16 %v1960
        %v2553 = vunpack.c.l.b16 %v1961
        %v2554 = vunpack.c.h.b16 %v1961
        %v2555 = vunpack.c.l.b16 %v1962
        %v2556 = vunpack.c.h.b16 %v1962
        %v2557 = vunpack.c.l.b16 %v1963
        %v2558 = vunpack.c.h.b16 %v1963
        %v2559 = vunpack.c.l.b16 %v1964
        %v2560 = vunpack.c.h.b16 %v1964
        %v2561 = vunpack.c.l.b16 %v1965
        %v2562 = vunpack.c.h.b16 %v1965
        %v2563 = vunpack.c.l.b16 %v1966
        %v2564 = vunpack.c.h.b16 %v1966
        %v2565 = vunpack.c.l.b16 %v1967
        %v2566 = vunpack.c.h.b16 %v1967
        %v2567 = vunpack.c.l.b16 %v1968
        %v2568 = vunpack.c.h.b16 %v1968
        %v2569 = vunpack.c.l.b16 %v1969
        %v2570 = vunpack.c.h.b16 %v1969
        %v2571 = vunpack.c.l.b16 %v1970
        %v2572 = vunpack.c.h.b16 %v1970
        %v2573 = vunpack.c.l.b16 %v1971
        %v2574 = vunpack.c.h.b16 %v1971
        %v2575 = vunpack.c.l.b16 %v1972
        %v2576 = vunpack.c.h.b16 %v1972
        %v2577 = vunpack.c.l.b16 %v1973
        %v2578 = vunpack.c.h.b16 %v1973
        %v2579 = vunpack.c.l.b16 %v1974
        %v2580 = vunpack.c.h.b16 %v1974
        %v2581 = vunpack.c.l.b16 %v1975
        %v2582 = vunpack.c.h.b16 %v1975
        %v2583 = vunpack.c.l.b16 %v1976
        %v2584 = vunpack.c.h.b16 %v1976
        %v2585 = vunpack.c.l.b16 %v1977
        %v2586 = vunpack.c.h.b16 %v1977
        %v2587 = vunpack.c.l.b16 %v1978
        %v2588 = vunpack.c.h.b16 %v1978
        %v2589 = vunpack.c.l.b16 %v1979
        %v2590 = vunpack.c.h.b16 %v1979
        %v2591 = vunpack.c.l.b16 %v1980
        %v2592 = vunpack.c.h.b16 %v1980
        %v2593 = vunpack.c.l.b16 %v1981
        %v2594 = vunpack.c.h.b16 %v1981
        %v2595 = vunpack.c.l.b16 %v1982
        %v2596 = vunpack.c.h.b16 %v1982
        %v2597 = vunpack.c.l.b16 %v1983
        %v2598 = vunpack.c.h.b16 %v1983
        %v2599 = vunpack.c.l.b16 %v1984
        %v2600 = vunpack.c.h.b16 %v1984
        %v2601 = vunpack.c.l.b16 %v1985
        %v2602 = vunpack.c.h.b16 %v1985
        %v2603 = vunpack.c.l.b16 %v1986
        %v2604 = vunpack.c.h.b16 %v1986
        %v2605 = vunpack.c.l.b16 %v1987
        %v2606 = vunpack.c.h.b16 %v1987
        %v2607 = vunpack.c.l.b16 %v1988
        %v2608 = vunpack.c.h.b16 %v1988
        %v2609 = vunpack.c.l.b16 %v1989
        %v2610 = vunpack.c.h.b16 %v1989
        %v2611 = vunpack.c.l.b16 %v1990
        %v2612 = vunpack.c.h.b16 %v1990
        %v2613 = vunpack.c.l.b16 %v1991
        %v2614 = vunpack.c.h.b16 %v1991
        %v2615 = vunpack.c.l.b16 %v1992
        %v2616 = vunpack.c.h.b16 %v1992
        %v2617 = vunpack.c.l.b16 %v1993
        %v2618 = vunpack.c.h.b16 %v1993
        %v2619 = vunpack.c.l.b16 %v1994
        %v2620 = vunpack.c.h.b16 %v1994
        %v2621 = vunpack.c.l.b16 %v1995
        %v2622 = vunpack.c.h.b16 %v1995
        %v2623 = vunpack.c.l.b16 %v1996
        %v2624 = vunpack.c.h.b16 %v1996
        %v2625 = vunpack.c.l.b16 %v1997
        %v2626 = vunpack.c.h.b16 %v1997
        %v2627 = vunpack.c.l.b16 %v1998
        %v2628 = vunpack.c.h.b16 %v1998
        %v2629 = vunpack.c.l.b16 %v1999
        %v2630 = vunpack.c.h.b16 %v1999
        %v2631 = vunpack.c.l.b16 %v2000
        %v2632 = vunpack.c.h.b16 %v2000
        %v2633 = vunpack.c.l.b16 %v2001
        %v2634 = vunpack.c.h.b16 %v2001
        %v2635 = vunpack.c.l.b16 %v2002
        %v2636 = vunpack.c.h.b16 %v2002
        %v2637 = vunpack.c.l.b16 %v2003
        %v2638 = vunpack.c.h.b16 %v2003
        %v2639 = vunpack.c.l.b16 %v2004
        %v2640 = vunpack.c.h.b16 %v2004
        %v2641 = vunpack.c.l.b16 %v2005
        %v2642 = vunpack.c.h.b16 %v2005
        %v2643 = vunpack.c.l.b16 %v2006
        %v2644 = vunpack.c.h.b16 %v2006
        %v2645 = vunpack.c.l.b16 %v2007
        %v2646 = vunpack.c.h.b16 %v2007
        %v2647 = vunpack.c.l.b16 %v2008
        %v2648 = vunpack.c.h.b16 %v2008
        %v2649 = vunpack.c.l.b16 %v2009
        %v2650 = vunpack.c.h.b16 %v2009
        %v2651 = vunpack.c.l.b16 %v2010
        %v2652 = vunpack.c.h.b16 %v2010
        %v2653 = vunpack.c.l.b16 %v2011
        %v2654 = vunpack.c.h.b16 %v2011
        %v2655 = vunpack.c.l.b16 %v2012
        %v2656 = vunpack.c.h.b16 %v2012
        %v2657 = vunpack.c.l.b16 %v2013
        %v2658 = vunpack.c.h.b16 %v2013
        %v2659 = vunpack.c.l.b16 %v2014
        %v2660 = vunpack.c.h.b16 %v2014
        %v2661 = vunpack.c.l.b16 %v2015
        %v2662 = vunpack.c.h.b16 %v2015
        %v2663 = vunpack.c.l.b16 %v2016
        %v2664 = vunpack.c.h.b16 %v2016
        %v2665 = vunpack.c.l.b16 %v2017
        %v2666 = vunpack.c.h.b16 %v2017
        %v2667 = vunpack.c.l.b16 %v2018
        %v2668 = vunpack.c.h.b16 %v2018
        %v2669 = vunpack.c.l.b16 %v2019
        %v2670 = vunpack.c.h.b16 %v2019
        %v2671 = vunpack.c.l.b16 %v2020
        %v2672 = vunpack.c.h.b16 %v2020
        %v2673 = vunpack.c.l.b16 %v2021
        %v2674 = vunpack.c.h.b16 %v2021
        %v2675 = vunpack.c.l.b16 %v2022
        %v2676 = vunpack.c.h.b16 %v2022
        %v2677 = vunpack.c.l.b16 %v2023
        %v2678 = vunpack.c.h.b16 %v2023
        %v2679 = vunpack.c.l.b16 %v2024
        %v2680 = vunpack.c.h.b16 %v2024
        %v2681 = vunpack.c.l.b16 %v2025
        %v2682 = vunpack.c.h.b16 %v2025
        %v2683 = vunpack.c.l.b16 %v2026
        %v2684 = vunpack.c.h.b16 %v2026
        %v2685 = vunpack.c.l.b16 %v2027
        %v2686 = vunpack.c.h.b16 %v2027
        %v2687 = vunpack.c.l.b16 %v2028
        %v2688 = vunpack.c.h.b16 %v2028
        %v2689 = vunpack.c.l.b16 %v2029
        %v2690 = vunpack.c.h.b16 %v2029
        %v2691 = vunpack.c.l.b16 %v2030
        %v2692 = vunpack.c.h.b16 %v2030
        %v2693 = vunpack.c.l.b16 %v2031
        %v2694 = vunpack.c.h.b16 %v2031
        %v2695 = vunpack.c.l.b16 %v2032
        %v2696 = vunpack.c.h.b16 %v2032
        %v2697 = vunpack.c.l.b16 %v2033
        %v2698 = vunpack.c.h.b16 %v2033
        %v2699 = vunpack.c.l.b16 %v2034
        %v2700 = vunpack.c.h.b16 %v2034
        %v2701 = vunpack.c.l.b16 %v2035
        %v2702 = vunpack.c.h.b16 %v2035
        %v2703 = vunpack.c.l.b16 %v2036
        %v2704 = vunpack.c.h.b16 %v2036
        %v2705 = vunpack.c.l.b16 %v2037
        %v2706 = vunpack.c.h.b16 %v2037
        %v2707 = vunpack.c.l.b16 %v2038
        %v2708 = vunpack.c.h.b16 %v2038
        %v2709 = vunpack.c.l.b16 %v2039
        %v2710 = vunpack.c.h.b16 %v2039
        %v2711 = vunpack.c.l.b16 %v2040
        %v2712 = vunpack.c.h.b16 %v2040
        %v2713 = vunpack.c.l.b16 %v2041
        %v2714 = vunpack.c.h.b16 %v2041
        %v2715 = vunpack.c.l.b16 %v2042
        %v2716 = vunpack.c.h.b16 %v2042
        %v2717 = vunpack.c.l.b16 %v2043
        %v2718 = vunpack.c.h.b16 %v2043
        %v2719 = vunpack.c.l.b16 %v2044
        %v2720 = vunpack.c.h.b16 %v2044
        %v2721 = vunpack.c.l.b16 %v2045
        %v2722 = vunpack.c.h.b16 %v2045
        %v2723 = vunpack.c.l.b16 %v2046
        %v2724 = vunpack.c.h.b16 %v2046
        %v2725 = vunpack.c.l.b16 %v2047
        %v2726 = vunpack.c.h.b16 %v2047
        %v2727 = vunpack.c.l.b16 %v2048
        %v2728 = vunpack.c.h.b16 %v2048
        %v2729 = vunpack.c.l.b16 %v2049
        %v2730 = vunpack.c.h.b16 %v2049
        %v2731 = vunpack.c.l.b16 %v2050
        %v2732 = vunpack.c.h.b16 %v2050
        %v2733 = vunpack.c.l.b16 %v2051
        %v2734 = vunpack.c.h.b16 %v2051
        %v2735 = vunpack.c.l.b16 %v2052
        %v2736 = vunpack.c.h.b16 %v2052
        %v2737 = vunpack.c.l.b16 %v2053
        %v2738 = vunpack.c.h.b16 %v2053
        %v2739 = vunpack.c.l.b16 %v2054
        %v2740 = vunpack.c.h.b16 %v2054
        %v2741 = vunpack.c.l.b16 %v2055
        %v2742 = vunpack.c.h.b16 %v2055
        %v2743 = vunpack.c.l.b16 %v2056
        %v2744 = vunpack.c.h.b16 %v2056
        %v2745 = vunpack.c.l.b16 %v2057
        %v2746 = vunpack.c.h.b16 %v2057
        %v2747 = vunpack.c.l.b16 %v2058
        %v2748 = vunpack.c.h.b16 %v2058
        %v2749 = vunpack.c.l.b16 %v2059
        %v2750 = vunpack.c.h.b16 %v2059
        %v2751 = vunpack.c.l.b16 %v2060
        %v2752 = vunpack.c.h.b16 %v2060
        %v2753 = vunpack.c.l.b16 %v2061
        %v2754 = vunpack.c.h.b16 %v2061
        %v2755 = vunpack.c.l.b16 %v2062
        %v2756 = vunpack.c.h.b16 %v2062
        %v2757 = vunpack.c.l.b16 %v2063
        %v2758 = vunpack.c.h.b16 %v2063
        %v2759 = vunpack.c.l.b16 %v2064
        %v2760 = vunpack.c.h.b16 %v2064
        %v2761 = vunpack.c.l.b16 %v2065
        %v2762 = vunpack.c.h.b16 %v2065
        %v2763 = vunpack.c.l.b16 %v2066
        %v2764 = vunpack.c.h.b16 %v2066
        %v2765 = vunpack.c.l.b16 %v2067
        %v2766 = vunpack.c.h.b16 %v2067
        %v2767 = vunpack.c.l.b16 %v2068
        %v2768 = vunpack.c.h.b16 %v2068
        %v2769 = vunpack.c.l.b16 %v2069
        %v2770 = vunpack.c.h.b16 %v2069
        %v2771 = vunpack.c.l.b16 %v2070
        %v2772 = vunpack.c.h.b16 %v2070
        %v2773 = vunpack.c.l.b16 %v2071
        %v2774 = vunpack.c.h.b16 %v2071
        %v2775 = vunpack.c.l.b16 %v2072
        %v2776 = vunpack.c.h.b16 %v2072
        %v2777 = vunpack.c.l.b16 %v2073
        %v2778 = vunpack.c.h.b16 %v2073
        %v2779 = vunpack.c.l.b16 %v2074
        %v2780 = vunpack.c.h.b16 %v2074
        %v2781 = vunpack.c.l.b16 %v2075
        %v2782 = vunpack.c.h.b16 %v2075
        %v2783 = vunpack.c.l.b16 %v2076
        %v2784 = vunpack.c.h.b16 %v2076
        %v2785 = vunpack.c.l.b16 %v2077
        %v2786 = vunpack.c.h.b16 %v2077
        %v2787 = vunpack.c.l.b16 %v2078
        %v2788 = vunpack.c.h.b16 %v2078
        %v2789 = vunpack.c.l.b16 %v2079
        %v2790 = vunpack.c.h.b16 %v2079
        %v2791 = vunpack.c.l.b16 %v2080
        %v2792 = vunpack.c.h.b16 %v2080
        %v2793 = vunpack.c.l.b16 %v2081
        %v2794 = vunpack.c.h.b16 %v2081
        %v2795 = vunpack.c.l.b16 %v2082
        %v2796 = vunpack.c.h.b16 %v2082
        %v2797 = vunpack.c.l.b16 %v2083
        %v2798 = vunpack.c.h.b16 %v2083
        %v2799 = vunpack.c.l.b16 %v2084
        %v2800 = vunpack.c.h.b16 %v2084
        %v2801 = vunpack.c.l.b16 %v2085
        %v2802 = vunpack.c.h.b16 %v2085
        %v2803 = vunpack.c.l.b16 %v2086
        %v2804 = vunpack.c.h.b16 %v2086
        %v2805 = vunpack.c.l.b16 %v2087
        %v2806 = vunpack.c.h.b16 %v2087
        %v2807 = vunpack.c.l.b16 %v2088
        %v2808 = vunpack.c.h.b16 %v2088
        %v2809 = vunpack.c.l.b16 %v2089
        %v2810 = vunpack.c.h.b16 %v2089
        %v2811 = vunpack.c.l.b16 %v2090
        %v2812 = vunpack.c.h.b16 %v2090
        %v2813 = vunpack.c.l.b16 %v2091
        %v2814 = vunpack.c.h.b16 %v2091
        %v2815 = vunpack.c.l.b16 %v2092
        %v2816 = vunpack.c.h.b16 %v2092
        %v2817 = vunpack.c.l.b16 %v2093
        %v2818 = vunpack.c.h.b16 %v2093
        %v2819 = vunpack.c.l.b16 %v2094
        %v2820 = vunpack.c.h.b16 %v2094
        %v2821 = vunpack.c.l.b16 %v2095
        %v2822 = vunpack.c.h.b16 %v2095
        %v2823 = vunpack.c.l.b16 %v2096
        %v2824 = vunpack.c.h.b16 %v2096
        %v2825 = vunpack.c.l.b16 %v2097
        %v2826 = vunpack.c.h.b16 %v2097
        %v2827 = vunpack.c.l.b16 %v2098
        %v2828 = vunpack.c.h.b16 %v2098
        %v2829 = vunpack.c.l.b16 %v2099
        %v2830 = vunpack.c.h.b16 %v2099
        %v2831 = vunpack.c.l.b16 %v2100
        %v2832 = vunpack.c.h.b16 %v2100
        %v2833 = vunpack.c.l.b16 %v2101
        %v2834 = vunpack.c.h.b16 %v2101
        %v2835 = vunpack.c.l.b16 %v2102
        %v2836 = vunpack.c.h.b16 %v2102
        %v2837 = vunpack.c.l.b16 %v2103
        %v2838 = vunpack.c.h.b16 %v2103
        %v2839 = vunpack.c.l.b16 %v2104
        %v2840 = vunpack.c.h.b16 %v2104
        %v2841 = vunpack.c.l.b16 %v2105
        %v2842 = vunpack.c.h.b16 %v2105
        %v2843 = vunpack.c.l.b16 %v2106
        %v2844 = vunpack.c.h.b16 %v2106
        %v2845 = vunpack.c.l.b16 %v2107
        %v2846 = vunpack.c.h.b16 %v2107
        %v2847 = vunpack.c.l.b16 %v2108
        %v2848 = vunpack.c.h.b16 %v2108
        %v2849 = vunpack.c.l.b16 %v2109
        %v2850 = vunpack.c.h.b16 %v2109
        %v2851 = vunpack.c.l.b16 %v2110
        %v2852 = vunpack.c.h.b16 %v2110
        %v2853 = vunpack.c.l.b16 %v2111
        %v2854 = vunpack.c.h.b16 %v2111
        %v2855 = vunpack.c.l.b16 %v2112
        %v2856 = vunpack.c.h.b16 %v2112
        %v2857 = vunpack.c.l.b16 %v2113
        %v2858 = vunpack.c.h.b16 %v2113
        %v2859 = vunpack.c.l.b16 %v2114
        %v2860 = vunpack.c.h.b16 %v2114
        %v2861 = vunpack.c.l.b16 %v2115
        %v2862 = vunpack.c.h.b16 %v2115
        %v2863 = vunpack.c.l.b16 %v2116
        %v2864 = vunpack.c.h.b16 %v2116
        %v2865 = vunpack.c.l.b16 %v2117
        %v2866 = vunpack.c.h.b16 %v2117
        %v2867 = vunpack.c.l.b16 %v2118
        %v2868 = vunpack.c.h.b16 %v2118
        %v2869 = vunpack.c.l.b16 %v2119
        %v2870 = vunpack.c.h.b16 %v2119
        %v2871 = vunpack.c.l.b16 %v2120
        %v2872 = vunpack.c.h.b16 %v2120
        %v2873 = vunpack.c.l.b16 %v2121
        %v2874 = vunpack.c.h.b16 %v2121
        %v2875 = vunpack.c.l.b16 %v2122
        %v2876 = vunpack.c.h.b16 %v2122
        %v2877 = vunpack.c.l.b16 %v2123
        %v2878 = vunpack.c.h.b16 %v2123
        %v2879 = vunpack.c.l.b16 %v2124
        %v2880 = vunpack.c.h.b16 %v2124
        %v2881 = vunpack.c.l.b16 %v2125
        %v2882 = vunpack.c.h.b16 %v2125
        %v2883 = vunpack.c.l.b16 %v2126
        %v2884 = vunpack.c.h.b16 %v2126
        %v2885 = vunpack.c.l.b16 %v2127
        %v2886 = vunpack.c.h.b16 %v2127
        %v2887 = vunpack.c.l.b16 %v2128
        %v2888 = vunpack.c.h.b16 %v2128
        %v2889 = vunpack.c.l.b16 %v2129
        %v2890 = vunpack.c.h.b16 %v2129
        %v2891 = vunpack.c.l.b16 %v2130
        %v2892 = vunpack.c.h.b16 %v2130
        %v2893 = vunpack.c.l.b16 %v2131
        %v2894 = vunpack.c.h.b16 %v2131
        %v2895 = vunpack.c.l.b16 %v2132
        %v2896 = vunpack.c.h.b16 %v2132
        %v2897 = vunpack.c.l.b16 %v2133
        %v2898 = vunpack.c.h.b16 %v2133
        %v2899 = vunpack.c.l.b16 %v2134
        %v2900 = vunpack.c.h.b16 %v2134
        %v2901 = vunpack.c.l.b16 %v2135
        %v2902 = vunpack.c.h.b16 %v2135
        %v2903 = vunpack.c.l.b16 %v2136
        %v2904 = vunpack.c.h.b16 %v2136
        %v2905 = vunpack.c.l.b16 %v2137
        %v2906 = vunpack.c.h.b16 %v2137
        %v2907 = vunpack.c.l.b16 %v2138
        %v2908 = vunpack.c.h.b16 %v2138
        %v2909 = vunpack.c.l.b16 %v2139
        %v2910 = vunpack.c.h.b16 %v2139
        %v2911 = vunpack.c.l.b16 %v2140
        %v2912 = vunpack.c.h.b16 %v2140
        %v2913 = vunpack.c.l.b16 %v2141
        %v2914 = vunpack.c.h.b16 %v2141
        %v2915 = vunpack.c.l.b16 %v2142
        %v2916 = vunpack.c.h.b16 %v2142
        %v2917 = vunpack.c.l.b16 %v2143
        %v2918 = vunpack.c.h.b16 %v2143
        %v2919 = vunpack.c.l.b16 %v2144
        %v2920 = vunpack.c.h.b16 %v2144
        %v2921 = vunpack.c.l.b16 %v2145
        %v2922 = vunpack.c.h.b16 %v2145
        %v2923 = vunpack.c.l.b16 %v2146
        %v2924 = vunpack.c.h.b16 %v2146
        %v2925 = vunpack.c.l.b16 %v2147
        %v2926 = vunpack.c.h.b16 %v2147
        %v2927 = vunpack.c.l.b16 %v2148
        %v2928 = vunpack.c.h.b16 %v2148
        %v2929 = vunpack.c.l.b16 %v2149
        %v2930 = vunpack.c.h.b16 %v2149
        %v2931 = vunpack.c.l.b16 %v2150
        %v2932 = vunpack.c.h.b16 %v2150
        %v2933 = vunpack.c.l.b16 %v2151
        %v2934 = vunpack.c.h.b16 %v2151
        %v2935 = vunpack.c.l.b16 %v2152
        %v2936 = vunpack.c.h.b16 %v2152
        %v2937 = vunpack.c.l.b16 %v2153
        %v2938 = vunpack.c.h.b16 %v2153
        %v2939 = vunpack.c.l.b16 %v2154
        %v2940 = vunpack.c.h.b16 %v2154
        %v2941 = vunpack.c.l.b16 %v2155
        %v2942 = vunpack.c.h.b16 %v2155
        %v2943 = vunpack.c.l.b16 %v2156
        %v2944 = vunpack.c.h.b16 %v2156
        %v2945 = vunpack.c.l.b16 %v2157
        %v2946 = vunpack.c.h.b16 %v2157
        %v2947 = vunpack.c.l.b16 %v2158
        %v2948 = vunpack.c.h.b16 %v2158
        %v2949 = vunpack.c.l.b16 %v2159
        %v2950 = vunpack.c.h.b16 %v2159
        %v2951 = vunpack.c.l.b16 %v2160
        %v2952 = vunpack.c.h.b16 %v2160
        %v2953 = vunpack.c.l.b16 %v2161
        %v2954 = vunpack.c.h.b16 %v2161
        %v2955 = vunpack.c.l.b16 %v2162
        %v2956 = vunpack.c.h.b16 %v2162
        %v2957 = vunpack.c.l.b16 %v2163
        %v2958 = vunpack.c.h.b16 %v2163
        %v2959 = vunpack.c.l.b16 %v2164
        %v2960 = vunpack.c.h.b16 %v2164
        %v2961 = vunpack.c.l.b16 %v2165
        %v2962 = vunpack.c.h.b16 %v2165
        %v2963 = vunpack.c.l.b16 %v2166
        %v2964 = vunpack.c.h.b16 %v2166
        %v2965 = vunpack.c.l.b16 %v2167
        %v2966 = vunpack.c.h.b16 %v2167
        %v2967 = vunpack.c.l.b16 %v2168
        %v2968 = vunpack.c.h.b16 %v2168
        %v2969 = vunpack.c.l.b16 %v2169
        %v2970 = vunpack.c.h.b16 %v2169
        %v2971 = vunpack.c.l.b16 %v2170
        %v2972 = vunpack.c.h.b16 %v2170
        %v2973 = vunpack.c.l.b16 %v2171
        %v2974 = vunpack.c.h.b16 %v2171
        %v2975 = vunpack.c.l.b16 %v2172
        %v2976 = vunpack.c.h.b16 %v2172
        %v2977 = vunpack.c.l.b16 %v2173
        %v2978 = vunpack.c.h.b16 %v2173
        %v2979 = vunpack.c.l.b16 %v2174
        %v2980 = vunpack.c.h.b16 %v2174
        %v2981 = vunpack.c.l.b16 %v2175
        %v2982 = vunpack.c.h.b16 %v2175
        %v2983 = vunpack.c.l.b16 %v2176
        %v2984 = vunpack.c.h.b16 %v2176
        %v2985 = vunpack.c.l.b16 %v2177
        %v2986 = vunpack.c.h.b16 %v2177
        %v2987 = vunpack.c.l.b16 %v2178
        %v2988 = vunpack.c.h.b16 %v2178
        %v2989 = vunpack.c.l.b16 %v2179
        %v2990 = vunpack.c.h.b16 %v2179
        %v2991 = vunpack.c.l.b16 %v2180
        %v2992 = vunpack.c.h.b16 %v2180
        %v2993 = vunpack.c.l.b16 %v2181
        %v2994 = vunpack.c.h.b16 %v2181
        %v2995 = vunpack.c.l.b16 %v2182
        %v2996 = vunpack.c.h.b16 %v2182
        %v2997 = vunpack.c.l.b16 %v2183
        %v2998 = vunpack.c.h.b16 %v2183
        %v2999 = vunpack.c.l.b16 %v2184
        %v3000 = vunpack.c.h.b16 %v2184
        %v3001 = vunpack.c.l.b16 %v2185
        %v3002 = vunpack.c.h.b16 %v2185
        %v3003 = vunpack.c.l.b16 %v2186
        %v3004 = vunpack.c.h.b16 %v2186
        %v3005 = vunpack.c.l.b16 %v2187
        %v3006 = vunpack.c.h.b16 %v2187
        %v3007 = vunpack.c.l.b16 %v2188
        %v3008 = vunpack.c.h.b16 %v2188
        %v3009 = vunpack.c.l.b16 %v2189
        %v3010 = vunpack.c.h.b16 %v2189
        %v3011 = vunpack.c.l.b16 %v2190
        %v3012 = vunpack.c.h.b16 %v2190
        %v3013 = vunpack.c.l.b16 %v2191
        %v3014 = vunpack.c.h.b16 %v2191
        %v3015 = vunpack.c.l.b16 %v2192
        %v3016 = vunpack.c.h.b16 %v2192
        %v3017 = vunpack.c.l.b16 %v2193
        %v3018 = vunpack.c.h.b16 %v2193
        %v3019 = vunpack.c.l.b16 %v2194
        %v3020 = vunpack.c.h.b16 %v2194
        %v3021 = vunpack.c.l.b16 %v2195
        %v3022 = vunpack.c.h.b16 %v2195
        %v3023 = vunpack.c.l.b16 %v2196
        %v3024 = vunpack.c.h.b16 %v2196
        %v3025 = vunpack.c.l.b16 %v2197
        %v3026 = vunpack.c.h.b16 %v2197
        %v3027 = vunpack.c.l.b16 %v2198
        %v3028 = vunpack.c.h.b16 %v2198
        %v3029 = vunpack.c.l.b16 %v2199
        %v3030 = vunpack.c.h.b16 %v2199
        %v3031 = vunpack.c.l.b16 %v2200
        %v3032 = vunpack.c.h.b16 %v2200
        %v3033 = vunpack.c.l.b16 %v2201
        %v3034 = vunpack.c.h.b16 %v2201
        %v3035 = vunpack.c.l.b16 %v2202
        %v3036 = vunpack.c.h.b16 %v2202
        %v3037 = vunpack.c.l.b16 %v2203
        %v3038 = vunpack.c.h.b16 %v2203
        %v3039 = vunpack.c.l.b16 %v2204
        %v3040 = vunpack.c.h.b16 %v2204
        %v3041 = vunpack.c.l.b16 %v2205
        %v3042 = vunpack.c.h.b16 %v2205
        %v3043 = vunpack.c.l.b16 %v2206
        %v3044 = vunpack.c.h.b16 %v2206
        %v3045 = vunpack.c.l.b16 %v2207
        %v3046 = vunpack.c.h.b16 %v2207
        %v3047 = vunpack.c.l.b16 %v2208
        %v3048 = vunpack.c.h.b16 %v2208
        %v3049 = vunpack.c.l.b16 %v2209
        %v3050 = vunpack.c.h.b16 %v2209
        %v3051 = vunpack.c.l.b16 %v2210
        %v3052 = vunpack.c.h.b16 %v2210
        %v3053 = vunpack.c.l.b16 %v2211
        %v3054 = vunpack.c.h.b16 %v2211
        %v3055 = vunpack.c.l.b16 %v2212
        %v3056 = vunpack.c.h.b16 %v2212
        %v3057 = vunpack.c.l.b16 %v2213
        %v3058 = vunpack.c.h.b16 %v2213
        %v3059 = vunpack.c.l.b16 %v2214
        %v3060 = vunpack.c.h.b16 %v2214
        %v3061 = vunpack.c.l.b16 %v2215
        %v3062 = vunpack.c.h.b16 %v2215
        %v3063 = vunpack.c.l.b16 %v2216
        %v3064 = vunpack.c.h.b16 %v2216
        %v3065 = vunpack.c.l.b16 %v2217
        %v3066 = vunpack.c.h.b16 %v2217
        %v3067 = vunpack.c.l.b16 %v2218
        %v3068 = vunpack.c.h.b16 %v2218
        %v3069 = vunpack.c.l.b16 %v2219
        %v3070 = vunpack.c.h.b16 %v2219
        %v3071 = vunpack.c.l.b16 %v2220
        %v3072 = vunpack.c.h.b16 %v2220
        %v3073 = vunpack.c.l.b16 %v2221
        %v3074 = vunpack.c.h.b16 %v2221
        %v3075 = vunpack.c.l.b16 %v2222
        %v3076 = vunpack.c.h.b16 %v2222
        %v3077 = vunpack.c.l.b16 %v2223
        %v3078 = vunpack.c.h.b16 %v2223
        %v3079 = vunpack.c.l.b16 %v2224
        %v3080 = vunpack.c.h.b16 %v2224
        %v3081 = vunpack.c.l.b16 %v2225
        %v3082 = vunpack.c.h.b16 %v2225
        %v3083 = vunpack.c.l.b16 %v2226
        %v3084 = vunpack.c.h.b16 %v2226
        %v3085 = vunpack.c.l.b16 %v2227
        %v3086 = vunpack.c.h.b16 %v2227
        %v3087 = vunpack.c.l.b16 %v2228
        %v3088 = vunpack.c.h.b16 %v2228
        %v3089 = vunpack.c.l.b16 %v2229
        %v3090 = vunpack.c.h.b16 %v2229
        %v3091 = vunpack.c.l.b16 %v2230
        %v3092 = vunpack.c.h.b16 %v2230
        %v3093 = vunpack.c.l.b16 %v2231
        %v3094 = vunpack.c.h.b16 %v2231
        %v3095 = vunpack.c.l.b16 %v2232
        %v3096 = vunpack.c.h.b16 %v2232
        %v3097 = vunpack.c.l.b16 %v2233
        %v3098 = vunpack.c.h.b16 %v2233
        %v3099 = vunpack.c.l.b16 %v2234
        %v3100 = vunpack.c.h.b16 %v2234
        %v3101 = vunpack.c.l.b16 %v2235
        %v3102 = vunpack.c.h.b16 %v2235
        %v3103 = vunpack.c.l.b16 %v2236
        %v3104 = vunpack.c.h.b16 %v2236
        %v3105 = vunpack.c.l.b16 %v2237
        %v3106 = vunpack.c.h.b16 %v2237
        %v3107 = vunpack.c.l.b16 %v2238
        %v3108 = vunpack.c.h.b16 %v2238
        %v3109 = vunpack.c.l.b16 %v2239
        %v3110 = vunpack.c.h.b16 %v2239
        %v3111 = vunpack.c.l.b16 %v2240
        %v3112 = vunpack.c.h.b16 %v2240
        %v3113 = vunpack.c.l.b16 %v2241
        %v3114 = vunpack.c.h.b16 %v2241
        %v3115 = vunpack.c.l.b16 %v2242
        %v3116 = vunpack.c.h.b16 %v2242
        %v3117 = vunpack.c.l.b16 %v2243
        %v3118 = vunpack.c.h.b16 %v2243
        %v3119 = vunpack.c.l.b16 %v2244
        %v3120 = vunpack.c.h.b16 %v2244
        %v3121 = vunpack.c.l.b16 %v2245
        %v3122 = vunpack.c.h.b16 %v2245
        %v3123 = vunpack.c.l.b16 %v2246
        %v3124 = vunpack.c.h.b16 %v2246
        %v3125 = vpack.c.b16 %v2555, %v2549
        %v3126 = vpack.c.b16 %v2556, %v2550
        %v3127 = vpack.c.b16 %v2557, %v2551
        %v3128 = vpack.c.b16 %v2558, %v2552
        %v3129 = vpack.c.b16 %v2559, %v2553
        %v3130 = vpack.c.b16 %v2560, %v2554
        %v3131 = vpack.c.b16 %v2567, %v2561
        %v3132 = vpack.c.b16 %v2568, %v2562
        %v3133 = vpack.c.b16 %v2569, %v2563
        %v3134 = vpack.c.b16 %v2570, %v2564
        %v3135 = vpack.c.b16 %v2571, %v2565
        %v3136 = vpack.c.b16 %v2572, %v2566
        %v3137 = vpack.c.b16 %v2579, %v2573
        %v3138 = vpack.c.b16 %v2580, %v2574
        %v3139 = vpack.c.b16 %v2581, %v2575
        %v3140 = vpack.c.b16 %v2582, %v2576
        %v3141 = vpack.c.b16 %v2583, %v2577
        %v3142 = vpack.c.b16 %v2584, %v2578
        %v3143 = vpack.c.b16 %v2591, %v2585
        %v3144 = vpack.c.b16 %v2592, %v2586
        %v3145 = vpack.c.b16 %v2593, %v2587
        %v3146 = vpack.c.b16 %v2594, %v2588
        %v3147 = vpack.c.b16 %v2595, %v2589
        %v3148 = vpack.c.b16 %v2596, %v2590
        %v3149 = vpack.c.b16 %v2603, %v2597
        %v3150 = vpack.c.b16 %v2604, %v2598
        %v3151 = vpack.c.b16 %v2605, %v2599
        %v3152 = vpack.c.b16 %v2606, %v2600
        %v3153 = vpack.c.b16 %v2607, %v2601
        %v3154 = vpack.c.b16 %v2608, %v2602
        %v3155 = vpack.c.b16 %v2615, %v2609
        %v3156 = vpack.c.b16 %v2616, %v2610
        %v3157 = vpack.c.b16 %v2617, %v2611
        %v3158 = vpack.c.b16 %v2618, %v2612
        %v3159 = vpack.c.b16 %v2619, %v2613
        %v3160 = vpack.c.b16 %v2620, %v2614
        %v3161 = vpack.c.b16 %v2627, %v2621
        %v3162 = vpack.c.b16 %v2628, %v2622
        %v3163 = vpack.c.b16 %v2629, %v2623
        %v3164 = vpack.c.b16 %v2630, %v2624
        %v3165 = vpack.c.b16 %v2631, %v2625
        %v3166 = vpack.c.b16 %v2632, %v2626
        %v3167 = vpack.c.b16 %v2639, %v2633
        %v3168 = vpack.c.b16 %v2640, %v2634
        %v3169 = vpack.c.b16 %v2641, %v2635
        %v3170 = vpack.c.b16 %v2642, %v2636
        %v3171 = vpack.c.b16 %v2643, %v2637
        %v3172 = vpack.c.b16 %v2644, %v2638
        %v3173 = vpack.c.b16 %v2651, %v2645
        %v3174 = vpack.c.b16 %v2652, %v2646
        %v3175 = vpack.c.b16 %v2653, %v2647
        %v3176 = vpack.c.b16 %v2654, %v2648
        %v3177 = vpack.c.b16 %v2655, %v2649
        %v3178 = vpack.c.b16 %v2656, %v2650
        %v3179 = vpack.c.b16 %v2663, %v2657
        %v3180 = vpack.c.b16 %v2664, %v2658
        %v3181 = vpack.c.b16 %v2665, %v2659
        %v3182 = vpack.c.b16 %v2666, %v2660
        %v3183 = vpack.c.b16 %v2667, %v2661
        %v3184 = vpack.c.b16 %v2668, %v2662
        %v3185 = vpack.c.b16 %v2675, %v2669
        %v3186 = vpack.c.b16 %v2676, %v2670
        %v3187 = vpack.c.b16 %v2677, %v2671
        %v3188 = vpack.c.b16 %v2678, %v2672
        %v3189 = vpack.c.b16 %v2679, %v2673
        %v3190 = vpack.c.b16 %v2680, %v2674
        %v3191 = vpack.c.b16 %v2687, %v2681
        %v3192 = vpack.c.b16 %v2688, %v2682
        %v3193 = vpack.c.b16 %v2689, %v2683
        %v3194 = vpack.c.b16 %v2690, %v2684
        %v3195 = vpack.c.b16 %v2691, %v2685
        %v3196 = vpack.c.b16 %v2692, %v2686
        %v3197 = vpack.c.b16 %v2699, %v2693
        %v3198 = vpack.c.b16 %v2700, %v2694
        %v3199 = vpack.c.b16 %v2701, %v2695
        %v3200 = vpack.c.b16 %v2702, %v2696
        %v3201 = vpack.c.b16 %v2703, %v2697
        %v3202 = vpack.c.b16 %v2704, %v2698
        %v3203 = vpack.c.b16 %v2711, %v2705
        %v3204 = vpack.c.b16 %v2712, %v2706
        %v3205 = vpack.c.b16 %v2713, %v2707
        %v3206 = vpack.c.b16 %v2714, %v2708
        %v3207 = vpack.c.b16 %v2715, %v2709
        %v3208 = vpack.c.b16 %v2716, %v2710
        %v3209 = vpack.c.b16 %v2723, %v2717
        %v3210 = vpack.c.b16 %v2724, %v2718
        %v3211 = vpack.c.b16 %v2725, %v2719
        %v3212 = vpack.c.b16 %v2726, %v2720
        %v3213 = vpack.c.b16 %v2727, %v2721
        %v3214 = vpack.c.b16 %v2728, %v2722
        %v3215 = vpack.c.b16 %v2735, %v2729
        %v3216 = vpack.c.b16 %v2736, %v2730
        %v3217 = vpack.c.b16 %v2737, %v2731
        %v3218 = vpack.c.b16 %v2738, %v2732
        %v3219 = vpack.c.b16 %v2739, %v2733
        %v3220 = vpack.c.b16 %v2740, %v2734
        %v3221 = vpack.c.b16 %v2747, %v2741
        %v3222 = vpack.c.b16 %v2748, %v2742
        %v3223 = vpack.c.b16 %v2749, %v2743
        %v3224 = vpack.c.b16 %v2750, %v2744
        %v3225 = vpack.c.b16 %v2751, %v2745
        %v3226 = vpack.c.b16 %v2752, %v2746
        %v3227 = vpack.c.b16 %v2759, %v2753
        %v3228 = vpack.c.b16 %v2760, %v2754
        %v3229 = vpack.c.b16 %v2761, %v2755
        %v3230 = vpack.c.b16 %v2762, %v2756
        %v3231 = vpack.c.b16 %v2763, %v2757
        %v3232 = vpack.c.b16 %v2764, %v2758
        %v3233 = vpack.c.b16 %v2771, %v2765
        %v3234 = vpack.c.b16 %v2772, %v2766
        %v3235 = vpack.c.b16 %v2773, %v2767
        %v3236 = vpack.c.b16 %v2774, %v2768
        %v3237 = vpack.c.b16 %v2775, %v2769
        %v3238 = vpack.c.b16 %v2776, %v2770
        %v3239 = vpack.c.b16 %v2783, %v2777
        %v3240 = vpack.c.b16 %v2784, %v2778
        %v3241 = vpack.c.b16 %v2785, %v2779
        %v3242 = vpack.c.b16 %v2786, %v2780
        %v3243 = vpack.c.b16 %v2787, %v2781
        %v3244 = vpack.c.b16 %v2788, %v2782
        %v3245 = vpack.c.b16 %v2795, %v2789
        %v3246 = vpack.c.b16 %v2796, %v2790
        %v3247 = vpack.c.b16 %v2797, %v2791
        %v3248 = vpack.c.b16 %v2798, %v2792
        %v3249 = vpack.c.b16 %v2799, %v2793
        %v3250 = vpack.c.b16 %v2800, %v2794
        %v3251 = vpack.c.b16 %v2807, %v2801
        %v3252 = vpack.c.b16 %v2808, %v2802
        %v3253 = vpack.c.b16 %v2809, %v2803
        %v3254 = vpack.c.b16 %v2810, %v2804
        %v3255 = vpack.c.b16 %v2811, %v2805
        %v3256 = vpack.c.b16 %v2812, %v2806
        %v3257 = vpack.c.b16 %v2819, %v2813
        %v3258 = vpack.c.b16 %v2820, %v2814
        %v3259 = vpack.c.b16 %v2821, %v2815
        %v3260 = vpack.c.b16 %v2822, %v2816
        %v3261 = vpack.c.b16 %v2823, %v2817
        %v3262 = vpack.c.b16 %v2824, %v2818
        %v3263 = vpack.c.b16 %v2831, %v2825
        %v3264 = vpack.c.b16 %v2832, %v2826
        %v3265 = vpack.c.b16 %v2833, %v2827
        %v3266 = vpack.c.b16 %v2834, %v2828
        %v3267 = vpack.c.b16 %v2835, %v2829
        %v3268 = vpack.c.b16 %v2836, %v2830
        %v3269 = vpack.c.b16 %v2843, %v2837
        %v3270 = vpack.c.b16 %v2844, %v2838
        %v3271 = vpack.c.b16 %v2845, %v2839
        %v3272 = vpack.c.b16 %v2846, %v2840
        %v3273 = vpack.c.b16 %v2847, %v2841
        %v3274 = vpack.c.b16 %v2848, %v2842
        %v3275 = vpack.c.b16 %v2855, %v2849
        %v3276 = vpack.c.b16 %v2856, %v2850
        %v3277 = vpack.c.b16 %v2857, %v2851
        %v3278 = vpack.c.b16 %v2858, %v2852
        %v3279 = vpack.c.b16 %v2859, %v2853
        %v3280 = vpack.c.b16 %v2860, %v2854
        %v3281 = vpack.c.b16 %v2867, %v2861
        %v3282 = vpack.c.b16 %v2868, %v2862
        %v3283 = vpack.c.b16 %v2869, %v2863
        %v3284 = vpack.c.b16 %v2870, %v2864
        %v3285 = vpack.c.b16 %v2871, %v2865
        %v3286 = vpack.c.b16 %v2872, %v2866
        %v3287 = vpack.c.b16 %v2879, %v2873
        %v3288 = vpack.c.b16 %v2880, %v2874
        %v3289 = vpack.c.b16 %v2881, %v2875
        %v3290 = vpack.c.b16 %v2882, %v2876
        %v3291 = vpack.c.b16 %v2883, %v2877
        %v3292 = vpack.c.b16 %v2884, %v2878
        %v3293 = vpack.c.b16 %v2891, %v2885
        %v3294 = vpack.c.b16 %v2892, %v2886
        %v3295 = vpack.c.b16 %v2893, %v2887
        %v3296 = vpack.c.b16 %v2894, %v2888
        %v3297 = vpack.c.b16 %v2895, %v2889
        %v3298 = vpack.c.b16 %v2896, %v2890
        %v3299 = vpack.c.b16 %v2903, %v2897
        %v3300 = vpack.c.b16 %v2904, %v2898
        %v3301 = vpack.c.b16 %v2905, %v2899
        %v3302 = vpack.c.b16 %v2906, %v2900
        %v3303 = vpack.c.b16 %v2907, %v2901
        %v3304 = vpack.c.b16 %v2908, %v2902
        %v3305 = vpack.c.b16 %v2915, %v2909
        %v3306 = vpack.c.b16 %v2916, %v2910
        %v3307 = vpack.c.b16 %v2917, %v2911
        %v3308 = vpack.c.b16 %v2918, %v2912
        %v3309 = vpack.c.b16 %v2919, %v2913
        %v3310 = vpack.c.b16 %v2920, %v2914
        %v3311 = vpack.c.b16 %v2927, %v2921
        %v3312 = vpack.c.b16 %v2928, %v2922
        %v3313 = vpack.c.b16 %v2929, %v2923
        %v3314 = vpack.c.b16 %v2930, %v2924
        %v3315 = vpack.c.b16 %v2931, %v2925
        %v3316 = vpack.c.b16 %v2932, %v2926
        %v3317 = vpack.c.b16 %v2939, %v2933
        %v3318 = vpack.c.b16 %v2940, %v2934
        %v3319 = vpack.c.b16 %v2941, %v2935
        %v3320 = vpack.c.b16 %v2942, %v2936
        %v3321 = vpack.c.b16 %v2943, %v2937
        %v3322 = vpack.c.b16 %v2944, %v2938
        %v3323 = vpack.c.b16 %v2951, %v2945
        %v3324 = vpack.c.b16 %v2952, %v2946
        %v3325 = vpack.c.b16 %v2953, %v2947
        %v3326 = vpack.c.b16 %v2954, %v2948
        %v3327 = vpack.c.b16 %v2955, %v2949
        %v3328 = vpack.c.b16 %v2956, %v2950
        %v3329 = vpack.c.b16 %v2963, %v2957
        %v3330 = vpack.c.b16 %v2964, %v2958
        %v3331 = vpack.c.b16 %v2965, %v2959
        %v3332 = vpack.c.b16 %v2966, %v2960
        %v3333 = vpack.c.b16 %v2967, %v2961
        %v3334 = vpack.c.b16 %v2968, %v2962
        %v3335 = vpack.c.b16 %v2975, %v2969
        %v3336 = vpack.c.b16 %v2976, %v2970
        %v3337 = vpack.c.b16 %v2977, %v2971
        %v3338 = vpack.c.b16 %v2978, %v2972
        %v3339 = vpack.c.b16 %v2979, %v2973
        %v3340 = vpack.c.b16 %v2980, %v2974
        %v3341 = vpack.c.b16 %v2987, %v2981
        %v3342 = vpack.c.b16 %v2988, %v2982
        %v3343 = vpack.c.b16 %v2989, %v2983
        %v3344 = vpack.c.b16 %v2990, %v2984
        %v3345 = vpack.c.b16 %v2991, %v2985
        %v3346 = vpack.c.b16 %v2992, %v2986
        %v3347 = vpack.c.b16 %v2999, %v2993
        %v3348 = vpack.c.b16 %v3000, %v2994
        %v3349 = vpack.c.b16 %v3001, %v2995
        %v3350 = vpack.c.b16 %v3002, %v2996
        %v3351 = vpack.c.b16 %v3003, %v2997
        %v3352 = vpack.c.b16 %v3004, %v2998
        %v3353 = vpack.c.b16 %v3011, %v3005
        %v3354 = vpack.c.b16 %v3012, %v3006
        %v3355 = vpack.c.b16 %v3013, %v3007
        %v3356 = vpack.c.b16 %v3014, %v3008
        %v3357 = vpack.c.b16 %v3015, %v3009
        %v3358 = vpack.c.b16 %v3016, %v3010
        %v3359 = vpack.c.b16 %v3023, %v3017
        %v3360 = vpack.c.b16 %v3024, %v3018
        %v3361 = vpack.c.b16 %v3025, %v3019
        %v3362 = vpack.c.b16 %v3026, %v3020
        %v3363 = vpack.c.b16 %v3027, %v3021
        %v3364 = vpack.c.b16 %v3028, %v3022
        %v3365 = vpack.c.b16 %v3035, %v3029
        %v3366 = vpack.c.b16 %v3036, %v3030
        %v3367 = vpack.c.b16 %v3037, %v3031
        %v3368 = vpack.c.b16 %v3038, %v3032
        %v3369 = vpack.c.b16 %v3039, %v3033
        %v3370 = vpack.c.b16 %v3040, %v3034
        %v3371 = vpack.c.b16 %v3047, %v3041
        %v3372 = vpack.c.b16 %v3048, %v3042
        %v3373 = vpack.c.b16 %v3049, %v3043
        %v3374 = vpack.c.b16 %v3050, %v3044
        %v3375 = vpack.c.b16 %v3051, %v3045
        %v3376 = vpack.c.b16 %v3052, %v3046
        %v3377 = vpack.c.b16 %v3059, %v3053
        %v3378 = vpack.c.b16 %v3060, %v3054
        %v3379 = vpack.c.b16 %v3061, %v3055
        %v3380 = vpack.c.b16 %v3062, %v3056
        %v3381 = vpack.c.b16 %v3063, %v3057
        %v3382 = vpack.c.b16 %v3064, %v3058
        %v3383 = vpack.c.b16 %v3071, %v3065
        %v3384 = vpack.c.b16 %v3072, %v3066
        %v3385 = vpack.c.b16 %v3073, %v3067
        %v3386 = vpack.c.b16 %v3074, %v3068
        %v3387 = vpack.c.b16 %v3075, %v3069
        %v3388 = vpack.c.b16 %v3076, %v3070
        %v3389 = vpack.c.b16 %v3083, %v3077
        %v3390 = vpack.c.b16 %v3084, %v3078
        %v3391 = vpack.c.b16 %v3085, %v3079
        %v3392 = vpack.c.b16 %v3086, %v3080
        %v3393 = vpack.c.b16 %v3087, %v3081
        %v3394 = vpack.c.b16 %v3088, %v3082
        %v3395 = vpack.c.b16 %v3095, %v3089
        %v3396 = vpack.c.b16 %v3096, %v3090
        %v3397 = vpack.c.b16 %v3097, %v3091
        %v3398 = vpack.c.b16 %v3098, %v3092
        %v3399 = vpack.c.b16 %v3099, %v3093
        %v3400 = vpack.c.b16 %v3100, %v3094
        %v3401 = vpack.c.b16 %v3107, %v3101
        %v3402 = vpack.c.b16 %v3108, %v3102
        %v3403 = vpack.c.b16 %v3109, %v3103
        %v3404 = vpack.c.b16 %v3110, %v3104
        %v3405 = vpack.c.b16 %v3111, %v3105
        %v3406 = vpack.c.b16 %v3112, %v3106
        %v3407 = vpack.c.b16 %v3119, %v3113
        %v3408 = vpack.c.b16 %v3120, %v3114
        %v3409 = vpack.c.b16 %v3121, %v3115
        %v3410 = vpack.c.b16 %v3122, %v3116
        %v3411 = vpack.c.b16 %v3123, %v3117
        %v3412 = vpack.c.b16 %v3124, %v3118
        %3701 = vmatpush.bf16.msra.mxu0 %v3167
        %3702 = vmatpush.bf16.msra.mxu0 %v3161
        %3703 = vmatpush.bf16.msra.mxu0 %v3155
        %3704 = vmatpush.bf16.msra.mxu0 %v3149
        %3705 = vmatpush.bf16.msra.mxu0 %v3143
        %3706 = vmatpush.bf16.msra.mxu0 %v3137
        %3707 = vmatpush.bf16.msra.mxu0 %v3131
        %3708 = vmatpush.bf16.msra.mxu0 %v3125
        %3709 = vmatmul.bf16.gmra.mxu0 %v1887
        %v3710 = vpop.f32.mrf.mxu0
        %v3711 = vadd.f32 %v2249, %v3710
        %v3712 = vpop.f32.mrf.mxu0
        %v3713 = vadd.f32 %v2249, %v3712
        %3714 = vmatmul.bf16.gmra.mxu0 %v1893
        %v3715 = vpop.f32.mrf.mxu0
        %v3716 = vadd.f32 %v2249, %v3715
        %v3717 = vpop.f32.mrf.mxu0
        %v3718 = vadd.f32 %v2249, %v3717
        %3719 = vmatmul.bf16.gmra.mxu0 %v1899
        %v3720 = vpop.f32.mrf.mxu0
        %v3721 = vadd.f32 %v2249, %v3720
        %v3722 = vpop.f32.mrf.mxu0
        %v3723 = vadd.f32 %v2249, %v3722
        %3724 = vmatmul.bf16.gmra.mxu0 %v1905
        %v3725 = vpop.f32.mrf.mxu0
        %v3726 = vadd.f32 %v2249, %v3725
        %v3727 = vpop.f32.mrf.mxu0
        %v3728 = vadd.f32 %v2249, %v3727
        %3729 = vmatmul.bf16.gmra.mxu0 %v1911
        %v3730 = vpop.f32.mrf.mxu0
        %v3731 = vadd.f32 %v2249, %v3730
        %v3732 = vpop.f32.mrf.mxu0
        %v3733 = vadd.f32 %v2249, %v3732
        %3734 = vmatmul.bf16.gmra.mxu0 %v1917
        %v3735 = vpop.f32.mrf.mxu0
        %v3736 = vadd.f32 %v2249, %v3735
        %v3737 = vpop.f32.mrf.mxu0
        %v3738 = vadd.f32 %v2249, %v3737
        %3739 = vmatmul.bf16.gmra.mxu0 %v1923
        %v3740 = vpop.f32.mrf.mxu0
        %v3741 = vadd.f32 %v2249, %v3740
        %v3742 = vpop.f32.mrf.mxu0
        %v3743 = vadd.f32 %v2249, %v3742
        %3744 = vmatmul.bf16.gmra.mxu0 %v1929
        %v3745 = vpop.f32.mrf.mxu0
        %v3746 = vadd.f32 %v2249, %v3745
        %v3747 = vpop.f32.mrf.mxu0
        %v3748 = vadd.f32 %v2249, %v3747
        %3749 = vmatmul.bf16.gmra.mxu0 %v1935
        %v3750 = vpop.f32.mrf.mxu0
        %v3751 = vadd.f32 %v2249, %v3750
        %v3752 = vpop.f32.mrf.mxu0
        %v3753 = vadd.f32 %v2249, %v3752
        %3754 = vmatmul.bf16.gmra.mxu0 %v1941
        %v3755 = vpop.f32.mrf.mxu0
        %v3756 = vadd.f32 %v2249, %v3755
        %v3757 = vpop.f32.mrf.mxu0
        %v3758 = vadd.f32 %v2249, %v3757
        %3759 = vmatmul.bf16.gmra.mxu0 %v1947
        %v3760 = vpop.f32.mrf.mxu0
        %v3761 = vadd.f32 %v2249, %v3760
        %v3762 = vpop.f32.mrf.mxu0
        %v3763 = vadd.f32 %v2249, %v3762
        %3764 = vmatmul.bf16.gmra.mxu0 %v1953
        %v3765 = vpop.f32.mrf.mxu0
        %v3766 = vadd.f32 %v2249, %v3765
        %v3767 = vpop.f32.mrf.mxu0
        %v3768 = vadd.f32 %v2249, %v3767
        %3769 = vdwg.mxu0
        %3770 = vmatpush.bf16.msra.mxu0 %v3215
        %3771 = vmatpush.bf16.msra.mxu0 %v3209
        %3772 = vmatpush.bf16.msra.mxu0 %v3203
        %3773 = vmatpush.bf16.msra.mxu0 %v3197
        %3774 = vmatpush.bf16.msra.mxu0 %v3191
        %3775 = vmatpush.bf16.msra.mxu0 %v3185
        %3776 = vmatpush.bf16.msra.mxu0 %v3179
        %3777 = vmatpush.bf16.msra.mxu0 %v3173
        %3778 = vmatmul.bf16.gmra.mxu0 %v1888
        %v3779 = vpop.f32.mrf.mxu0
        %v3780 = vadd.f32 %v3711, %v3779
        %v3781 = vpop.f32.mrf.mxu0
        %v3782 = vadd.f32 %v3713, %v3781
        %3783 = vmatmul.bf16.gmra.mxu0 %v1894
        %v3784 = vpop.f32.mrf.mxu0
        %v3785 = vadd.f32 %v3716, %v3784
        %v3786 = vpop.f32.mrf.mxu0
        %v3787 = vadd.f32 %v3718, %v3786
        %3788 = vmatmul.bf16.gmra.mxu0 %v1900
        %v3789 = vpop.f32.mrf.mxu0
        %v3790 = vadd.f32 %v3721, %v3789
        %v3791 = vpop.f32.mrf.mxu0
        %v3792 = vadd.f32 %v3723, %v3791
        %3793 = vmatmul.bf16.gmra.mxu0 %v1906
        %v3794 = vpop.f32.mrf.mxu0
        %v3795 = vadd.f32 %v3726, %v3794
        %v3796 = vpop.f32.mrf.mxu0
        %v3797 = vadd.f32 %v3728, %v3796
        %3798 = vmatmul.bf16.gmra.mxu0 %v1912
        %v3799 = vpop.f32.mrf.mxu0
        %v3800 = vadd.f32 %v3731, %v3799
        %v3801 = vpop.f32.mrf.mxu0
        %v3802 = vadd.f32 %v3733, %v3801
        %3803 = vmatmul.bf16.gmra.mxu0 %v1918
        %v3804 = vpop.f32.mrf.mxu0
        %v3805 = vadd.f32 %v3736, %v3804
        %v3806 = vpop.f32.mrf.mxu0
        %v3807 = vadd.f32 %v3738, %v3806
        %3808 = vmatmul.bf16.gmra.mxu0 %v1924
        %v3809 = vpop.f32.mrf.mxu0
        %v3810 = vadd.f32 %v3741, %v3809
        %v3811 = vpop.f32.mrf.mxu0
        %v3812 = vadd.f32 %v3743, %v3811
        %3813 = vmatmul.bf16.gmra.mxu0 %v1930
        %v3814 = vpop.f32.mrf.mxu0
        %v3815 = vadd.f32 %v3746, %v3814
        %v3816 = vpop.f32.mrf.mxu0
        %v3817 = vadd.f32 %v3748, %v3816
        %3818 = vmatmul.bf16.gmra.mxu0 %v1936
        %v3819 = vpop.f32.mrf.mxu0
        %v3820 = vadd.f32 %v3751, %v3819
        %v3821 = vpop.f32.mrf.mxu0
        %v3822 = vadd.f32 %v3753, %v3821
        %3823 = vmatmul.bf16.gmra.mxu0 %v1942
        %v3824 = vpop.f32.mrf.mxu0
        %v3825 = vadd.f32 %v3756, %v3824
        %v3826 = vpop.f32.mrf.mxu0
        %v3827 = vadd.f32 %v3758, %v3826
        %3828 = vmatmul.bf16.gmra.mxu0 %v1948
        %v3829 = vpop.f32.mrf.mxu0
        %v3830 = vadd.f32 %v3761, %v3829
        %v3831 = vpop.f32.mrf.mxu0
        %v3832 = vadd.f32 %v3763, %v3831
        %3833 = vmatmul.bf16.gmra.mxu0 %v1954
        %v3834 = vpop.f32.mrf.mxu0
        %v3835 = vadd.f32 %v3766, %v3834
        %v3836 = vpop.f32.mrf.mxu0
        %v3837 = vadd.f32 %v3768, %v3836
        %3838 = vdwg.mxu0
        %3839 = vmatpush.bf16.msra.mxu0 %v3263
        %3840 = vmatpush.bf16.msra.mxu0 %v3257
        %3841 = vmatpush.bf16.msra.mxu0 %v3251
        %3842 = vmatpush.bf16.msra.mxu0 %v3245
        %3843 = vmatpush.bf16.msra.mxu0 %v3239
        %3844 = vmatpush.bf16.msra.mxu0 %v3233
        %3845 = vmatpush.bf16.msra.mxu0 %v3227
        %3846 = vmatpush.bf16.msra.mxu0 %v3221
        %3847 = vmatmul.bf16.gmra.mxu0 %v1889
        %v3848 = vpop.f32.mrf.mxu0
        %v3849 = vadd.f32 %v3780, %v3848
        %v3850 = vpop.f32.mrf.mxu0
        %v3851 = vadd.f32 %v3782, %v3850
        %3852 = vmatmul.bf16.gmra.mxu0 %v1895
        %v3853 = vpop.f32.mrf.mxu0
        %v3854 = vadd.f32 %v3785, %v3853
        %v3855 = vpop.f32.mrf.mxu0
        %v3856 = vadd.f32 %v3787, %v3855
        %3857 = vmatmul.bf16.gmra.mxu0 %v1901
        %v3858 = vpop.f32.mrf.mxu0
        %v3859 = vadd.f32 %v3790, %v3858
        %v3860 = vpop.f32.mrf.mxu0
        %v3861 = vadd.f32 %v3792, %v3860
        %3862 = vmatmul.bf16.gmra.mxu0 %v1907
        %v3863 = vpop.f32.mrf.mxu0
        %v3864 = vadd.f32 %v3795, %v3863
        %v3865 = vpop.f32.mrf.mxu0
        %v3866 = vadd.f32 %v3797, %v3865
        %3867 = vmatmul.bf16.gmra.mxu0 %v1913
        %v3868 = vpop.f32.mrf.mxu0
        %v3869 = vadd.f32 %v3800, %v3868
        %v3870 = vpop.f32.mrf.mxu0
        %v3871 = vadd.f32 %v3802, %v3870
        %3872 = vmatmul.bf16.gmra.mxu0 %v1919
        %v3873 = vpop.f32.mrf.mxu0
        %v3874 = vadd.f32 %v3805, %v3873
        %v3875 = vpop.f32.mrf.mxu0
        %v3876 = vadd.f32 %v3807, %v3875
        %3877 = vmatmul.bf16.gmra.mxu0 %v1925
        %v3878 = vpop.f32.mrf.mxu0
        %v3879 = vadd.f32 %v3810, %v3878
        %v3880 = vpop.f32.mrf.mxu0
        %v3881 = vadd.f32 %v3812, %v3880
        %3882 = vmatmul.bf16.gmra.mxu0 %v1931
        %v3883 = vpop.f32.mrf.mxu0
        %v3884 = vadd.f32 %v3815, %v3883
        %v3885 = vpop.f32.mrf.mxu0
        %v3886 = vadd.f32 %v3817, %v3885
        %3887 = vmatmul.bf16.gmra.mxu0 %v1937
        %v3888 = vpop.f32.mrf.mxu0
        %v3889 = vadd.f32 %v3820, %v3888
        %v3890 = vpop.f32.mrf.mxu0
        %v3891 = vadd.f32 %v3822, %v3890
        %3892 = vmatmul.bf16.gmra.mxu0 %v1943
        %v3893 = vpop.f32.mrf.mxu0
        %v3894 = vadd.f32 %v3825, %v3893
        %v3895 = vpop.f32.mrf.mxu0
        %v3896 = vadd.f32 %v3827, %v3895
        %3897 = vmatmul.bf16.gmra.mxu0 %v1949
        %v3898 = vpop.f32.mrf.mxu0
        %v3899 = vadd.f32 %v3830, %v3898
        %v3900 = vpop.f32.mrf.mxu0
        %v3901 = vadd.f32 %v3832, %v3900
        %3902 = vmatmul.bf16.gmra.mxu0 %v1955
        %v3903 = vpop.f32.mrf.mxu0
        %v3904 = vadd.f32 %v3835, %v3903
        %v3905 = vpop.f32.mrf.mxu0
        %v3906 = vadd.f32 %v3837, %v3905
        %3907 = vdwg.mxu0
        %3908 = vmatpush.bf16.msra.mxu0 %v3311
        %3909 = vmatpush.bf16.msra.mxu0 %v3305
        %3910 = vmatpush.bf16.msra.mxu0 %v3299
        %3911 = vmatpush.bf16.msra.mxu0 %v3293
        %3912 = vmatpush.bf16.msra.mxu0 %v3287
        %3913 = vmatpush.bf16.msra.mxu0 %v3281
        %3914 = vmatpush.bf16.msra.mxu0 %v3275
        %3915 = vmatpush.bf16.msra.mxu0 %v3269
        %3916 = vmatmul.bf16.gmra.mxu0 %v1890
        %v3917 = vpop.f32.mrf.mxu0
        %v3918 = vadd.f32 %v3849, %v3917
        %v3919 = vpop.f32.mrf.mxu0
        %v3920 = vadd.f32 %v3851, %v3919
        %3921 = vmatmul.bf16.gmra.mxu0 %v1896
        %v3922 = vpop.f32.mrf.mxu0
        %v3923 = vadd.f32 %v3854, %v3922
        %v3924 = vpop.f32.mrf.mxu0
        %v3925 = vadd.f32 %v3856, %v3924
        %3926 = vmatmul.bf16.gmra.mxu0 %v1902
        %v3927 = vpop.f32.mrf.mxu0
        %v3928 = vadd.f32 %v3859, %v3927
        %v3929 = vpop.f32.mrf.mxu0
        %v3930 = vadd.f32 %v3861, %v3929
        %3931 = vmatmul.bf16.gmra.mxu0 %v1908
        %v3932 = vpop.f32.mrf.mxu0
        %v3933 = vadd.f32 %v3864, %v3932
        %v3934 = vpop.f32.mrf.mxu0
        %v3935 = vadd.f32 %v3866, %v3934
        %3936 = vmatmul.bf16.gmra.mxu0 %v1914
        %v3937 = vpop.f32.mrf.mxu0
        %v3938 = vadd.f32 %v3869, %v3937
        %v3939 = vpop.f32.mrf.mxu0
        %v3940 = vadd.f32 %v3871, %v3939
        %3941 = vmatmul.bf16.gmra.mxu0 %v1920
        %v3942 = vpop.f32.mrf.mxu0
        %v3943 = vadd.f32 %v3874, %v3942
        %v3944 = vpop.f32.mrf.mxu0
        %v3945 = vadd.f32 %v3876, %v3944
        %3946 = vmatmul.bf16.gmra.mxu0 %v1926
        %v3947 = vpop.f32.mrf.mxu0
        %v3948 = vadd.f32 %v3879, %v3947
        %v3949 = vpop.f32.mrf.mxu0
        %v3950 = vadd.f32 %v3881, %v3949
        %3951 = vmatmul.bf16.gmra.mxu0 %v1932
        %v3952 = vpop.f32.mrf.mxu0
        %v3953 = vadd.f32 %v3884, %v3952
        %v3954 = vpop.f32.mrf.mxu0
        %v3955 = vadd.f32 %v3886, %v3954
        %3956 = vmatmul.bf16.gmra.mxu0 %v1938
        %v3957 = vpop.f32.mrf.mxu0
        %v3958 = vadd.f32 %v3889, %v3957
        %v3959 = vpop.f32.mrf.mxu0
        %v3960 = vadd.f32 %v3891, %v3959
        %3961 = vmatmul.bf16.gmra.mxu0 %v1944
        %v3962 = vpop.f32.mrf.mxu0
        %v3963 = vadd.f32 %v3894, %v3962
        %v3964 = vpop.f32.mrf.mxu0
        %v3965 = vadd.f32 %v3896, %v3964
        %3966 = vmatmul.bf16.gmra.mxu0 %v1950
        %v3967 = vpop.f32.mrf.mxu0
        %v3968 = vadd.f32 %v3899, %v3967
        %v3969 = vpop.f32.mrf.mxu0
        %v3970 = vadd.f32 %v3901, %v3969
        %3971 = vmatmul.bf16.gmra.mxu0 %v1956
        %v3972 = vpop.f32.mrf.mxu0
        %v3973 = vadd.f32 %v3904, %v3972
        %v3974 = vpop.f32.mrf.mxu0
        %v3975 = vadd.f32 %v3906, %v3974
        %3976 = vdwg.mxu0
        %3977 = vmatpush.bf16.msra.mxu0 %v3359
        %3978 = vmatpush.bf16.msra.mxu0 %v3353
        %3979 = vmatpush.bf16.msra.mxu0 %v3347
        %3980 = vmatpush.bf16.msra.mxu0 %v3341
        %3981 = vmatpush.bf16.msra.mxu0 %v3335
        %3982 = vmatpush.bf16.msra.mxu0 %v3329
        %3983 = vmatpush.bf16.msra.mxu0 %v3323
        %3984 = vmatpush.bf16.msra.mxu0 %v3317
        %3985 = vmatmul.bf16.gmra.mxu0 %v1891
        %v3986 = vpop.f32.mrf.mxu0
        %v3987 = vadd.f32 %v3918, %v3986
        %v3988 = vpop.f32.mrf.mxu0
        %v3989 = vadd.f32 %v3920, %v3988
        %3990 = vmatmul.bf16.gmra.mxu0 %v1897
        %v3991 = vpop.f32.mrf.mxu0
        %v3992 = vadd.f32 %v3923, %v3991
        %v3993 = vpop.f32.mrf.mxu0
        %v3994 = vadd.f32 %v3925, %v3993
        %3995 = vmatmul.bf16.gmra.mxu0 %v1903
        %v3996 = vpop.f32.mrf.mxu0
        %v3997 = vadd.f32 %v3928, %v3996
        %v3998 = vpop.f32.mrf.mxu0
        %v3999 = vadd.f32 %v3930, %v3998
        %4000 = vmatmul.bf16.gmra.mxu0 %v1909
        %v4001 = vpop.f32.mrf.mxu0
        %v4002 = vadd.f32 %v3933, %v4001
        %v4003 = vpop.f32.mrf.mxu0
        %v4004 = vadd.f32 %v3935, %v4003
        %4005 = vmatmul.bf16.gmra.mxu0 %v1915
        %v4006 = vpop.f32.mrf.mxu0
        %v4007 = vadd.f32 %v3938, %v4006
        %v4008 = vpop.f32.mrf.mxu0
        %v4009 = vadd.f32 %v3940, %v4008
        %4010 = vmatmul.bf16.gmra.mxu0 %v1921
        %v4011 = vpop.f32.mrf.mxu0
        %v4012 = vadd.f32 %v3943, %v4011
        %v4013 = vpop.f32.mrf.mxu0
        %v4014 = vadd.f32 %v3945, %v4013
        %4015 = vmatmul.bf16.gmra.mxu0 %v1927
        %v4016 = vpop.f32.mrf.mxu0
        %v4017 = vadd.f32 %v3948, %v4016
        %v4018 = vpop.f32.mrf.mxu0
        %v4019 = vadd.f32 %v3950, %v4018
        %4020 = vmatmul.bf16.gmra.mxu0 %v1933
        %v4021 = vpop.f32.mrf.mxu0
        %v4022 = vadd.f32 %v3953, %v4021
        %v4023 = vpop.f32.mrf.mxu0
        %v4024 = vadd.f32 %v3955, %v4023
        %4025 = vmatmul.bf16.gmra.mxu0 %v1939
        %v4026 = vpop.f32.mrf.mxu0
        %v4027 = vadd.f32 %v3958, %v4026
        %v4028 = vpop.f32.mrf.mxu0
        %v4029 = vadd.f32 %v3960, %v4028
        %4030 = vmatmul.bf16.gmra.mxu0 %v1945
        %v4031 = vpop.f32.mrf.mxu0
        %v4032 = vadd.f32 %v3963, %v4031
        %v4033 = vpop.f32.mrf.mxu0
        %v4034 = vadd.f32 %v3965, %v4033
        %4035 = vmatmul.bf16.gmra.mxu0 %v1951
        %v4036 = vpop.f32.mrf.mxu0
        %v4037 = vadd.f32 %v3968, %v4036
        %v4038 = vpop.f32.mrf.mxu0
        %v4039 = vadd.f32 %v3970, %v4038
        %4040 = vmatmul.bf16.gmra.mxu0 %v1957
        %v4041 = vpop.f32.mrf.mxu0
        %v4042 = vadd.f32 %v3973, %v4041
        %v4043 = vpop.f32.mrf.mxu0
        %v4044 = vadd.f32 %v3975, %v4043
        %4045 = vdwg.mxu0
        %4046 = vmatpush.bf16.msra.mxu0 %v3407
        %4047 = vmatpush.bf16.msra.mxu0 %v3401
        %4048 = vmatpush.bf16.msra.mxu0 %v3395
        %4049 = vmatpush.bf16.msra.mxu0 %v3389
        %4050 = vmatpush.bf16.msra.mxu0 %v3383
        %4051 = vmatpush.bf16.msra.mxu0 %v3377
        %4052 = vmatpush.bf16.msra.mxu0 %v3371
        %4053 = vmatpush.bf16.msra.mxu0 %v3365
        %4054 = vmatmul.bf16.gmra.mxu0 %v1892
        %v4055 = vpop.f32.mrf.mxu0
        %v4056 = vadd.f32 %v3987, %v4055
        %v4057 = vpop.f32.mrf.mxu0
        %v4058 = vadd.f32 %v3989, %v4057
        %4059 = vmatmul.bf16.gmra.mxu0 %v1898
        %v4060 = vpop.f32.mrf.mxu0
        %v4061 = vadd.f32 %v3992, %v4060
        %v4062 = vpop.f32.mrf.mxu0
        %v4063 = vadd.f32 %v3994, %v4062
        %4064 = vmatmul.bf16.gmra.mxu0 %v1904
        %v4065 = vpop.f32.mrf.mxu0
        %v4066 = vadd.f32 %v3997, %v4065
        %v4067 = vpop.f32.mrf.mxu0
        %v4068 = vadd.f32 %v3999, %v4067
        %4069 = vmatmul.bf16.gmra.mxu0 %v1910
        %v4070 = vpop.f32.mrf.mxu0
        %v4071 = vadd.f32 %v4002, %v4070
        %v4072 = vpop.f32.mrf.mxu0
        %v4073 = vadd.f32 %v4004, %v4072
        %4074 = vmatmul.bf16.gmra.mxu0 %v1916
        %v4075 = vpop.f32.mrf.mxu0
        %v4076 = vadd.f32 %v4007, %v4075
        %v4077 = vpop.f32.mrf.mxu0
        %v4078 = vadd.f32 %v4009, %v4077
        %4079 = vmatmul.bf16.gmra.mxu0 %v1922
        %v4080 = vpop.f32.mrf.mxu0
        %v4081 = vadd.f32 %v4012, %v4080
        %v4082 = vpop.f32.mrf.mxu0
        %v4083 = vadd.f32 %v4014, %v4082
        %4084 = vmatmul.bf16.gmra.mxu0 %v1928
        %v4085 = vpop.f32.mrf.mxu0
        %v4086 = vadd.f32 %v4017, %v4085
        %v4087 = vpop.f32.mrf.mxu0
        %v4088 = vadd.f32 %v4019, %v4087
        %4089 = vmatmul.bf16.gmra.mxu0 %v1934
        %v4090 = vpop.f32.mrf.mxu0
        %v4091 = vadd.f32 %v4022, %v4090
        %v4092 = vpop.f32.mrf.mxu0
        %v4093 = vadd.f32 %v4024, %v4092
        %4094 = vmatmul.bf16.gmra.mxu0 %v1940
        %v4095 = vpop.f32.mrf.mxu0
        %v4096 = vadd.f32 %v4027, %v4095
        %v4097 = vpop.f32.mrf.mxu0
        %v4098 = vadd.f32 %v4029, %v4097
        %4099 = vmatmul.bf16.gmra.mxu0 %v1946
        %v4100 = vpop.f32.mrf.mxu0
        %v4101 = vadd.f32 %v4032, %v4100
        %v4102 = vpop.f32.mrf.mxu0
        %v4103 = vadd.f32 %v4034, %v4102
        %4104 = vmatmul.bf16.gmra.mxu0 %v1952
        %v4105 = vpop.f32.mrf.mxu0
        %v4106 = vadd.f32 %v4037, %v4105
        %v4107 = vpop.f32.mrf.mxu0
        %v4108 = vadd.f32 %v4039, %v4107
        %4109 = vmatmul.bf16.gmra.mxu0 %v1958
        %v4110 = vpop.f32.mrf.mxu0
        %v4111 = vadd.f32 %v4042, %v4110
        %v4112 = vpop.f32.mrf.mxu0
        %v4113 = vadd.f32 %v4044, %v4112
        %4114 = vdwg.mxu0
        %4115 = vmatpush.bf16.msra.mxu0 %v3168
        %4116 = vmatpush.bf16.msra.mxu0 %v3162
        %4117 = vmatpush.bf16.msra.mxu0 %v3156
        %4118 = vmatpush.bf16.msra.mxu0 %v3150
        %4119 = vmatpush.bf16.msra.mxu0 %v3144
        %4120 = vmatpush.bf16.msra.mxu0 %v3138
        %4121 = vmatpush.bf16.msra.mxu0 %v3132
        %4122 = vmatpush.bf16.msra.mxu0 %v3126
        %4123 = vmatmul.bf16.gmra.mxu0 %v1887
        %v4124 = vpop.f32.mrf.mxu0
        %v4125 = vadd.f32 %v2250, %v4124
        %v4126 = vpop.f32.mrf.mxu0
        %v4127 = vadd.f32 %v2250, %v4126
        %4128 = vmatmul.bf16.gmra.mxu0 %v1893
        %v4129 = vpop.f32.mrf.mxu0
        %v4130 = vadd.f32 %v2250, %v4129
        %v4131 = vpop.f32.mrf.mxu0
        %v4132 = vadd.f32 %v2250, %v4131
        %4133 = vmatmul.bf16.gmra.mxu0 %v1899
        %v4134 = vpop.f32.mrf.mxu0
        %v4135 = vadd.f32 %v2250, %v4134
        %v4136 = vpop.f32.mrf.mxu0
        %v4137 = vadd.f32 %v2250, %v4136
        %4138 = vmatmul.bf16.gmra.mxu0 %v1905
        %v4139 = vpop.f32.mrf.mxu0
        %v4140 = vadd.f32 %v2250, %v4139
        %v4141 = vpop.f32.mrf.mxu0
        %v4142 = vadd.f32 %v2250, %v4141
        %4143 = vmatmul.bf16.gmra.mxu0 %v1911
        %v4144 = vpop.f32.mrf.mxu0
        %v4145 = vadd.f32 %v2250, %v4144
        %v4146 = vpop.f32.mrf.mxu0
        %v4147 = vadd.f32 %v2250, %v4146
        %4148 = vmatmul.bf16.gmra.mxu0 %v1917
        %v4149 = vpop.f32.mrf.mxu0
        %v4150 = vadd.f32 %v2250, %v4149
        %v4151 = vpop.f32.mrf.mxu0
        %v4152 = vadd.f32 %v2250, %v4151
        %4153 = vmatmul.bf16.gmra.mxu0 %v1923
        %v4154 = vpop.f32.mrf.mxu0
        %v4155 = vadd.f32 %v2250, %v4154
        %v4156 = vpop.f32.mrf.mxu0
        %v4157 = vadd.f32 %v2250, %v4156
        %4158 = vmatmul.bf16.gmra.mxu0 %v1929
        %v4159 = vpop.f32.mrf.mxu0
        %v4160 = vadd.f32 %v2250, %v4159
        %v4161 = vpop.f32.mrf.mxu0
        %v4162 = vadd.f32 %v2250, %v4161
        %4163 = vmatmul.bf16.gmra.mxu0 %v1935
        %v4164 = vpop.f32.mrf.mxu0
        %v4165 = vadd.f32 %v2250, %v4164
        %v4166 = vpop.f32.mrf.mxu0
        %v4167 = vadd.f32 %v2250, %v4166
        %4168 = vmatmul.bf16.gmra.mxu0 %v1941
        %v4169 = vpop.f32.mrf.mxu0
        %v4170 = vadd.f32 %v2250, %v4169
        %v4171 = vpop.f32.mrf.mxu0
        %v4172 = vadd.f32 %v2250, %v4171
        %4173 = vmatmul.bf16.gmra.mxu0 %v1947
        %v4174 = vpop.f32.mrf.mxu0
        %v4175 = vadd.f32 %v2250, %v4174
        %v4176 = vpop.f32.mrf.mxu0
        %v4177 = vadd.f32 %v2250, %v4176
        %4178 = vmatmul.bf16.gmra.mxu0 %v1953
        %v4179 = vpop.f32.mrf.mxu0
        %v4180 = vadd.f32 %v2250, %v4179
        %v4181 = vpop.f32.mrf.mxu0
        %v4182 = vadd.f32 %v2250, %v4181
        %4183 = vdwg.mxu0
        %4184 = vmatpush.bf16.msra.mxu0 %v3216
        %4185 = vmatpush.bf16.msra.mxu0 %v3210
        %4186 = vmatpush.bf16.msra.mxu0 %v3204
        %4187 = vmatpush.bf16.msra.mxu0 %v3198
        %4188 = vmatpush.bf16.msra.mxu0 %v3192
        %4189 = vmatpush.bf16.msra.mxu0 %v3186
        %4190 = vmatpush.bf16.msra.mxu0 %v3180
        %4191 = vmatpush.bf16.msra.mxu0 %v3174
        %4192 = vmatmul.bf16.gmra.mxu0 %v1888
        %v4193 = vpop.f32.mrf.mxu0
        %v4194 = vadd.f32 %v4125, %v4193
        %v4195 = vpop.f32.mrf.mxu0
        %v4196 = vadd.f32 %v4127, %v4195
        %4197 = vmatmul.bf16.gmra.mxu0 %v1894
        %v4198 = vpop.f32.mrf.mxu0
        %v4199 = vadd.f32 %v4130, %v4198
        %v4200 = vpop.f32.mrf.mxu0
        %v4201 = vadd.f32 %v4132, %v4200
        %4202 = vmatmul.bf16.gmra.mxu0 %v1900
        %v4203 = vpop.f32.mrf.mxu0
        %v4204 = vadd.f32 %v4135, %v4203
        %v4205 = vpop.f32.mrf.mxu0
        %v4206 = vadd.f32 %v4137, %v4205
        %4207 = vmatmul.bf16.gmra.mxu0 %v1906
        %v4208 = vpop.f32.mrf.mxu0
        %v4209 = vadd.f32 %v4140, %v4208
        %v4210 = vpop.f32.mrf.mxu0
        %v4211 = vadd.f32 %v4142, %v4210
        %4212 = vmatmul.bf16.gmra.mxu0 %v1912
        %v4213 = vpop.f32.mrf.mxu0
        %v4214 = vadd.f32 %v4145, %v4213
        %v4215 = vpop.f32.mrf.mxu0
        %v4216 = vadd.f32 %v4147, %v4215
        %4217 = vmatmul.bf16.gmra.mxu0 %v1918
        %v4218 = vpop.f32.mrf.mxu0
        %v4219 = vadd.f32 %v4150, %v4218
        %v4220 = vpop.f32.mrf.mxu0
        %v4221 = vadd.f32 %v4152, %v4220
        %4222 = vmatmul.bf16.gmra.mxu0 %v1924
        %v4223 = vpop.f32.mrf.mxu0
        %v4224 = vadd.f32 %v4155, %v4223
        %v4225 = vpop.f32.mrf.mxu0
        %v4226 = vadd.f32 %v4157, %v4225
        %4227 = vmatmul.bf16.gmra.mxu0 %v1930
        %v4228 = vpop.f32.mrf.mxu0
        %v4229 = vadd.f32 %v4160, %v4228
        %v4230 = vpop.f32.mrf.mxu0
        %v4231 = vadd.f32 %v4162, %v4230
        %4232 = vmatmul.bf16.gmra.mxu0 %v1936
        %v4233 = vpop.f32.mrf.mxu0
        %v4234 = vadd.f32 %v4165, %v4233
        %v4235 = vpop.f32.mrf.mxu0
        %v4236 = vadd.f32 %v4167, %v4235
        %4237 = vmatmul.bf16.gmra.mxu0 %v1942
        %v4238 = vpop.f32.mrf.mxu0
        %v4239 = vadd.f32 %v4170, %v4238
        %v4240 = vpop.f32.mrf.mxu0
        %v4241 = vadd.f32 %v4172, %v4240
        %4242 = vmatmul.bf16.gmra.mxu0 %v1948
        %v4243 = vpop.f32.mrf.mxu0
        %v4244 = vadd.f32 %v4175, %v4243
        %v4245 = vpop.f32.mrf.mxu0
        %v4246 = vadd.f32 %v4177, %v4245
        %4247 = vmatmul.bf16.gmra.mxu0 %v1954
        %v4248 = vpop.f32.mrf.mxu0
        %v4249 = vadd.f32 %v4180, %v4248
        %v4250 = vpop.f32.mrf.mxu0
        %v4251 = vadd.f32 %v4182, %v4250
        %4252 = vdwg.mxu0
        %4253 = vmatpush.bf16.msra.mxu0 %v3264
        %4254 = vmatpush.bf16.msra.mxu0 %v3258
        %4255 = vmatpush.bf16.msra.mxu0 %v3252
        %4256 = vmatpush.bf16.msra.mxu0 %v3246
        %4257 = vmatpush.bf16.msra.mxu0 %v3240
        %4258 = vmatpush.bf16.msra.mxu0 %v3234
        %4259 = vmatpush.bf16.msra.mxu0 %v3228
        %4260 = vmatpush.bf16.msra.mxu0 %v3222
        %4261 = vmatmul.bf16.gmra.mxu0 %v1889
        %v4262 = vpop.f32.mrf.mxu0
        %v4263 = vadd.f32 %v4194, %v4262
        %v4264 = vpop.f32.mrf.mxu0
        %v4265 = vadd.f32 %v4196, %v4264
        %4266 = vmatmul.bf16.gmra.mxu0 %v1895
        %v4267 = vpop.f32.mrf.mxu0
        %v4268 = vadd.f32 %v4199, %v4267
        %v4269 = vpop.f32.mrf.mxu0
        %v4270 = vadd.f32 %v4201, %v4269
        %4271 = vmatmul.bf16.gmra.mxu0 %v1901
        %v4272 = vpop.f32.mrf.mxu0
        %v4273 = vadd.f32 %v4204, %v4272
        %v4274 = vpop.f32.mrf.mxu0
        %v4275 = vadd.f32 %v4206, %v4274
        %4276 = vmatmul.bf16.gmra.mxu0 %v1907
        %v4277 = vpop.f32.mrf.mxu0
        %v4278 = vadd.f32 %v4209, %v4277
        %v4279 = vpop.f32.mrf.mxu0
        %v4280 = vadd.f32 %v4211, %v4279
        %4281 = vmatmul.bf16.gmra.mxu0 %v1913
        %v4282 = vpop.f32.mrf.mxu0
        %v4283 = vadd.f32 %v4214, %v4282
        %v4284 = vpop.f32.mrf.mxu0
        %v4285 = vadd.f32 %v4216, %v4284
        %4286 = vmatmul.bf16.gmra.mxu0 %v1919
        %v4287 = vpop.f32.mrf.mxu0
        %v4288 = vadd.f32 %v4219, %v4287
        %v4289 = vpop.f32.mrf.mxu0
        %v4290 = vadd.f32 %v4221, %v4289
        %4291 = vmatmul.bf16.gmra.mxu0 %v1925
        %v4292 = vpop.f32.mrf.mxu0
        %v4293 = vadd.f32 %v4224, %v4292
        %v4294 = vpop.f32.mrf.mxu0
        %v4295 = vadd.f32 %v4226, %v4294
        %4296 = vmatmul.bf16.gmra.mxu0 %v1931
        %v4297 = vpop.f32.mrf.mxu0
        %v4298 = vadd.f32 %v4229, %v4297
        %v4299 = vpop.f32.mrf.mxu0
        %v4300 = vadd.f32 %v4231, %v4299
        %4301 = vmatmul.bf16.gmra.mxu0 %v1937
        %v4302 = vpop.f32.mrf.mxu0
        %v4303 = vadd.f32 %v4234, %v4302
        %v4304 = vpop.f32.mrf.mxu0
        %v4305 = vadd.f32 %v4236, %v4304
        %4306 = vmatmul.bf16.gmra.mxu0 %v1943
        %v4307 = vpop.f32.mrf.mxu0
        %v4308 = vadd.f32 %v4239, %v4307
        %v4309 = vpop.f32.mrf.mxu0
        %v4310 = vadd.f32 %v4241, %v4309
        %4311 = vmatmul.bf16.gmra.mxu0 %v1949
        %v4312 = vpop.f32.mrf.mxu0
        %v4313 = vadd.f32 %v4244, %v4312
        %v4314 = vpop.f32.mrf.mxu0
        %v4315 = vadd.f32 %v4246, %v4314
        %4316 = vmatmul.bf16.gmra.mxu0 %v1955
        %v4317 = vpop.f32.mrf.mxu0
        %v4318 = vadd.f32 %v4249, %v4317
        %v4319 = vpop.f32.mrf.mxu0
        %v4320 = vadd.f32 %v4251, %v4319
        %4321 = vdwg.mxu0
        %4322 = vmatpush.bf16.msra.mxu0 %v3312
        %4323 = vmatpush.bf16.msra.mxu0 %v3306
        %4324 = vmatpush.bf16.msra.mxu0 %v3300
        %4325 = vmatpush.bf16.msra.mxu0 %v3294
        %4326 = vmatpush.bf16.msra.mxu0 %v3288
        %4327 = vmatpush.bf16.msra.mxu0 %v3282
        %4328 = vmatpush.bf16.msra.mxu0 %v3276
        %4329 = vmatpush.bf16.msra.mxu0 %v3270
        %4330 = vmatmul.bf16.gmra.mxu0 %v1890
        %v4331 = vpop.f32.mrf.mxu0
        %v4332 = vadd.f32 %v4263, %v4331
        %v4333 = vpop.f32.mrf.mxu0
        %v4334 = vadd.f32 %v4265, %v4333
        %4335 = vmatmul.bf16.gmra.mxu0 %v1896
        %v4336 = vpop.f32.mrf.mxu0
        %v4337 = vadd.f32 %v4268, %v4336
        %v4338 = vpop.f32.mrf.mxu0
        %v4339 = vadd.f32 %v4270, %v4338
        %4340 = vmatmul.bf16.gmra.mxu0 %v1902
        %v4341 = vpop.f32.mrf.mxu0
        %v4342 = vadd.f32 %v4273, %v4341
        %v4343 = vpop.f32.mrf.mxu0
        %v4344 = vadd.f32 %v4275, %v4343
        %4345 = vmatmul.bf16.gmra.mxu0 %v1908
        %v4346 = vpop.f32.mrf.mxu0
        %v4347 = vadd.f32 %v4278, %v4346
        %v4348 = vpop.f32.mrf.mxu0
        %v4349 = vadd.f32 %v4280, %v4348
        %4350 = vmatmul.bf16.gmra.mxu0 %v1914
        %v4351 = vpop.f32.mrf.mxu0
        %v4352 = vadd.f32 %v4283, %v4351
        %v4353 = vpop.f32.mrf.mxu0
        %v4354 = vadd.f32 %v4285, %v4353
        %4355 = vmatmul.bf16.gmra.mxu0 %v1920
        %v4356 = vpop.f32.mrf.mxu0
        %v4357 = vadd.f32 %v4288, %v4356
        %v4358 = vpop.f32.mrf.mxu0
        %v4359 = vadd.f32 %v4290, %v4358
        %4360 = vmatmul.bf16.gmra.mxu0 %v1926
        %v4361 = vpop.f32.mrf.mxu0
        %v4362 = vadd.f32 %v4293, %v4361
        %v4363 = vpop.f32.mrf.mxu0
        %v4364 = vadd.f32 %v4295, %v4363
        %4365 = vmatmul.bf16.gmra.mxu0 %v1932
        %v4366 = vpop.f32.mrf.mxu0
        %v4367 = vadd.f32 %v4298, %v4366
        %v4368 = vpop.f32.mrf.mxu0
        %v4369 = vadd.f32 %v4300, %v4368
        %4370 = vmatmul.bf16.gmra.mxu0 %v1938
        %v4371 = vpop.f32.mrf.mxu0
        %v4372 = vadd.f32 %v4303, %v4371
        %v4373 = vpop.f32.mrf.mxu0
        %v4374 = vadd.f32 %v4305, %v4373
        %4375 = vmatmul.bf16.gmra.mxu0 %v1944
        %v4376 = vpop.f32.mrf.mxu0
        %v4377 = vadd.f32 %v4308, %v4376
        %v4378 = vpop.f32.mrf.mxu0
        %v4379 = vadd.f32 %v4310, %v4378
        %4380 = vmatmul.bf16.gmra.mxu0 %v1950
        %v4381 = vpop.f32.mrf.mxu0
        %v4382 = vadd.f32 %v4313, %v4381
        %v4383 = vpop.f32.mrf.mxu0
        %v4384 = vadd.f32 %v4315, %v4383
        %4385 = vmatmul.bf16.gmra.mxu0 %v1956
        %v4386 = vpop.f32.mrf.mxu0
        %v4387 = vadd.f32 %v4318, %v4386
        %v4388 = vpop.f32.mrf.mxu0
        %v4389 = vadd.f32 %v4320, %v4388
        %4390 = vdwg.mxu0
        %4391 = vmatpush.bf16.msra.mxu0 %v3360
        %4392 = vmatpush.bf16.msra.mxu0 %v3354
        %4393 = vmatpush.bf16.msra.mxu0 %v3348
        %4394 = vmatpush.bf16.msra.mxu0 %v3342
        %4395 = vmatpush.bf16.msra.mxu0 %v3336
        %4396 = vmatpush.bf16.msra.mxu0 %v3330
        %4397 = vmatpush.bf16.msra.mxu0 %v3324
        %4398 = vmatpush.bf16.msra.mxu0 %v3318
        %4399 = vmatmul.bf16.gmra.mxu0 %v1891
        %v4400 = vpop.f32.mrf.mxu0
        %v4401 = vadd.f32 %v4332, %v4400
        %v4402 = vpop.f32.mrf.mxu0
        %v4403 = vadd.f32 %v4334, %v4402
        %4404 = vmatmul.bf16.gmra.mxu0 %v1897
        %v4405 = vpop.f32.mrf.mxu0
        %v4406 = vadd.f32 %v4337, %v4405
        %v4407 = vpop.f32.mrf.mxu0
        %v4408 = vadd.f32 %v4339, %v4407
        %4409 = vmatmul.bf16.gmra.mxu0 %v1903
        %v4410 = vpop.f32.mrf.mxu0
        %v4411 = vadd.f32 %v4342, %v4410
        %v4412 = vpop.f32.mrf.mxu0
        %v4413 = vadd.f32 %v4344, %v4412
        %4414 = vmatmul.bf16.gmra.mxu0 %v1909
        %v4415 = vpop.f32.mrf.mxu0
        %v4416 = vadd.f32 %v4347, %v4415
        %v4417 = vpop.f32.mrf.mxu0
        %v4418 = vadd.f32 %v4349, %v4417
        %4419 = vmatmul.bf16.gmra.mxu0 %v1915
        %v4420 = vpop.f32.mrf.mxu0
        %v4421 = vadd.f32 %v4352, %v4420
        %v4422 = vpop.f32.mrf.mxu0
        %v4423 = vadd.f32 %v4354, %v4422
        %4424 = vmatmul.bf16.gmra.mxu0 %v1921
        %v4425 = vpop.f32.mrf.mxu0
        %v4426 = vadd.f32 %v4357, %v4425
        %v4427 = vpop.f32.mrf.mxu0
        %v4428 = vadd.f32 %v4359, %v4427
        %4429 = vmatmul.bf16.gmra.mxu0 %v1927
        %v4430 = vpop.f32.mrf.mxu0
        %v4431 = vadd.f32 %v4362, %v4430
        %v4432 = vpop.f32.mrf.mxu0
        %v4433 = vadd.f32 %v4364, %v4432
        %4434 = vmatmul.bf16.gmra.mxu0 %v1933
        %v4435 = vpop.f32.mrf.mxu0
        %v4436 = vadd.f32 %v4367, %v4435
        %v4437 = vpop.f32.mrf.mxu0
        %v4438 = vadd.f32 %v4369, %v4437
        %4439 = vmatmul.bf16.gmra.mxu0 %v1939
        %v4440 = vpop.f32.mrf.mxu0
        %v4441 = vadd.f32 %v4372, %v4440
        %v4442 = vpop.f32.mrf.mxu0
        %v4443 = vadd.f32 %v4374, %v4442
        %4444 = vmatmul.bf16.gmra.mxu0 %v1945
        %v4445 = vpop.f32.mrf.mxu0
        %v4446 = vadd.f32 %v4377, %v4445
        %v4447 = vpop.f32.mrf.mxu0
        %v4448 = vadd.f32 %v4379, %v4447
        %4449 = vmatmul.bf16.gmra.mxu0 %v1951
        %v4450 = vpop.f32.mrf.mxu0
        %v4451 = vadd.f32 %v4382, %v4450
        %v4452 = vpop.f32.mrf.mxu0
        %v4453 = vadd.f32 %v4384, %v4452
        %4454 = vmatmul.bf16.gmra.mxu0 %v1957
        %v4455 = vpop.f32.mrf.mxu0
        %v4456 = vadd.f32 %v4387, %v4455
        %v4457 = vpop.f32.mrf.mxu0
        %v4458 = vadd.f32 %v4389, %v4457
        %4459 = vdwg.mxu0
        %4460 = vmatpush.bf16.msra.mxu0 %v3408
        %4461 = vmatpush.bf16.msra.mxu0 %v3402
        %4462 = vmatpush.bf16.msra.mxu0 %v3396
        %4463 = vmatpush.bf16.msra.mxu0 %v3390
        %4464 = vmatpush.bf16.msra.mxu0 %v3384
        %4465 = vmatpush.bf16.msra.mxu0 %v3378
        %4466 = vmatpush.bf16.msra.mxu0 %v3372
        %4467 = vmatpush.bf16.msra.mxu0 %v3366
        %4468 = vmatmul.bf16.gmra.mxu0 %v1892
        %v4469 = vpop.f32.mrf.mxu0
        %v4470 = vadd.f32 %v4401, %v4469
        %v4471 = vpop.f32.mrf.mxu0
        %v4472 = vadd.f32 %v4403, %v4471
        %4473 = vmatmul.bf16.gmra.mxu0 %v1898
        %v4474 = vpop.f32.mrf.mxu0
        %v4475 = vadd.f32 %v4406, %v4474
        %v4476 = vpop.f32.mrf.mxu0
        %v4477 = vadd.f32 %v4408, %v4476
        %4478 = vmatmul.bf16.gmra.mxu0 %v1904
        %v4479 = vpop.f32.mrf.mxu0
        %v4480 = vadd.f32 %v4411, %v4479
        %v4481 = vpop.f32.mrf.mxu0
        %v4482 = vadd.f32 %v4413, %v4481
        %4483 = vmatmul.bf16.gmra.mxu0 %v1910
        %v4484 = vpop.f32.mrf.mxu0
        %v4485 = vadd.f32 %v4416, %v4484
        %v4486 = vpop.f32.mrf.mxu0
        %v4487 = vadd.f32 %v4418, %v4486
        %4488 = vmatmul.bf16.gmra.mxu0 %v1916
        %v4489 = vpop.f32.mrf.mxu0
        %v4490 = vadd.f32 %v4421, %v4489
        %v4491 = vpop.f32.mrf.mxu0
        %v4492 = vadd.f32 %v4423, %v4491
        %4493 = vmatmul.bf16.gmra.mxu0 %v1922
        %v4494 = vpop.f32.mrf.mxu0
        %v4495 = vadd.f32 %v4426, %v4494
        %v4496 = vpop.f32.mrf.mxu0
        %v4497 = vadd.f32 %v4428, %v4496
        %4498 = vmatmul.bf16.gmra.mxu0 %v1928
        %v4499 = vpop.f32.mrf.mxu0
        %v4500 = vadd.f32 %v4431, %v4499
        %v4501 = vpop.f32.mrf.mxu0
        %v4502 = vadd.f32 %v4433, %v4501
        %4503 = vmatmul.bf16.gmra.mxu0 %v1934
        %v4504 = vpop.f32.mrf.mxu0
        %v4505 = vadd.f32 %v4436, %v4504
        %v4506 = vpop.f32.mrf.mxu0
        %v4507 = vadd.f32 %v4438, %v4506
        %4508 = vmatmul.bf16.gmra.mxu0 %v1940
        %v4509 = vpop.f32.mrf.mxu0
        %v4510 = vadd.f32 %v4441, %v4509
        %v4511 = vpop.f32.mrf.mxu0
        %v4512 = vadd.f32 %v4443, %v4511
        %4513 = vmatmul.bf16.gmra.mxu0 %v1946
        %v4514 = vpop.f32.mrf.mxu0
        %v4515 = vadd.f32 %v4446, %v4514
        %v4516 = vpop.f32.mrf.mxu0
        %v4517 = vadd.f32 %v4448, %v4516
        %4518 = vmatmul.bf16.gmra.mxu0 %v1952
        %v4519 = vpop.f32.mrf.mxu0
        %v4520 = vadd.f32 %v4451, %v4519
        %v4521 = vpop.f32.mrf.mxu0
        %v4522 = vadd.f32 %v4453, %v4521
        %4523 = vmatmul.bf16.gmra.mxu0 %v1958
        %v4524 = vpop.f32.mrf.mxu0
        %v4525 = vadd.f32 %v4456, %v4524
        %v4526 = vpop.f32.mrf.mxu0
        %v4527 = vadd.f32 %v4458, %v4526
        %4528 = vdwg.mxu0
        %4529 = vmatpush.bf16.msra.mxu0 %v3169
        %4530 = vmatpush.bf16.msra.mxu0 %v3163
        %4531 = vmatpush.bf16.msra.mxu0 %v3157
        %4532 = vmatpush.bf16.msra.mxu0 %v3151
        %4533 = vmatpush.bf16.msra.mxu0 %v3145
        %4534 = vmatpush.bf16.msra.mxu0 %v3139
        %4535 = vmatpush.bf16.msra.mxu0 %v3133
        %4536 = vmatpush.bf16.msra.mxu0 %v3127
        %4537 = vmatmul.bf16.gmra.mxu0 %v1887
        %v4538 = vpop.f32.mrf.mxu0
        %v4539 = vadd.f32 %v2251, %v4538
        %v4540 = vpop.f32.mrf.mxu0
        %v4541 = vadd.f32 %v2251, %v4540
        %4542 = vmatmul.bf16.gmra.mxu0 %v1893
        %v4543 = vpop.f32.mrf.mxu0
        %v4544 = vadd.f32 %v2251, %v4543
        %v4545 = vpop.f32.mrf.mxu0
        %v4546 = vadd.f32 %v2251, %v4545
        %4547 = vmatmul.bf16.gmra.mxu0 %v1899
        %v4548 = vpop.f32.mrf.mxu0
        %v4549 = vadd.f32 %v2251, %v4548
        %v4550 = vpop.f32.mrf.mxu0
        %v4551 = vadd.f32 %v2251, %v4550
        %4552 = vmatmul.bf16.gmra.mxu0 %v1905
        %v4553 = vpop.f32.mrf.mxu0
        %v4554 = vadd.f32 %v2251, %v4553
        %v4555 = vpop.f32.mrf.mxu0
        %v4556 = vadd.f32 %v2251, %v4555
        %4557 = vmatmul.bf16.gmra.mxu0 %v1911
        %v4558 = vpop.f32.mrf.mxu0
        %v4559 = vadd.f32 %v2251, %v4558
        %v4560 = vpop.f32.mrf.mxu0
        %v4561 = vadd.f32 %v2251, %v4560
        %4562 = vmatmul.bf16.gmra.mxu0 %v1917
        %v4563 = vpop.f32.mrf.mxu0
        %v4564 = vadd.f32 %v2251, %v4563
        %v4565 = vpop.f32.mrf.mxu0
        %v4566 = vadd.f32 %v2251, %v4565
        %4567 = vmatmul.bf16.gmra.mxu0 %v1923
        %v4568 = vpop.f32.mrf.mxu0
        %v4569 = vadd.f32 %v2251, %v4568
        %v4570 = vpop.f32.mrf.mxu0
        %v4571 = vadd.f32 %v2251, %v4570
        %4572 = vmatmul.bf16.gmra.mxu0 %v1929
        %v4573 = vpop.f32.mrf.mxu0
        %v4574 = vadd.f32 %v2251, %v4573
        %v4575 = vpop.f32.mrf.mxu0
        %v4576 = vadd.f32 %v2251, %v4575
        %4577 = vmatmul.bf16.gmra.mxu0 %v1935
        %v4578 = vpop.f32.mrf.mxu0
        %v4579 = vadd.f32 %v2251, %v4578
        %v4580 = vpop.f32.mrf.mxu0
        %v4581 = vadd.f32 %v2251, %v4580
        %4582 = vmatmul.bf16.gmra.mxu0 %v1941
        %v4583 = vpop.f32.mrf.mxu0
        %v4584 = vadd.f32 %v2251, %v4583
        %v4585 = vpop.f32.mrf.mxu0
        %v4586 = vadd.f32 %v2251, %v4585
        %4587 = vmatmul.bf16.gmra.mxu0 %v1947
        %v4588 = vpop.f32.mrf.mxu0
        %v4589 = vadd.f32 %v2251, %v4588
        %v4590 = vpop.f32.mrf.mxu0
        %v4591 = vadd.f32 %v2251, %v4590
        %4592 = vmatmul.bf16.gmra.mxu0 %v1953
        %v4593 = vpop.f32.mrf.mxu0
        %v4594 = vadd.f32 %v2251, %v4593
        %v4595 = vpop.f32.mrf.mxu0
        %v4596 = vadd.f32 %v2251, %v4595
        %4597 = vdwg.mxu0
        %4598 = vmatpush.bf16.msra.mxu0 %v3217
        %4599 = vmatpush.bf16.msra.mxu0 %v3211
        %4600 = vmatpush.bf16.msra.mxu0 %v3205
        %4601 = vmatpush.bf16.msra.mxu0 %v3199
        %4602 = vmatpush.bf16.msra.mxu0 %v3193
        %4603 = vmatpush.bf16.msra.mxu0 %v3187
        %4604 = vmatpush.bf16.msra.mxu0 %v3181
        %4605 = vmatpush.bf16.msra.mxu0 %v3175
        %4606 = vmatmul.bf16.gmra.mxu0 %v1888
        %v4607 = vpop.f32.mrf.mxu0
        %v4608 = vadd.f32 %v4539, %v4607
        %v4609 = vpop.f32.mrf.mxu0
        %v4610 = vadd.f32 %v4541, %v4609
        %4611 = vmatmul.bf16.gmra.mxu0 %v1894
        %v4612 = vpop.f32.mrf.mxu0
        %v4613 = vadd.f32 %v4544, %v4612
        %v4614 = vpop.f32.mrf.mxu0
        %v4615 = vadd.f32 %v4546, %v4614
        %4616 = vmatmul.bf16.gmra.mxu0 %v1900
        %v4617 = vpop.f32.mrf.mxu0
        %v4618 = vadd.f32 %v4549, %v4617
        %v4619 = vpop.f32.mrf.mxu0
        %v4620 = vadd.f32 %v4551, %v4619
        %4621 = vmatmul.bf16.gmra.mxu0 %v1906
        %v4622 = vpop.f32.mrf.mxu0
        %v4623 = vadd.f32 %v4554, %v4622
        %v4624 = vpop.f32.mrf.mxu0
        %v4625 = vadd.f32 %v4556, %v4624
        %4626 = vmatmul.bf16.gmra.mxu0 %v1912
        %v4627 = vpop.f32.mrf.mxu0
        %v4628 = vadd.f32 %v4559, %v4627
        %v4629 = vpop.f32.mrf.mxu0
        %v4630 = vadd.f32 %v4561, %v4629
        %4631 = vmatmul.bf16.gmra.mxu0 %v1918
        %v4632 = vpop.f32.mrf.mxu0
        %v4633 = vadd.f32 %v4564, %v4632
        %v4634 = vpop.f32.mrf.mxu0
        %v4635 = vadd.f32 %v4566, %v4634
        %4636 = vmatmul.bf16.gmra.mxu0 %v1924
        %v4637 = vpop.f32.mrf.mxu0
        %v4638 = vadd.f32 %v4569, %v4637
        %v4639 = vpop.f32.mrf.mxu0
        %v4640 = vadd.f32 %v4571, %v4639
        %4641 = vmatmul.bf16.gmra.mxu0 %v1930
        %v4642 = vpop.f32.mrf.mxu0
        %v4643 = vadd.f32 %v4574, %v4642
        %v4644 = vpop.f32.mrf.mxu0
        %v4645 = vadd.f32 %v4576, %v4644
        %4646 = vmatmul.bf16.gmra.mxu0 %v1936
        %v4647 = vpop.f32.mrf.mxu0
        %v4648 = vadd.f32 %v4579, %v4647
        %v4649 = vpop.f32.mrf.mxu0
        %v4650 = vadd.f32 %v4581, %v4649
        %4651 = vmatmul.bf16.gmra.mxu0 %v1942
        %v4652 = vpop.f32.mrf.mxu0
        %v4653 = vadd.f32 %v4584, %v4652
        %v4654 = vpop.f32.mrf.mxu0
        %v4655 = vadd.f32 %v4586, %v4654
        %4656 = vmatmul.bf16.gmra.mxu0 %v1948
        %v4657 = vpop.f32.mrf.mxu0
        %v4658 = vadd.f32 %v4589, %v4657
        %v4659 = vpop.f32.mrf.mxu0
        %v4660 = vadd.f32 %v4591, %v4659
        %4661 = vmatmul.bf16.gmra.mxu0 %v1954
        %v4662 = vpop.f32.mrf.mxu0
        %v4663 = vadd.f32 %v4594, %v4662
        %v4664 = vpop.f32.mrf.mxu0
        %v4665 = vadd.f32 %v4596, %v4664
        %4666 = vdwg.mxu0
        %4667 = vmatpush.bf16.msra.mxu0 %v3265
        %4668 = vmatpush.bf16.msra.mxu0 %v3259
        %4669 = vmatpush.bf16.msra.mxu0 %v3253
        %4670 = vmatpush.bf16.msra.mxu0 %v3247
        %4671 = vmatpush.bf16.msra.mxu0 %v3241
        %4672 = vmatpush.bf16.msra.mxu0 %v3235
        %4673 = vmatpush.bf16.msra.mxu0 %v3229
        %4674 = vmatpush.bf16.msra.mxu0 %v3223
        %4675 = vmatmul.bf16.gmra.mxu0 %v1889
        %v4676 = vpop.f32.mrf.mxu0
        %v4677 = vadd.f32 %v4608, %v4676
        %v4678 = vpop.f32.mrf.mxu0
        %v4679 = vadd.f32 %v4610, %v4678
        %4680 = vmatmul.bf16.gmra.mxu0 %v1895
        %v4681 = vpop.f32.mrf.mxu0
        %v4682 = vadd.f32 %v4613, %v4681
        %v4683 = vpop.f32.mrf.mxu0
        %v4684 = vadd.f32 %v4615, %v4683
        %4685 = vmatmul.bf16.gmra.mxu0 %v1901
        %v4686 = vpop.f32.mrf.mxu0
        %v4687 = vadd.f32 %v4618, %v4686
        %v4688 = vpop.f32.mrf.mxu0
        %v4689 = vadd.f32 %v4620, %v4688
        %4690 = vmatmul.bf16.gmra.mxu0 %v1907
        %v4691 = vpop.f32.mrf.mxu0
        %v4692 = vadd.f32 %v4623, %v4691
        %v4693 = vpop.f32.mrf.mxu0
        %v4694 = vadd.f32 %v4625, %v4693
        %4695 = vmatmul.bf16.gmra.mxu0 %v1913
        %v4696 = vpop.f32.mrf.mxu0
        %v4697 = vadd.f32 %v4628, %v4696
        %v4698 = vpop.f32.mrf.mxu0
        %v4699 = vadd.f32 %v4630, %v4698
        %4700 = vmatmul.bf16.gmra.mxu0 %v1919
        %v4701 = vpop.f32.mrf.mxu0
        %v4702 = vadd.f32 %v4633, %v4701
        %v4703 = vpop.f32.mrf.mxu0
        %v4704 = vadd.f32 %v4635, %v4703
        %4705 = vmatmul.bf16.gmra.mxu0 %v1925
        %v4706 = vpop.f32.mrf.mxu0
        %v4707 = vadd.f32 %v4638, %v4706
        %v4708 = vpop.f32.mrf.mxu0
        %v4709 = vadd.f32 %v4640, %v4708
        %4710 = vmatmul.bf16.gmra.mxu0 %v1931
        %v4711 = vpop.f32.mrf.mxu0
        %v4712 = vadd.f32 %v4643, %v4711
        %v4713 = vpop.f32.mrf.mxu0
        %v4714 = vadd.f32 %v4645, %v4713
        %4715 = vmatmul.bf16.gmra.mxu0 %v1937
        %v4716 = vpop.f32.mrf.mxu0
        %v4717 = vadd.f32 %v4648, %v4716
        %v4718 = vpop.f32.mrf.mxu0
        %v4719 = vadd.f32 %v4650, %v4718
        %4720 = vmatmul.bf16.gmra.mxu0 %v1943
        %v4721 = vpop.f32.mrf.mxu0
        %v4722 = vadd.f32 %v4653, %v4721
        %v4723 = vpop.f32.mrf.mxu0
        %v4724 = vadd.f32 %v4655, %v4723
        %4725 = vmatmul.bf16.gmra.mxu0 %v1949
        %v4726 = vpop.f32.mrf.mxu0
        %v4727 = vadd.f32 %v4658, %v4726
        %v4728 = vpop.f32.mrf.mxu0
        %v4729 = vadd.f32 %v4660, %v4728
        %4730 = vmatmul.bf16.gmra.mxu0 %v1955
        %v4731 = vpop.f32.mrf.mxu0
        %v4732 = vadd.f32 %v4663, %v4731
        %v4733 = vpop.f32.mrf.mxu0
        %v4734 = vadd.f32 %v4665, %v4733
        %4735 = vdwg.mxu0
        %4736 = vmatpush.bf16.msra.mxu0 %v3313
        %4737 = vmatpush.bf16.msra.mxu0 %v3307
        %4738 = vmatpush.bf16.msra.mxu0 %v3301
        %4739 = vmatpush.bf16.msra.mxu0 %v3295
        %4740 = vmatpush.bf16.msra.mxu0 %v3289
        %4741 = vmatpush.bf16.msra.mxu0 %v3283
        %4742 = vmatpush.bf16.msra.mxu0 %v3277
        %4743 = vmatpush.bf16.msra.mxu0 %v3271
        %4744 = vmatmul.bf16.gmra.mxu0 %v1890
        %v4745 = vpop.f32.mrf.mxu0
        %v4746 = vadd.f32 %v4677, %v4745
        %v4747 = vpop.f32.mrf.mxu0
        %v4748 = vadd.f32 %v4679, %v4747
        %4749 = vmatmul.bf16.gmra.mxu0 %v1896
        %v4750 = vpop.f32.mrf.mxu0
        %v4751 = vadd.f32 %v4682, %v4750
        %v4752 = vpop.f32.mrf.mxu0
        %v4753 = vadd.f32 %v4684, %v4752
        %4754 = vmatmul.bf16.gmra.mxu0 %v1902
        %v4755 = vpop.f32.mrf.mxu0
        %v4756 = vadd.f32 %v4687, %v4755
        %v4757 = vpop.f32.mrf.mxu0
        %v4758 = vadd.f32 %v4689, %v4757
        %4759 = vmatmul.bf16.gmra.mxu0 %v1908
        %v4760 = vpop.f32.mrf.mxu0
        %v4761 = vadd.f32 %v4692, %v4760
        %v4762 = vpop.f32.mrf.mxu0
        %v4763 = vadd.f32 %v4694, %v4762
        %4764 = vmatmul.bf16.gmra.mxu0 %v1914
        %v4765 = vpop.f32.mrf.mxu0
        %v4766 = vadd.f32 %v4697, %v4765
        %v4767 = vpop.f32.mrf.mxu0
        %v4768 = vadd.f32 %v4699, %v4767
        %4769 = vmatmul.bf16.gmra.mxu0 %v1920
        %v4770 = vpop.f32.mrf.mxu0
        %v4771 = vadd.f32 %v4702, %v4770
        %v4772 = vpop.f32.mrf.mxu0
        %v4773 = vadd.f32 %v4704, %v4772
        %4774 = vmatmul.bf16.gmra.mxu0 %v1926
        %v4775 = vpop.f32.mrf.mxu0
        %v4776 = vadd.f32 %v4707, %v4775
        %v4777 = vpop.f32.mrf.mxu0
        %v4778 = vadd.f32 %v4709, %v4777
        %4779 = vmatmul.bf16.gmra.mxu0 %v1932
        %v4780 = vpop.f32.mrf.mxu0
        %v4781 = vadd.f32 %v4712, %v4780
        %v4782 = vpop.f32.mrf.mxu0
        %v4783 = vadd.f32 %v4714, %v4782
        %4784 = vmatmul.bf16.gmra.mxu0 %v1938
        %v4785 = vpop.f32.mrf.mxu0
        %v4786 = vadd.f32 %v4717, %v4785
        %v4787 = vpop.f32.mrf.mxu0
        %v4788 = vadd.f32 %v4719, %v4787
        %4789 = vmatmul.bf16.gmra.mxu0 %v1944
        %v4790 = vpop.f32.mrf.mxu0
        %v4791 = vadd.f32 %v4722, %v4790
        %v4792 = vpop.f32.mrf.mxu0
        %v4793 = vadd.f32 %v4724, %v4792
        %4794 = vmatmul.bf16.gmra.mxu0 %v1950
        %v4795 = vpop.f32.mrf.mxu0
        %v4796 = vadd.f32 %v4727, %v4795
        %v4797 = vpop.f32.mrf.mxu0
        %v4798 = vadd.f32 %v4729, %v4797
        %4799 = vmatmul.bf16.gmra.mxu0 %v1956
        %v4800 = vpop.f32.mrf.mxu0
        %v4801 = vadd.f32 %v4732, %v4800
        %v4802 = vpop.f32.mrf.mxu0
        %v4803 = vadd.f32 %v4734, %v4802
        %4804 = vdwg.mxu0
        %4805 = vmatpush.bf16.msra.mxu0 %v3361
        %4806 = vmatpush.bf16.msra.mxu0 %v3355
        %4807 = vmatpush.bf16.msra.mxu0 %v3349
        %4808 = vmatpush.bf16.msra.mxu0 %v3343
        %4809 = vmatpush.bf16.msra.mxu0 %v3337
        %4810 = vmatpush.bf16.msra.mxu0 %v3331
        %4811 = vmatpush.bf16.msra.mxu0 %v3325
        %4812 = vmatpush.bf16.msra.mxu0 %v3319
        %4813 = vmatmul.bf16.gmra.mxu0 %v1891
        %v4814 = vpop.f32.mrf.mxu0
        %v4815 = vadd.f32 %v4746, %v4814
        %v4816 = vpop.f32.mrf.mxu0
        %v4817 = vadd.f32 %v4748, %v4816
        %4818 = vmatmul.bf16.gmra.mxu0 %v1897
        %v4819 = vpop.f32.mrf.mxu0
        %v4820 = vadd.f32 %v4751, %v4819
        %v4821 = vpop.f32.mrf.mxu0
        %v4822 = vadd.f32 %v4753, %v4821
        %4823 = vmatmul.bf16.gmra.mxu0 %v1903
        %v4824 = vpop.f32.mrf.mxu0
        %v4825 = vadd.f32 %v4756, %v4824
        %v4826 = vpop.f32.mrf.mxu0
        %v4827 = vadd.f32 %v4758, %v4826
        %4828 = vmatmul.bf16.gmra.mxu0 %v1909
        %v4829 = vpop.f32.mrf.mxu0
        %v4830 = vadd.f32 %v4761, %v4829
        %v4831 = vpop.f32.mrf.mxu0
        %v4832 = vadd.f32 %v4763, %v4831
        %4833 = vmatmul.bf16.gmra.mxu0 %v1915
        %v4834 = vpop.f32.mrf.mxu0
        %v4835 = vadd.f32 %v4766, %v4834
        %v4836 = vpop.f32.mrf.mxu0
        %v4837 = vadd.f32 %v4768, %v4836
        %4838 = vmatmul.bf16.gmra.mxu0 %v1921
        %v4839 = vpop.f32.mrf.mxu0
        %v4840 = vadd.f32 %v4771, %v4839
        %v4841 = vpop.f32.mrf.mxu0
        %v4842 = vadd.f32 %v4773, %v4841
        %4843 = vmatmul.bf16.gmra.mxu0 %v1927
        %v4844 = vpop.f32.mrf.mxu0
        %v4845 = vadd.f32 %v4776, %v4844
        %v4846 = vpop.f32.mrf.mxu0
        %v4847 = vadd.f32 %v4778, %v4846
        %4848 = vmatmul.bf16.gmra.mxu0 %v1933
        %v4849 = vpop.f32.mrf.mxu0
        %v4850 = vadd.f32 %v4781, %v4849
        %v4851 = vpop.f32.mrf.mxu0
        %v4852 = vadd.f32 %v4783, %v4851
        %4853 = vmatmul.bf16.gmra.mxu0 %v1939
        %v4854 = vpop.f32.mrf.mxu0
        %v4855 = vadd.f32 %v4786, %v4854
        %v4856 = vpop.f32.mrf.mxu0
        %v4857 = vadd.f32 %v4788, %v4856
        %4858 = vmatmul.bf16.gmra.mxu0 %v1945
        %v4859 = vpop.f32.mrf.mxu0
        %v4860 = vadd.f32 %v4791, %v4859
        %v4861 = vpop.f32.mrf.mxu0
        %v4862 = vadd.f32 %v4793, %v4861
        %4863 = vmatmul.bf16.gmra.mxu0 %v1951
        %v4864 = vpop.f32.mrf.mxu0
        %v4865 = vadd.f32 %v4796, %v4864
        %v4866 = vpop.f32.mrf.mxu0
        %v4867 = vadd.f32 %v4798, %v4866
        %4868 = vmatmul.bf16.gmra.mxu0 %v1957
        %v4869 = vpop.f32.mrf.mxu0
        %v4870 = vadd.f32 %v4801, %v4869
        %v4871 = vpop.f32.mrf.mxu0
        %v4872 = vadd.f32 %v4803, %v4871
        %4873 = vdwg.mxu0
        %4874 = vmatpush.bf16.msra.mxu0 %v3409
        %4875 = vmatpush.bf16.msra.mxu0 %v3403
        %4876 = vmatpush.bf16.msra.mxu0 %v3397
        %4877 = vmatpush.bf16.msra.mxu0 %v3391
        %4878 = vmatpush.bf16.msra.mxu0 %v3385
        %4879 = vmatpush.bf16.msra.mxu0 %v3379
        %4880 = vmatpush.bf16.msra.mxu0 %v3373
        %4881 = vmatpush.bf16.msra.mxu0 %v3367
        %4882 = vmatmul.bf16.gmra.mxu0 %v1892
        %v4883 = vpop.f32.mrf.mxu0
        %v4884 = vadd.f32 %v4815, %v4883
        %v4885 = vpop.f32.mrf.mxu0
        %v4886 = vadd.f32 %v4817, %v4885
        %4887 = vmatmul.bf16.gmra.mxu0 %v1898
        %v4888 = vpop.f32.mrf.mxu0
        %v4889 = vadd.f32 %v4820, %v4888
        %v4890 = vpop.f32.mrf.mxu0
        %v4891 = vadd.f32 %v4822, %v4890
        %4892 = vmatmul.bf16.gmra.mxu0 %v1904
        %v4893 = vpop.f32.mrf.mxu0
        %v4894 = vadd.f32 %v4825, %v4893
        %v4895 = vpop.f32.mrf.mxu0
        %v4896 = vadd.f32 %v4827, %v4895
        %4897 = vmatmul.bf16.gmra.mxu0 %v1910
        %v4898 = vpop.f32.mrf.mxu0
        %v4899 = vadd.f32 %v4830, %v4898
        %v4900 = vpop.f32.mrf.mxu0
        %v4901 = vadd.f32 %v4832, %v4900
        %4902 = vmatmul.bf16.gmra.mxu0 %v1916
        %v4903 = vpop.f32.mrf.mxu0
        %v4904 = vadd.f32 %v4835, %v4903
        %v4905 = vpop.f32.mrf.mxu0
        %v4906 = vadd.f32 %v4837, %v4905
        %4907 = vmatmul.bf16.gmra.mxu0 %v1922
        %v4908 = vpop.f32.mrf.mxu0
        %v4909 = vadd.f32 %v4840, %v4908
        %v4910 = vpop.f32.mrf.mxu0
        %v4911 = vadd.f32 %v4842, %v4910
        %4912 = vmatmul.bf16.gmra.mxu0 %v1928
        %v4913 = vpop.f32.mrf.mxu0
        %v4914 = vadd.f32 %v4845, %v4913
        %v4915 = vpop.f32.mrf.mxu0
        %v4916 = vadd.f32 %v4847, %v4915
        %4917 = vmatmul.bf16.gmra.mxu0 %v1934
        %v4918 = vpop.f32.mrf.mxu0
        %v4919 = vadd.f32 %v4850, %v4918
        %v4920 = vpop.f32.mrf.mxu0
        %v4921 = vadd.f32 %v4852, %v4920
        %4922 = vmatmul.bf16.gmra.mxu0 %v1940
        %v4923 = vpop.f32.mrf.mxu0
        %v4924 = vadd.f32 %v4855, %v4923
        %v4925 = vpop.f32.mrf.mxu0
        %v4926 = vadd.f32 %v4857, %v4925
        %4927 = vmatmul.bf16.gmra.mxu0 %v1946
        %v4928 = vpop.f32.mrf.mxu0
        %v4929 = vadd.f32 %v4860, %v4928
        %v4930 = vpop.f32.mrf.mxu0
        %v4931 = vadd.f32 %v4862, %v4930
        %4932 = vmatmul.bf16.gmra.mxu0 %v1952
        %v4933 = vpop.f32.mrf.mxu0
        %v4934 = vadd.f32 %v4865, %v4933
        %v4935 = vpop.f32.mrf.mxu0
        %v4936 = vadd.f32 %v4867, %v4935
        %4937 = vmatmul.bf16.gmra.mxu0 %v1958
        %v4938 = vpop.f32.mrf.mxu0
        %v4939 = vadd.f32 %v4870, %v4938
        %v4940 = vpop.f32.mrf.mxu0
        %v4941 = vadd.f32 %v4872, %v4940
        %4942 = vdwg.mxu0
        %4943 = vmatpush.bf16.msra.mxu0 %v3170
        %4944 = vmatpush.bf16.msra.mxu0 %v3164
        %4945 = vmatpush.bf16.msra.mxu0 %v3158
        %4946 = vmatpush.bf16.msra.mxu0 %v3152
        %4947 = vmatpush.bf16.msra.mxu0 %v3146
        %4948 = vmatpush.bf16.msra.mxu0 %v3140
        %4949 = vmatpush.bf16.msra.mxu0 %v3134
        %4950 = vmatpush.bf16.msra.mxu0 %v3128
        %4951 = vmatmul.bf16.gmra.mxu0 %v1887
        %v4952 = vpop.f32.mrf.mxu0
        %v4953 = vadd.f32 %v2252, %v4952
        %v4954 = vpop.f32.mrf.mxu0
        %v4955 = vadd.f32 %v2252, %v4954
        %4956 = vmatmul.bf16.gmra.mxu0 %v1893
        %v4957 = vpop.f32.mrf.mxu0
        %v4958 = vadd.f32 %v2252, %v4957
        %v4959 = vpop.f32.mrf.mxu0
        %v4960 = vadd.f32 %v2252, %v4959
        %4961 = vmatmul.bf16.gmra.mxu0 %v1899
        %v4962 = vpop.f32.mrf.mxu0
        %v4963 = vadd.f32 %v2252, %v4962
        %v4964 = vpop.f32.mrf.mxu0
        %v4965 = vadd.f32 %v2252, %v4964
        %4966 = vmatmul.bf16.gmra.mxu0 %v1905
        %v4967 = vpop.f32.mrf.mxu0
        %v4968 = vadd.f32 %v2252, %v4967
        %v4969 = vpop.f32.mrf.mxu0
        %v4970 = vadd.f32 %v2252, %v4969
        %4971 = vmatmul.bf16.gmra.mxu0 %v1911
        %v4972 = vpop.f32.mrf.mxu0
        %v4973 = vadd.f32 %v2252, %v4972
        %v4974 = vpop.f32.mrf.mxu0
        %v4975 = vadd.f32 %v2252, %v4974
        %4976 = vmatmul.bf16.gmra.mxu0 %v1917
        %v4977 = vpop.f32.mrf.mxu0
        %v4978 = vadd.f32 %v2252, %v4977
        %v4979 = vpop.f32.mrf.mxu0
        %v4980 = vadd.f32 %v2252, %v4979
        %4981 = vmatmul.bf16.gmra.mxu0 %v1923
        %v4982 = vpop.f32.mrf.mxu0
        %v4983 = vadd.f32 %v2252, %v4982
        %v4984 = vpop.f32.mrf.mxu0
        %v4985 = vadd.f32 %v2252, %v4984
        %4986 = vmatmul.bf16.gmra.mxu0 %v1929
        %v4987 = vpop.f32.mrf.mxu0
        %v4988 = vadd.f32 %v2252, %v4987
        %v4989 = vpop.f32.mrf.mxu0
        %v4990 = vadd.f32 %v2252, %v4989
        %4991 = vmatmul.bf16.gmra.mxu0 %v1935
        %v4992 = vpop.f32.mrf.mxu0
        %v4993 = vadd.f32 %v2252, %v4992
        %v4994 = vpop.f32.mrf.mxu0
        %v4995 = vadd.f32 %v2252, %v4994
        %4996 = vmatmul.bf16.gmra.mxu0 %v1941
        %v4997 = vpop.f32.mrf.mxu0
        %v4998 = vadd.f32 %v2252, %v4997
        %v4999 = vpop.f32.mrf.mxu0
        %v5000 = vadd.f32 %v2252, %v4999
        %5001 = vmatmul.bf16.gmra.mxu0 %v1947
        %v5002 = vpop.f32.mrf.mxu0
        %v5003 = vadd.f32 %v2252, %v5002
        %v5004 = vpop.f32.mrf.mxu0
        %v5005 = vadd.f32 %v2252, %v5004
        %5006 = vmatmul.bf16.gmra.mxu0 %v1953
        %v5007 = vpop.f32.mrf.mxu0
        %v5008 = vadd.f32 %v2252, %v5007
        %v5009 = vpop.f32.mrf.mxu0
        %v5010 = vadd.f32 %v2252, %v5009
        %5011 = vdwg.mxu0
        %5012 = vmatpush.bf16.msra.mxu0 %v3218
        %5013 = vmatpush.bf16.msra.mxu0 %v3212
        %5014 = vmatpush.bf16.msra.mxu0 %v3206
        %5015 = vmatpush.bf16.msra.mxu0 %v3200
        %5016 = vmatpush.bf16.msra.mxu0 %v3194
        %5017 = vmatpush.bf16.msra.mxu0 %v3188
        %5018 = vmatpush.bf16.msra.mxu0 %v3182
        %5019 = vmatpush.bf16.msra.mxu0 %v3176
        %5020 = vmatmul.bf16.gmra.mxu0 %v1888
        %v5021 = vpop.f32.mrf.mxu0
        %v5022 = vadd.f32 %v4953, %v5021
        %v5023 = vpop.f32.mrf.mxu0
        %v5024 = vadd.f32 %v4955, %v5023
        %5025 = vmatmul.bf16.gmra.mxu0 %v1894
        %v5026 = vpop.f32.mrf.mxu0
        %v5027 = vadd.f32 %v4958, %v5026
        %v5028 = vpop.f32.mrf.mxu0
        %v5029 = vadd.f32 %v4960, %v5028
        %5030 = vmatmul.bf16.gmra.mxu0 %v1900
        %v5031 = vpop.f32.mrf.mxu0
        %v5032 = vadd.f32 %v4963, %v5031
        %v5033 = vpop.f32.mrf.mxu0
        %v5034 = vadd.f32 %v4965, %v5033
        %5035 = vmatmul.bf16.gmra.mxu0 %v1906
        %v5036 = vpop.f32.mrf.mxu0
        %v5037 = vadd.f32 %v4968, %v5036
        %v5038 = vpop.f32.mrf.mxu0
        %v5039 = vadd.f32 %v4970, %v5038
        %5040 = vmatmul.bf16.gmra.mxu0 %v1912
        %v5041 = vpop.f32.mrf.mxu0
        %v5042 = vadd.f32 %v4973, %v5041
        %v5043 = vpop.f32.mrf.mxu0
        %v5044 = vadd.f32 %v4975, %v5043
        %5045 = vmatmul.bf16.gmra.mxu0 %v1918
        %v5046 = vpop.f32.mrf.mxu0
        %v5047 = vadd.f32 %v4978, %v5046
        %v5048 = vpop.f32.mrf.mxu0
        %v5049 = vadd.f32 %v4980, %v5048
        %5050 = vmatmul.bf16.gmra.mxu0 %v1924
        %v5051 = vpop.f32.mrf.mxu0
        %v5052 = vadd.f32 %v4983, %v5051
        %v5053 = vpop.f32.mrf.mxu0
        %v5054 = vadd.f32 %v4985, %v5053
        %5055 = vmatmul.bf16.gmra.mxu0 %v1930
        %v5056 = vpop.f32.mrf.mxu0
        %v5057 = vadd.f32 %v4988, %v5056
        %v5058 = vpop.f32.mrf.mxu0
        %v5059 = vadd.f32 %v4990, %v5058
        %5060 = vmatmul.bf16.gmra.mxu0 %v1936
        %v5061 = vpop.f32.mrf.mxu0
        %v5062 = vadd.f32 %v4993, %v5061
        %v5063 = vpop.f32.mrf.mxu0
        %v5064 = vadd.f32 %v4995, %v5063
        %5065 = vmatmul.bf16.gmra.mxu0 %v1942
        %v5066 = vpop.f32.mrf.mxu0
        %v5067 = vadd.f32 %v4998, %v5066
        %v5068 = vpop.f32.mrf.mxu0
        %v5069 = vadd.f32 %v5000, %v5068
        %5070 = vmatmul.bf16.gmra.mxu0 %v1948
        %v5071 = vpop.f32.mrf.mxu0
        %v5072 = vadd.f32 %v5003, %v5071
        %v5073 = vpop.f32.mrf.mxu0
        %v5074 = vadd.f32 %v5005, %v5073
        %5075 = vmatmul.bf16.gmra.mxu0 %v1954
        %v5076 = vpop.f32.mrf.mxu0
        %v5077 = vadd.f32 %v5008, %v5076
        %v5078 = vpop.f32.mrf.mxu0
        %v5079 = vadd.f32 %v5010, %v5078
        %5080 = vdwg.mxu0
        %5081 = vmatpush.bf16.msra.mxu0 %v3266
        %5082 = vmatpush.bf16.msra.mxu0 %v3260
        %5083 = vmatpush.bf16.msra.mxu0 %v3254
        %5084 = vmatpush.bf16.msra.mxu0 %v3248
        %5085 = vmatpush.bf16.msra.mxu0 %v3242
        %5086 = vmatpush.bf16.msra.mxu0 %v3236
        %5087 = vmatpush.bf16.msra.mxu0 %v3230
        %5088 = vmatpush.bf16.msra.mxu0 %v3224
        %5089 = vmatmul.bf16.gmra.mxu0 %v1889
        %v5090 = vpop.f32.mrf.mxu0
        %v5091 = vadd.f32 %v5022, %v5090
        %v5092 = vpop.f32.mrf.mxu0
        %v5093 = vadd.f32 %v5024, %v5092
        %5094 = vmatmul.bf16.gmra.mxu0 %v1895
        %v5095 = vpop.f32.mrf.mxu0
        %v5096 = vadd.f32 %v5027, %v5095
        %v5097 = vpop.f32.mrf.mxu0
        %v5098 = vadd.f32 %v5029, %v5097
        %5099 = vmatmul.bf16.gmra.mxu0 %v1901
        %v5100 = vpop.f32.mrf.mxu0
        %v5101 = vadd.f32 %v5032, %v5100
        %v5102 = vpop.f32.mrf.mxu0
        %v5103 = vadd.f32 %v5034, %v5102
        %5104 = vmatmul.bf16.gmra.mxu0 %v1907
        %v5105 = vpop.f32.mrf.mxu0
        %v5106 = vadd.f32 %v5037, %v5105
        %v5107 = vpop.f32.mrf.mxu0
        %v5108 = vadd.f32 %v5039, %v5107
        %5109 = vmatmul.bf16.gmra.mxu0 %v1913
        %v5110 = vpop.f32.mrf.mxu0
        %v5111 = vadd.f32 %v5042, %v5110
        %v5112 = vpop.f32.mrf.mxu0
        %v5113 = vadd.f32 %v5044, %v5112
        %5114 = vmatmul.bf16.gmra.mxu0 %v1919
        %v5115 = vpop.f32.mrf.mxu0
        %v5116 = vadd.f32 %v5047, %v5115
        %v5117 = vpop.f32.mrf.mxu0
        %v5118 = vadd.f32 %v5049, %v5117
        %5119 = vmatmul.bf16.gmra.mxu0 %v1925
        %v5120 = vpop.f32.mrf.mxu0
        %v5121 = vadd.f32 %v5052, %v5120
        %v5122 = vpop.f32.mrf.mxu0
        %v5123 = vadd.f32 %v5054, %v5122
        %5124 = vmatmul.bf16.gmra.mxu0 %v1931
        %v5125 = vpop.f32.mrf.mxu0
        %v5126 = vadd.f32 %v5057, %v5125
        %v5127 = vpop.f32.mrf.mxu0
        %v5128 = vadd.f32 %v5059, %v5127
        %5129 = vmatmul.bf16.gmra.mxu0 %v1937
        %v5130 = vpop.f32.mrf.mxu0
        %v5131 = vadd.f32 %v5062, %v5130
        %v5132 = vpop.f32.mrf.mxu0
        %v5133 = vadd.f32 %v5064, %v5132
        %5134 = vmatmul.bf16.gmra.mxu0 %v1943
        %v5135 = vpop.f32.mrf.mxu0
        %v5136 = vadd.f32 %v5067, %v5135
        %v5137 = vpop.f32.mrf.mxu0
        %v5138 = vadd.f32 %v5069, %v5137
        %5139 = vmatmul.bf16.gmra.mxu0 %v1949
        %v5140 = vpop.f32.mrf.mxu0
        %v5141 = vadd.f32 %v5072, %v5140
        %v5142 = vpop.f32.mrf.mxu0
        %v5143 = vadd.f32 %v5074, %v5142
        %5144 = vmatmul.bf16.gmra.mxu0 %v1955
        %v5145 = vpop.f32.mrf.mxu0
        %v5146 = vadd.f32 %v5077, %v5145
        %v5147 = vpop.f32.mrf.mxu0
        %v5148 = vadd.f32 %v5079, %v5147
        %5149 = vdwg.mxu0
        %5150 = vmatpush.bf16.msra.mxu0 %v3314
        %5151 = vmatpush.bf16.msra.mxu0 %v3308
        %5152 = vmatpush.bf16.msra.mxu0 %v3302
        %5153 = vmatpush.bf16.msra.mxu0 %v3296
        %5154 = vmatpush.bf16.msra.mxu0 %v3290
        %5155 = vmatpush.bf16.msra.mxu0 %v3284
        %5156 = vmatpush.bf16.msra.mxu0 %v3278
        %5157 = vmatpush.bf16.msra.mxu0 %v3272
        %5158 = vmatmul.bf16.gmra.mxu0 %v1890
        %v5159 = vpop.f32.mrf.mxu0
        %v5160 = vadd.f32 %v5091, %v5159
        %v5161 = vpop.f32.mrf.mxu0
        %v5162 = vadd.f32 %v5093, %v5161
        %5163 = vmatmul.bf16.gmra.mxu0 %v1896
        %v5164 = vpop.f32.mrf.mxu0
        %v5165 = vadd.f32 %v5096, %v5164
        %v5166 = vpop.f32.mrf.mxu0
        %v5167 = vadd.f32 %v5098, %v5166
        %5168 = vmatmul.bf16.gmra.mxu0 %v1902
        %v5169 = vpop.f32.mrf.mxu0
        %v5170 = vadd.f32 %v5101, %v5169
        %v5171 = vpop.f32.mrf.mxu0
        %v5172 = vadd.f32 %v5103, %v5171
        %5173 = vmatmul.bf16.gmra.mxu0 %v1908
        %v5174 = vpop.f32.mrf.mxu0
        %v5175 = vadd.f32 %v5106, %v5174
        %v5176 = vpop.f32.mrf.mxu0
        %v5177 = vadd.f32 %v5108, %v5176
        %5178 = vmatmul.bf16.gmra.mxu0 %v1914
        %v5179 = vpop.f32.mrf.mxu0
        %v5180 = vadd.f32 %v5111, %v5179
        %v5181 = vpop.f32.mrf.mxu0
        %v5182 = vadd.f32 %v5113, %v5181
        %5183 = vmatmul.bf16.gmra.mxu0 %v1920
        %v5184 = vpop.f32.mrf.mxu0
        %v5185 = vadd.f32 %v5116, %v5184
        %v5186 = vpop.f32.mrf.mxu0
        %v5187 = vadd.f32 %v5118, %v5186
        %5188 = vmatmul.bf16.gmra.mxu0 %v1926
        %v5189 = vpop.f32.mrf.mxu0
        %v5190 = vadd.f32 %v5121, %v5189
        %v5191 = vpop.f32.mrf.mxu0
        %v5192 = vadd.f32 %v5123, %v5191
        %5193 = vmatmul.bf16.gmra.mxu0 %v1932
        %v5194 = vpop.f32.mrf.mxu0
        %v5195 = vadd.f32 %v5126, %v5194
        %v5196 = vpop.f32.mrf.mxu0
        %v5197 = vadd.f32 %v5128, %v5196
        %5198 = vmatmul.bf16.gmra.mxu0 %v1938
        %v5199 = vpop.f32.mrf.mxu0
        %v5200 = vadd.f32 %v5131, %v5199
        %v5201 = vpop.f32.mrf.mxu0
        %v5202 = vadd.f32 %v5133, %v5201
        %5203 = vmatmul.bf16.gmra.mxu0 %v1944
        %v5204 = vpop.f32.mrf.mxu0
        %v5205 = vadd.f32 %v5136, %v5204
        %v5206 = vpop.f32.mrf.mxu0
        %v5207 = vadd.f32 %v5138, %v5206
        %5208 = vmatmul.bf16.gmra.mxu0 %v1950
        %v5209 = vpop.f32.mrf.mxu0
        %v5210 = vadd.f32 %v5141, %v5209
        %v5211 = vpop.f32.mrf.mxu0
        %v5212 = vadd.f32 %v5143, %v5211
        %5213 = vmatmul.bf16.gmra.mxu0 %v1956
        %v5214 = vpop.f32.mrf.mxu0
        %v5215 = vadd.f32 %v5146, %v5214
        %v5216 = vpop.f32.mrf.mxu0
        %v5217 = vadd.f32 %v5148, %v5216
        %5218 = vdwg.mxu0
        %5219 = vmatpush.bf16.msra.mxu0 %v3362
        %5220 = vmatpush.bf16.msra.mxu0 %v3356
        %5221 = vmatpush.bf16.msra.mxu0 %v3350
        %5222 = vmatpush.bf16.msra.mxu0 %v3344
        %5223 = vmatpush.bf16.msra.mxu0 %v3338
        %5224 = vmatpush.bf16.msra.mxu0 %v3332
        %5225 = vmatpush.bf16.msra.mxu0 %v3326
        %5226 = vmatpush.bf16.msra.mxu0 %v3320
        %5227 = vmatmul.bf16.gmra.mxu0 %v1891
        %v5228 = vpop.f32.mrf.mxu0
        %v5229 = vadd.f32 %v5160, %v5228
        %v5230 = vpop.f32.mrf.mxu0
        %v5231 = vadd.f32 %v5162, %v5230
        %5232 = vmatmul.bf16.gmra.mxu0 %v1897
        %v5233 = vpop.f32.mrf.mxu0
        %v5234 = vadd.f32 %v5165, %v5233
        %v5235 = vpop.f32.mrf.mxu0
        %v5236 = vadd.f32 %v5167, %v5235
        %5237 = vmatmul.bf16.gmra.mxu0 %v1903
        %v5238 = vpop.f32.mrf.mxu0
        %v5239 = vadd.f32 %v5170, %v5238
        %v5240 = vpop.f32.mrf.mxu0
        %v5241 = vadd.f32 %v5172, %v5240
        %5242 = vmatmul.bf16.gmra.mxu0 %v1909
        %v5243 = vpop.f32.mrf.mxu0
        %v5244 = vadd.f32 %v5175, %v5243
        %v5245 = vpop.f32.mrf.mxu0
        %v5246 = vadd.f32 %v5177, %v5245
        %5247 = vmatmul.bf16.gmra.mxu0 %v1915
        %v5248 = vpop.f32.mrf.mxu0
        %v5249 = vadd.f32 %v5180, %v5248
        %v5250 = vpop.f32.mrf.mxu0
        %v5251 = vadd.f32 %v5182, %v5250
        %5252 = vmatmul.bf16.gmra.mxu0 %v1921
        %v5253 = vpop.f32.mrf.mxu0
        %v5254 = vadd.f32 %v5185, %v5253
        %v5255 = vpop.f32.mrf.mxu0
        %v5256 = vadd.f32 %v5187, %v5255
        %5257 = vmatmul.bf16.gmra.mxu0 %v1927
        %v5258 = vpop.f32.mrf.mxu0
        %v5259 = vadd.f32 %v5190, %v5258
        %v5260 = vpop.f32.mrf.mxu0
        %v5261 = vadd.f32 %v5192, %v5260
        %5262 = vmatmul.bf16.gmra.mxu0 %v1933
        %v5263 = vpop.f32.mrf.mxu0
        %v5264 = vadd.f32 %v5195, %v5263
        %v5265 = vpop.f32.mrf.mxu0
        %v5266 = vadd.f32 %v5197, %v5265
        %5267 = vmatmul.bf16.gmra.mxu0 %v1939
        %v5268 = vpop.f32.mrf.mxu0
        %v5269 = vadd.f32 %v5200, %v5268
        %v5270 = vpop.f32.mrf.mxu0
        %v5271 = vadd.f32 %v5202, %v5270
        %5272 = vmatmul.bf16.gmra.mxu0 %v1945
        %v5273 = vpop.f32.mrf.mxu0
        %v5274 = vadd.f32 %v5205, %v5273
        %v5275 = vpop.f32.mrf.mxu0
        %v5276 = vadd.f32 %v5207, %v5275
        %5277 = vmatmul.bf16.gmra.mxu0 %v1951
        %v5278 = vpop.f32.mrf.mxu0
        %v5279 = vadd.f32 %v5210, %v5278
        %v5280 = vpop.f32.mrf.mxu0
        %v5281 = vadd.f32 %v5212, %v5280
        %5282 = vmatmul.bf16.gmra.mxu0 %v1957
        %v5283 = vpop.f32.mrf.mxu0
        %v5284 = vadd.f32 %v5215, %v5283
        %v5285 = vpop.f32.mrf.mxu0
        %v5286 = vadd.f32 %v5217, %v5285
        %5287 = vdwg.mxu0
        %5288 = vmatpush.bf16.msra.mxu0 %v3410
        %5289 = vmatpush.bf16.msra.mxu0 %v3404
        %5290 = vmatpush.bf16.msra.mxu0 %v3398
        %5291 = vmatpush.bf16.msra.mxu0 %v3392
        %5292 = vmatpush.bf16.msra.mxu0 %v3386
        %5293 = vmatpush.bf16.msra.mxu0 %v3380
        %5294 = vmatpush.bf16.msra.mxu0 %v3374
        %5295 = vmatpush.bf16.msra.mxu0 %v3368
        %5296 = vmatmul.bf16.gmra.mxu0 %v1892
        %v5297 = vpop.f32.mrf.mxu0
        %v5298 = vadd.f32 %v5229, %v5297
        %v5299 = vpop.f32.mrf.mxu0
        %v5300 = vadd.f32 %v5231, %v5299
        %5301 = vmatmul.bf16.gmra.mxu0 %v1898
        %v5302 = vpop.f32.mrf.mxu0
        %v5303 = vadd.f32 %v5234, %v5302
        %v5304 = vpop.f32.mrf.mxu0
        %v5305 = vadd.f32 %v5236, %v5304
        %5306 = vmatmul.bf16.gmra.mxu0 %v1904
        %v5307 = vpop.f32.mrf.mxu0
        %v5308 = vadd.f32 %v5239, %v5307
        %v5309 = vpop.f32.mrf.mxu0
        %v5310 = vadd.f32 %v5241, %v5309
        %5311 = vmatmul.bf16.gmra.mxu0 %v1910
        %v5312 = vpop.f32.mrf.mxu0
        %v5313 = vadd.f32 %v5244, %v5312
        %v5314 = vpop.f32.mrf.mxu0
        %v5315 = vadd.f32 %v5246, %v5314
        %5316 = vmatmul.bf16.gmra.mxu0 %v1916
        %v5317 = vpop.f32.mrf.mxu0
        %v5318 = vadd.f32 %v5249, %v5317
        %v5319 = vpop.f32.mrf.mxu0
        %v5320 = vadd.f32 %v5251, %v5319
        %5321 = vmatmul.bf16.gmra.mxu0 %v1922
        %v5322 = vpop.f32.mrf.mxu0
        %v5323 = vadd.f32 %v5254, %v5322
        %v5324 = vpop.f32.mrf.mxu0
        %v5325 = vadd.f32 %v5256, %v5324
        %5326 = vmatmul.bf16.gmra.mxu0 %v1928
        %v5327 = vpop.f32.mrf.mxu0
        %v5328 = vadd.f32 %v5259, %v5327
        %v5329 = vpop.f32.mrf.mxu0
        %v5330 = vadd.f32 %v5261, %v5329
        %5331 = vmatmul.bf16.gmra.mxu0 %v1934
        %v5332 = vpop.f32.mrf.mxu0
        %v5333 = vadd.f32 %v5264, %v5332
        %v5334 = vpop.f32.mrf.mxu0
        %v5335 = vadd.f32 %v5266, %v5334
        %5336 = vmatmul.bf16.gmra.mxu0 %v1940
        %v5337 = vpop.f32.mrf.mxu0
        %v5338 = vadd.f32 %v5269, %v5337
        %v5339 = vpop.f32.mrf.mxu0
        %v5340 = vadd.f32 %v5271, %v5339
        %5341 = vmatmul.bf16.gmra.mxu0 %v1946
        %v5342 = vpop.f32.mrf.mxu0
        %v5343 = vadd.f32 %v5274, %v5342
        %v5344 = vpop.f32.mrf.mxu0
        %v5345 = vadd.f32 %v5276, %v5344
        %5346 = vmatmul.bf16.gmra.mxu0 %v1952
        %v5347 = vpop.f32.mrf.mxu0
        %v5348 = vadd.f32 %v5279, %v5347
        %v5349 = vpop.f32.mrf.mxu0
        %v5350 = vadd.f32 %v5281, %v5349
        %5351 = vmatmul.bf16.gmra.mxu0 %v1958
        %v5352 = vpop.f32.mrf.mxu0
        %v5353 = vadd.f32 %v5284, %v5352
        %v5354 = vpop.f32.mrf.mxu0
        %v5355 = vadd.f32 %v5286, %v5354
        %5356 = vdwg.mxu0
        %5357 = vmatpush.bf16.msra.mxu0 %v3171
        %5358 = vmatpush.bf16.msra.mxu0 %v3165
        %5359 = vmatpush.bf16.msra.mxu0 %v3159
        %5360 = vmatpush.bf16.msra.mxu0 %v3153
        %5361 = vmatpush.bf16.msra.mxu0 %v3147
        %5362 = vmatpush.bf16.msra.mxu0 %v3141
        %5363 = vmatpush.bf16.msra.mxu0 %v3135
        %5364 = vmatpush.bf16.msra.mxu0 %v3129
        %5365 = vmatmul.bf16.gmra.mxu0 %v1887
        %v5366 = vpop.f32.mrf.mxu0
        %v5367 = vadd.f32 %v2253, %v5366
        %v5368 = vpop.f32.mrf.mxu0
        %v5369 = vadd.f32 %v2253, %v5368
        %5370 = vmatmul.bf16.gmra.mxu0 %v1893
        %v5371 = vpop.f32.mrf.mxu0
        %v5372 = vadd.f32 %v2253, %v5371
        %v5373 = vpop.f32.mrf.mxu0
        %v5374 = vadd.f32 %v2253, %v5373
        %5375 = vmatmul.bf16.gmra.mxu0 %v1899
        %v5376 = vpop.f32.mrf.mxu0
        %v5377 = vadd.f32 %v2253, %v5376
        %v5378 = vpop.f32.mrf.mxu0
        %v5379 = vadd.f32 %v2253, %v5378
        %5380 = vmatmul.bf16.gmra.mxu0 %v1905
        %v5381 = vpop.f32.mrf.mxu0
        %v5382 = vadd.f32 %v2253, %v5381
        %v5383 = vpop.f32.mrf.mxu0
        %v5384 = vadd.f32 %v2253, %v5383
        %5385 = vmatmul.bf16.gmra.mxu0 %v1911
        %v5386 = vpop.f32.mrf.mxu0
        %v5387 = vadd.f32 %v2253, %v5386
        %v5388 = vpop.f32.mrf.mxu0
        %v5389 = vadd.f32 %v2253, %v5388
        %5390 = vmatmul.bf16.gmra.mxu0 %v1917
        %v5391 = vpop.f32.mrf.mxu0
        %v5392 = vadd.f32 %v2253, %v5391
        %v5393 = vpop.f32.mrf.mxu0
        %v5394 = vadd.f32 %v2253, %v5393
        %5395 = vmatmul.bf16.gmra.mxu0 %v1923
        %v5396 = vpop.f32.mrf.mxu0
        %v5397 = vadd.f32 %v2253, %v5396
        %v5398 = vpop.f32.mrf.mxu0
        %v5399 = vadd.f32 %v2253, %v5398
        %5400 = vmatmul.bf16.gmra.mxu0 %v1929
        %v5401 = vpop.f32.mrf.mxu0
        %v5402 = vadd.f32 %v2253, %v5401
        %v5403 = vpop.f32.mrf.mxu0
        %v5404 = vadd.f32 %v2253, %v5403
        %5405 = vmatmul.bf16.gmra.mxu0 %v1935
        %v5406 = vpop.f32.mrf.mxu0
        %v5407 = vadd.f32 %v2253, %v5406
        %v5408 = vpop.f32.mrf.mxu0
        %v5409 = vadd.f32 %v2253, %v5408
        %5410 = vmatmul.bf16.gmra.mxu0 %v1941
        %v5411 = vpop.f32.mrf.mxu0
        %v5412 = vadd.f32 %v2253, %v5411
        %v5413 = vpop.f32.mrf.mxu0
        %v5414 = vadd.f32 %v2253, %v5413
        %5415 = vmatmul.bf16.gmra.mxu0 %v1947
        %v5416 = vpop.f32.mrf.mxu0
        %v5417 = vadd.f32 %v2253, %v5416
        %v5418 = vpop.f32.mrf.mxu0
        %v5419 = vadd.f32 %v2253, %v5418
        %5420 = vmatmul.bf16.gmra.mxu0 %v1953
        %v5421 = vpop.f32.mrf.mxu0
        %v5422 = vadd.f32 %v2253, %v5421
        %v5423 = vpop.f32.mrf.mxu0
        %v5424 = vadd.f32 %v2253, %v5423
        %5425 = vdwg.mxu0
        %5426 = vmatpush.bf16.msra.mxu0 %v3219
        %5427 = vmatpush.bf16.msra.mxu0 %v3213
        %5428 = vmatpush.bf16.msra.mxu0 %v3207
        %5429 = vmatpush.bf16.msra.mxu0 %v3201
        %5430 = vmatpush.bf16.msra.mxu0 %v3195
        %5431 = vmatpush.bf16.msra.mxu0 %v3189
        %5432 = vmatpush.bf16.msra.mxu0 %v3183
        %5433 = vmatpush.bf16.msra.mxu0 %v3177
        %5434 = vmatmul.bf16.gmra.mxu0 %v1888
        %v5435 = vpop.f32.mrf.mxu0
        %v5436 = vadd.f32 %v5367, %v5435
        %v5437 = vpop.f32.mrf.mxu0
        %v5438 = vadd.f32 %v5369, %v5437
        %5439 = vmatmul.bf16.gmra.mxu0 %v1894
        %v5440 = vpop.f32.mrf.mxu0
        %v5441 = vadd.f32 %v5372, %v5440
        %v5442 = vpop.f32.mrf.mxu0
        %v5443 = vadd.f32 %v5374, %v5442
        %5444 = vmatmul.bf16.gmra.mxu0 %v1900
        %v5445 = vpop.f32.mrf.mxu0
        %v5446 = vadd.f32 %v5377, %v5445
        %v5447 = vpop.f32.mrf.mxu0
        %v5448 = vadd.f32 %v5379, %v5447
        %5449 = vmatmul.bf16.gmra.mxu0 %v1906
        %v5450 = vpop.f32.mrf.mxu0
        %v5451 = vadd.f32 %v5382, %v5450
        %v5452 = vpop.f32.mrf.mxu0
        %v5453 = vadd.f32 %v5384, %v5452
        %5454 = vmatmul.bf16.gmra.mxu0 %v1912
        %v5455 = vpop.f32.mrf.mxu0
        %v5456 = vadd.f32 %v5387, %v5455
        %v5457 = vpop.f32.mrf.mxu0
        %v5458 = vadd.f32 %v5389, %v5457
        %5459 = vmatmul.bf16.gmra.mxu0 %v1918
        %v5460 = vpop.f32.mrf.mxu0
        %v5461 = vadd.f32 %v5392, %v5460
        %v5462 = vpop.f32.mrf.mxu0
        %v5463 = vadd.f32 %v5394, %v5462
        %5464 = vmatmul.bf16.gmra.mxu0 %v1924
        %v5465 = vpop.f32.mrf.mxu0
        %v5466 = vadd.f32 %v5397, %v5465
        %v5467 = vpop.f32.mrf.mxu0
        %v5468 = vadd.f32 %v5399, %v5467
        %5469 = vmatmul.bf16.gmra.mxu0 %v1930
        %v5470 = vpop.f32.mrf.mxu0
        %v5471 = vadd.f32 %v5402, %v5470
        %v5472 = vpop.f32.mrf.mxu0
        %v5473 = vadd.f32 %v5404, %v5472
        %5474 = vmatmul.bf16.gmra.mxu0 %v1936
        %v5475 = vpop.f32.mrf.mxu0
        %v5476 = vadd.f32 %v5407, %v5475
        %v5477 = vpop.f32.mrf.mxu0
        %v5478 = vadd.f32 %v5409, %v5477
        %5479 = vmatmul.bf16.gmra.mxu0 %v1942
        %v5480 = vpop.f32.mrf.mxu0
        %v5481 = vadd.f32 %v5412, %v5480
        %v5482 = vpop.f32.mrf.mxu0
        %v5483 = vadd.f32 %v5414, %v5482
        %5484 = vmatmul.bf16.gmra.mxu0 %v1948
        %v5485 = vpop.f32.mrf.mxu0
        %v5486 = vadd.f32 %v5417, %v5485
        %v5487 = vpop.f32.mrf.mxu0
        %v5488 = vadd.f32 %v5419, %v5487
        %5489 = vmatmul.bf16.gmra.mxu0 %v1954
        %v5490 = vpop.f32.mrf.mxu0
        %v5491 = vadd.f32 %v5422, %v5490
        %v5492 = vpop.f32.mrf.mxu0
        %v5493 = vadd.f32 %v5424, %v5492
        %5494 = vdwg.mxu0
        %5495 = vmatpush.bf16.msra.mxu0 %v3267
        %5496 = vmatpush.bf16.msra.mxu0 %v3261
        %5497 = vmatpush.bf16.msra.mxu0 %v3255
        %5498 = vmatpush.bf16.msra.mxu0 %v3249
        %5499 = vmatpush.bf16.msra.mxu0 %v3243
        %5500 = vmatpush.bf16.msra.mxu0 %v3237
        %5501 = vmatpush.bf16.msra.mxu0 %v3231
        %5502 = vmatpush.bf16.msra.mxu0 %v3225
        %5503 = vmatmul.bf16.gmra.mxu0 %v1889
        %v5504 = vpop.f32.mrf.mxu0
        %v5505 = vadd.f32 %v5436, %v5504
        %v5506 = vpop.f32.mrf.mxu0
        %v5507 = vadd.f32 %v5438, %v5506
        %5508 = vmatmul.bf16.gmra.mxu0 %v1895
        %v5509 = vpop.f32.mrf.mxu0
        %v5510 = vadd.f32 %v5441, %v5509
        %v5511 = vpop.f32.mrf.mxu0
        %v5512 = vadd.f32 %v5443, %v5511
        %5513 = vmatmul.bf16.gmra.mxu0 %v1901
        %v5514 = vpop.f32.mrf.mxu0
        %v5515 = vadd.f32 %v5446, %v5514
        %v5516 = vpop.f32.mrf.mxu0
        %v5517 = vadd.f32 %v5448, %v5516
        %5518 = vmatmul.bf16.gmra.mxu0 %v1907
        %v5519 = vpop.f32.mrf.mxu0
        %v5520 = vadd.f32 %v5451, %v5519
        %v5521 = vpop.f32.mrf.mxu0
        %v5522 = vadd.f32 %v5453, %v5521
        %5523 = vmatmul.bf16.gmra.mxu0 %v1913
        %v5524 = vpop.f32.mrf.mxu0
        %v5525 = vadd.f32 %v5456, %v5524
        %v5526 = vpop.f32.mrf.mxu0
        %v5527 = vadd.f32 %v5458, %v5526
        %5528 = vmatmul.bf16.gmra.mxu0 %v1919
        %v5529 = vpop.f32.mrf.mxu0
        %v5530 = vadd.f32 %v5461, %v5529
        %v5531 = vpop.f32.mrf.mxu0
        %v5532 = vadd.f32 %v5463, %v5531
        %5533 = vmatmul.bf16.gmra.mxu0 %v1925
        %v5534 = vpop.f32.mrf.mxu0
        %v5535 = vadd.f32 %v5466, %v5534
        %v5536 = vpop.f32.mrf.mxu0
        %v5537 = vadd.f32 %v5468, %v5536
        %5538 = vmatmul.bf16.gmra.mxu0 %v1931
        %v5539 = vpop.f32.mrf.mxu0
        %v5540 = vadd.f32 %v5471, %v5539
        %v5541 = vpop.f32.mrf.mxu0
        %v5542 = vadd.f32 %v5473, %v5541
        %5543 = vmatmul.bf16.gmra.mxu0 %v1937
        %v5544 = vpop.f32.mrf.mxu0
        %v5545 = vadd.f32 %v5476, %v5544
        %v5546 = vpop.f32.mrf.mxu0
        %v5547 = vadd.f32 %v5478, %v5546
        %5548 = vmatmul.bf16.gmra.mxu0 %v1943
        %v5549 = vpop.f32.mrf.mxu0
        %v5550 = vadd.f32 %v5481, %v5549
        %v5551 = vpop.f32.mrf.mxu0
        %v5552 = vadd.f32 %v5483, %v5551
        %5553 = vmatmul.bf16.gmra.mxu0 %v1949
        %v5554 = vpop.f32.mrf.mxu0
        %v5555 = vadd.f32 %v5486, %v5554
        %v5556 = vpop.f32.mrf.mxu0
        %v5557 = vadd.f32 %v5488, %v5556
        %5558 = vmatmul.bf16.gmra.mxu0 %v1955
        %v5559 = vpop.f32.mrf.mxu0
        %v5560 = vadd.f32 %v5491, %v5559
        %v5561 = vpop.f32.mrf.mxu0
        %v5562 = vadd.f32 %v5493, %v5561
        %5563 = vdwg.mxu0
        %5564 = vmatpush.bf16.msra.mxu0 %v3315
        %5565 = vmatpush.bf16.msra.mxu0 %v3309
        %5566 = vmatpush.bf16.msra.mxu0 %v3303
        %5567 = vmatpush.bf16.msra.mxu0 %v3297
        %5568 = vmatpush.bf16.msra.mxu0 %v3291
        %5569 = vmatpush.bf16.msra.mxu0 %v3285
        %5570 = vmatpush.bf16.msra.mxu0 %v3279
        %5571 = vmatpush.bf16.msra.mxu0 %v3273
        %5572 = vmatmul.bf16.gmra.mxu0 %v1890
        %v5573 = vpop.f32.mrf.mxu0
        %v5574 = vadd.f32 %v5505, %v5573
        %v5575 = vpop.f32.mrf.mxu0
        %v5576 = vadd.f32 %v5507, %v5575
        %5577 = vmatmul.bf16.gmra.mxu0 %v1896
        %v5578 = vpop.f32.mrf.mxu0
        %v5579 = vadd.f32 %v5510, %v5578
        %v5580 = vpop.f32.mrf.mxu0
        %v5581 = vadd.f32 %v5512, %v5580
        %5582 = vmatmul.bf16.gmra.mxu0 %v1902
        %v5583 = vpop.f32.mrf.mxu0
        %v5584 = vadd.f32 %v5515, %v5583
        %v5585 = vpop.f32.mrf.mxu0
        %v5586 = vadd.f32 %v5517, %v5585
        %5587 = vmatmul.bf16.gmra.mxu0 %v1908
        %v5588 = vpop.f32.mrf.mxu0
        %v5589 = vadd.f32 %v5520, %v5588
        %v5590 = vpop.f32.mrf.mxu0
        %v5591 = vadd.f32 %v5522, %v5590
        %5592 = vmatmul.bf16.gmra.mxu0 %v1914
        %v5593 = vpop.f32.mrf.mxu0
        %v5594 = vadd.f32 %v5525, %v5593
        %v5595 = vpop.f32.mrf.mxu0
        %v5596 = vadd.f32 %v5527, %v5595
        %5597 = vmatmul.bf16.gmra.mxu0 %v1920
        %v5598 = vpop.f32.mrf.mxu0
        %v5599 = vadd.f32 %v5530, %v5598
        %v5600 = vpop.f32.mrf.mxu0
        %v5601 = vadd.f32 %v5532, %v5600
        %5602 = vmatmul.bf16.gmra.mxu0 %v1926
        %v5603 = vpop.f32.mrf.mxu0
        %v5604 = vadd.f32 %v5535, %v5603
        %v5605 = vpop.f32.mrf.mxu0
        %v5606 = vadd.f32 %v5537, %v5605
        %5607 = vmatmul.bf16.gmra.mxu0 %v1932
        %v5608 = vpop.f32.mrf.mxu0
        %v5609 = vadd.f32 %v5540, %v5608
        %v5610 = vpop.f32.mrf.mxu0
        %v5611 = vadd.f32 %v5542, %v5610
        %5612 = vmatmul.bf16.gmra.mxu0 %v1938
        %v5613 = vpop.f32.mrf.mxu0
        %v5614 = vadd.f32 %v5545, %v5613
        %v5615 = vpop.f32.mrf.mxu0
        %v5616 = vadd.f32 %v5547, %v5615
        %5617 = vmatmul.bf16.gmra.mxu0 %v1944
        %v5618 = vpop.f32.mrf.mxu0
        %v5619 = vadd.f32 %v5550, %v5618
        %v5620 = vpop.f32.mrf.mxu0
        %v5621 = vadd.f32 %v5552, %v5620
        %5622 = vmatmul.bf16.gmra.mxu0 %v1950
        %v5623 = vpop.f32.mrf.mxu0
        %v5624 = vadd.f32 %v5555, %v5623
        %v5625 = vpop.f32.mrf.mxu0
        %v5626 = vadd.f32 %v5557, %v5625
        %5627 = vmatmul.bf16.gmra.mxu0 %v1956
        %v5628 = vpop.f32.mrf.mxu0
        %v5629 = vadd.f32 %v5560, %v5628
        %v5630 = vpop.f32.mrf.mxu0
        %v5631 = vadd.f32 %v5562, %v5630
        %5632 = vdwg.mxu0
        %5633 = vmatpush.bf16.msra.mxu0 %v3363
        %5634 = vmatpush.bf16.msra.mxu0 %v3357
        %5635 = vmatpush.bf16.msra.mxu0 %v3351
        %5636 = vmatpush.bf16.msra.mxu0 %v3345
        %5637 = vmatpush.bf16.msra.mxu0 %v3339
        %5638 = vmatpush.bf16.msra.mxu0 %v3333
        %5639 = vmatpush.bf16.msra.mxu0 %v3327
        %5640 = vmatpush.bf16.msra.mxu0 %v3321
        %5641 = vmatmul.bf16.gmra.mxu0 %v1891
        %v5642 = vpop.f32.mrf.mxu0
        %v5643 = vadd.f32 %v5574, %v5642
        %v5644 = vpop.f32.mrf.mxu0
        %v5645 = vadd.f32 %v5576, %v5644
        %5646 = vmatmul.bf16.gmra.mxu0 %v1897
        %v5647 = vpop.f32.mrf.mxu0
        %v5648 = vadd.f32 %v5579, %v5647
        %v5649 = vpop.f32.mrf.mxu0
        %v5650 = vadd.f32 %v5581, %v5649
        %5651 = vmatmul.bf16.gmra.mxu0 %v1903
        %v5652 = vpop.f32.mrf.mxu0
        %v5653 = vadd.f32 %v5584, %v5652
        %v5654 = vpop.f32.mrf.mxu0
        %v5655 = vadd.f32 %v5586, %v5654
        %5656 = vmatmul.bf16.gmra.mxu0 %v1909
        %v5657 = vpop.f32.mrf.mxu0
        %v5658 = vadd.f32 %v5589, %v5657
        %v5659 = vpop.f32.mrf.mxu0
        %v5660 = vadd.f32 %v5591, %v5659
        %5661 = vmatmul.bf16.gmra.mxu0 %v1915
        %v5662 = vpop.f32.mrf.mxu0
        %v5663 = vadd.f32 %v5594, %v5662
        %v5664 = vpop.f32.mrf.mxu0
        %v5665 = vadd.f32 %v5596, %v5664
        %5666 = vmatmul.bf16.gmra.mxu0 %v1921
        %v5667 = vpop.f32.mrf.mxu0
        %v5668 = vadd.f32 %v5599, %v5667
        %v5669 = vpop.f32.mrf.mxu0
        %v5670 = vadd.f32 %v5601, %v5669
        %5671 = vmatmul.bf16.gmra.mxu0 %v1927
        %v5672 = vpop.f32.mrf.mxu0
        %v5673 = vadd.f32 %v5604, %v5672
        %v5674 = vpop.f32.mrf.mxu0
        %v5675 = vadd.f32 %v5606, %v5674
        %5676 = vmatmul.bf16.gmra.mxu0 %v1933
        %v5677 = vpop.f32.mrf.mxu0
        %v5678 = vadd.f32 %v5609, %v5677
        %v5679 = vpop.f32.mrf.mxu0
        %v5680 = vadd.f32 %v5611, %v5679
        %5681 = vmatmul.bf16.gmra.mxu0 %v1939
        %v5682 = vpop.f32.mrf.mxu0
        %v5683 = vadd.f32 %v5614, %v5682
        %v5684 = vpop.f32.mrf.mxu0
        %v5685 = vadd.f32 %v5616, %v5684
        %5686 = vmatmul.bf16.gmra.mxu0 %v1945
        %v5687 = vpop.f32.mrf.mxu0
        %v5688 = vadd.f32 %v5619, %v5687
        %v5689 = vpop.f32.mrf.mxu0
        %v5690 = vadd.f32 %v5621, %v5689
        %5691 = vmatmul.bf16.gmra.mxu0 %v1951
        %v5692 = vpop.f32.mrf.mxu0
        %v5693 = vadd.f32 %v5624, %v5692
        %v5694 = vpop.f32.mrf.mxu0
        %v5695 = vadd.f32 %v5626, %v5694
        %5696 = vmatmul.bf16.gmra.mxu0 %v1957
        %v5697 = vpop.f32.mrf.mxu0
        %v5698 = vadd.f32 %v5629, %v5697
        %v5699 = vpop.f32.mrf.mxu0
        %v5700 = vadd.f32 %v5631, %v5699
        %5701 = vdwg.mxu0
        %5702 = vmatpush.bf16.msra.mxu0 %v3411
        %5703 = vmatpush.bf16.msra.mxu0 %v3405
        %5704 = vmatpush.bf16.msra.mxu0 %v3399
        %5705 = vmatpush.bf16.msra.mxu0 %v3393
        %5706 = vmatpush.bf16.msra.mxu0 %v3387
        %5707 = vmatpush.bf16.msra.mxu0 %v3381
        %5708 = vmatpush.bf16.msra.mxu0 %v3375
        %5709 = vmatpush.bf16.msra.mxu0 %v3369
        %5710 = vmatmul.bf16.gmra.mxu0 %v1892
        %v5711 = vpop.f32.mrf.mxu0
        %v5712 = vadd.f32 %v5643, %v5711
        %v5713 = vpop.f32.mrf.mxu0
        %v5714 = vadd.f32 %v5645, %v5713
        %5715 = vmatmul.bf16.gmra.mxu0 %v1898
        %v5716 = vpop.f32.mrf.mxu0
        %v5717 = vadd.f32 %v5648, %v5716
        %v5718 = vpop.f32.mrf.mxu0
        %v5719 = vadd.f32 %v5650, %v5718
        %5720 = vmatmul.bf16.gmra.mxu0 %v1904
        %v5721 = vpop.f32.mrf.mxu0
        %v5722 = vadd.f32 %v5653, %v5721
        %v5723 = vpop.f32.mrf.mxu0
        %v5724 = vadd.f32 %v5655, %v5723
        %5725 = vmatmul.bf16.gmra.mxu0 %v1910
        %v5726 = vpop.f32.mrf.mxu0
        %v5727 = vadd.f32 %v5658, %v5726
        %v5728 = vpop.f32.mrf.mxu0
        %v5729 = vadd.f32 %v5660, %v5728
        %5730 = vmatmul.bf16.gmra.mxu0 %v1916
        %v5731 = vpop.f32.mrf.mxu0
        %v5732 = vadd.f32 %v5663, %v5731
        %v5733 = vpop.f32.mrf.mxu0
        %v5734 = vadd.f32 %v5665, %v5733
        %5735 = vmatmul.bf16.gmra.mxu0 %v1922
        %v5736 = vpop.f32.mrf.mxu0
        %v5737 = vadd.f32 %v5668, %v5736
        %v5738 = vpop.f32.mrf.mxu0
        %v5739 = vadd.f32 %v5670, %v5738
        %5740 = vmatmul.bf16.gmra.mxu0 %v1928
        %v5741 = vpop.f32.mrf.mxu0
        %v5742 = vadd.f32 %v5673, %v5741
        %v5743 = vpop.f32.mrf.mxu0
        %v5744 = vadd.f32 %v5675, %v5743
        %5745 = vmatmul.bf16.gmra.mxu0 %v1934
        %v5746 = vpop.f32.mrf.mxu0
        %v5747 = vadd.f32 %v5678, %v5746
        %v5748 = vpop.f32.mrf.mxu0
        %v5749 = vadd.f32 %v5680, %v5748
        %5750 = vmatmul.bf16.gmra.mxu0 %v1940
        %v5751 = vpop.f32.mrf.mxu0
        %v5752 = vadd.f32 %v5683, %v5751
        %v5753 = vpop.f32.mrf.mxu0
        %v5754 = vadd.f32 %v5685, %v5753
        %5755 = vmatmul.bf16.gmra.mxu0 %v1946
        %v5756 = vpop.f32.mrf.mxu0
        %v5757 = vadd.f32 %v5688, %v5756
        %v5758 = vpop.f32.mrf.mxu0
        %v5759 = vadd.f32 %v5690, %v5758
        %5760 = vmatmul.bf16.gmra.mxu0 %v1952
        %v5761 = vpop.f32.mrf.mxu0
        %v5762 = vadd.f32 %v5693, %v5761
        %v5763 = vpop.f32.mrf.mxu0
        %v5764 = vadd.f32 %v5695, %v5763
        %5765 = vmatmul.bf16.gmra.mxu0 %v1958
        %v5766 = vpop.f32.mrf.mxu0
        %v5767 = vadd.f32 %v5698, %v5766
        %v5768 = vpop.f32.mrf.mxu0
        %v5769 = vadd.f32 %v5700, %v5768
        %5770 = vdwg.mxu0
        %5771 = vmatpush.bf16.msra.mxu0 %v3172
        %5772 = vmatpush.bf16.msra.mxu0 %v3166
        %5773 = vmatpush.bf16.msra.mxu0 %v3160
        %5774 = vmatpush.bf16.msra.mxu0 %v3154
        %5775 = vmatpush.bf16.msra.mxu0 %v3148
        %5776 = vmatpush.bf16.msra.mxu0 %v3142
        %5777 = vmatpush.bf16.msra.mxu0 %v3136
        %5778 = vmatpush.bf16.msra.mxu0 %v3130
        %5779 = vmatmul.bf16.gmra.mxu0 %v1887
        %v5780 = vpop.f32.mrf.mxu0
        %v5781 = vadd.f32 %v2254, %v5780
        %v5782 = vpop.f32.mrf.mxu0
        %v5783 = vadd.f32 %v2254, %v5782
        %5784 = vmatmul.bf16.gmra.mxu0 %v1893
        %v5785 = vpop.f32.mrf.mxu0
        %v5786 = vadd.f32 %v2254, %v5785
        %v5787 = vpop.f32.mrf.mxu0
        %v5788 = vadd.f32 %v2254, %v5787
        %5789 = vmatmul.bf16.gmra.mxu0 %v1899
        %v5790 = vpop.f32.mrf.mxu0
        %v5791 = vadd.f32 %v2254, %v5790
        %v5792 = vpop.f32.mrf.mxu0
        %v5793 = vadd.f32 %v2254, %v5792
        %5794 = vmatmul.bf16.gmra.mxu0 %v1905
        %v5795 = vpop.f32.mrf.mxu0
        %v5796 = vadd.f32 %v2254, %v5795
        %v5797 = vpop.f32.mrf.mxu0
        %v5798 = vadd.f32 %v2254, %v5797
        %5799 = vmatmul.bf16.gmra.mxu0 %v1911
        %v5800 = vpop.f32.mrf.mxu0
        %v5801 = vadd.f32 %v2254, %v5800
        %v5802 = vpop.f32.mrf.mxu0
        %v5803 = vadd.f32 %v2254, %v5802
        %5804 = vmatmul.bf16.gmra.mxu0 %v1917
        %v5805 = vpop.f32.mrf.mxu0
        %v5806 = vadd.f32 %v2254, %v5805
        %v5807 = vpop.f32.mrf.mxu0
        %v5808 = vadd.f32 %v2254, %v5807
        %5809 = vmatmul.bf16.gmra.mxu0 %v1923
        %v5810 = vpop.f32.mrf.mxu0
        %v5811 = vadd.f32 %v2254, %v5810
        %v5812 = vpop.f32.mrf.mxu0
        %v5813 = vadd.f32 %v2254, %v5812
        %5814 = vmatmul.bf16.gmra.mxu0 %v1929
        %v5815 = vpop.f32.mrf.mxu0
        %v5816 = vadd.f32 %v2254, %v5815
        %v5817 = vpop.f32.mrf.mxu0
        %v5818 = vadd.f32 %v2254, %v5817
        %5819 = vmatmul.bf16.gmra.mxu0 %v1935
        %v5820 = vpop.f32.mrf.mxu0
        %v5821 = vadd.f32 %v2254, %v5820
        %v5822 = vpop.f32.mrf.mxu0
        %v5823 = vadd.f32 %v2254, %v5822
        %5824 = vmatmul.bf16.gmra.mxu0 %v1941
        %v5825 = vpop.f32.mrf.mxu0
        %v5826 = vadd.f32 %v2254, %v5825
        %v5827 = vpop.f32.mrf.mxu0
        %v5828 = vadd.f32 %v2254, %v5827
        %5829 = vmatmul.bf16.gmra.mxu0 %v1947
        %v5830 = vpop.f32.mrf.mxu0
        %v5831 = vadd.f32 %v2254, %v5830
        %v5832 = vpop.f32.mrf.mxu0
        %v5833 = vadd.f32 %v2254, %v5832
        %5834 = vmatmul.bf16.gmra.mxu0 %v1953
        %v5835 = vpop.f32.mrf.mxu0
        %v5836 = vadd.f32 %v2254, %v5835
        %v5837 = vpop.f32.mrf.mxu0
        %v5838 = vadd.f32 %v2254, %v5837
        %5839 = vdwg.mxu0
        %5840 = vmatpush.bf16.msra.mxu0 %v3220
        %5841 = vmatpush.bf16.msra.mxu0 %v3214
        %5842 = vmatpush.bf16.msra.mxu0 %v3208
        %5843 = vmatpush.bf16.msra.mxu0 %v3202
        %5844 = vmatpush.bf16.msra.mxu0 %v3196
        %5845 = vmatpush.bf16.msra.mxu0 %v3190
        %5846 = vmatpush.bf16.msra.mxu0 %v3184
        %5847 = vmatpush.bf16.msra.mxu0 %v3178
        %5848 = vmatmul.bf16.gmra.mxu0 %v1888
        %v5849 = vpop.f32.mrf.mxu0
        %v5850 = vadd.f32 %v5781, %v5849
        %v5851 = vpop.f32.mrf.mxu0
        %v5852 = vadd.f32 %v5783, %v5851
        %5853 = vmatmul.bf16.gmra.mxu0 %v1894
        %v5854 = vpop.f32.mrf.mxu0
        %v5855 = vadd.f32 %v5786, %v5854
        %v5856 = vpop.f32.mrf.mxu0
        %v5857 = vadd.f32 %v5788, %v5856
        %5858 = vmatmul.bf16.gmra.mxu0 %v1900
        %v5859 = vpop.f32.mrf.mxu0
        %v5860 = vadd.f32 %v5791, %v5859
        %v5861 = vpop.f32.mrf.mxu0
        %v5862 = vadd.f32 %v5793, %v5861
        %5863 = vmatmul.bf16.gmra.mxu0 %v1906
        %v5864 = vpop.f32.mrf.mxu0
        %v5865 = vadd.f32 %v5796, %v5864
        %v5866 = vpop.f32.mrf.mxu0
        %v5867 = vadd.f32 %v5798, %v5866
        %5868 = vmatmul.bf16.gmra.mxu0 %v1912
        %v5869 = vpop.f32.mrf.mxu0
        %v5870 = vadd.f32 %v5801, %v5869
        %v5871 = vpop.f32.mrf.mxu0
        %v5872 = vadd.f32 %v5803, %v5871
        %5873 = vmatmul.bf16.gmra.mxu0 %v1918
        %v5874 = vpop.f32.mrf.mxu0
        %v5875 = vadd.f32 %v5806, %v5874
        %v5876 = vpop.f32.mrf.mxu0
        %v5877 = vadd.f32 %v5808, %v5876
        %5878 = vmatmul.bf16.gmra.mxu0 %v1924
        %v5879 = vpop.f32.mrf.mxu0
        %v5880 = vadd.f32 %v5811, %v5879
        %v5881 = vpop.f32.mrf.mxu0
        %v5882 = vadd.f32 %v5813, %v5881
        %5883 = vmatmul.bf16.gmra.mxu0 %v1930
        %v5884 = vpop.f32.mrf.mxu0
        %v5885 = vadd.f32 %v5816, %v5884
        %v5886 = vpop.f32.mrf.mxu0
        %v5887 = vadd.f32 %v5818, %v5886
        %5888 = vmatmul.bf16.gmra.mxu0 %v1936
        %v5889 = vpop.f32.mrf.mxu0
        %v5890 = vadd.f32 %v5821, %v5889
        %v5891 = vpop.f32.mrf.mxu0
        %v5892 = vadd.f32 %v5823, %v5891
        %5893 = vmatmul.bf16.gmra.mxu0 %v1942
        %v5894 = vpop.f32.mrf.mxu0
        %v5895 = vadd.f32 %v5826, %v5894
        %v5896 = vpop.f32.mrf.mxu0
        %v5897 = vadd.f32 %v5828, %v5896
        %5898 = vmatmul.bf16.gmra.mxu0 %v1948
        %v5899 = vpop.f32.mrf.mxu0
        %v5900 = vadd.f32 %v5831, %v5899
        %v5901 = vpop.f32.mrf.mxu0
        %v5902 = vadd.f32 %v5833, %v5901
        %5903 = vmatmul.bf16.gmra.mxu0 %v1954
        %v5904 = vpop.f32.mrf.mxu0
        %v5905 = vadd.f32 %v5836, %v5904
        %v5906 = vpop.f32.mrf.mxu0
        %v5907 = vadd.f32 %v5838, %v5906
        %5908 = vdwg.mxu0
        %5909 = vmatpush.bf16.msra.mxu0 %v3268
        %5910 = vmatpush.bf16.msra.mxu0 %v3262
        %5911 = vmatpush.bf16.msra.mxu0 %v3256
        %5912 = vmatpush.bf16.msra.mxu0 %v3250
        %5913 = vmatpush.bf16.msra.mxu0 %v3244
        %5914 = vmatpush.bf16.msra.mxu0 %v3238
        %5915 = vmatpush.bf16.msra.mxu0 %v3232
        %5916 = vmatpush.bf16.msra.mxu0 %v3226
        %5917 = vmatmul.bf16.gmra.mxu0 %v1889
        %v5918 = vpop.f32.mrf.mxu0
        %v5919 = vadd.f32 %v5850, %v5918
        %v5920 = vpop.f32.mrf.mxu0
        %v5921 = vadd.f32 %v5852, %v5920
        %5922 = vmatmul.bf16.gmra.mxu0 %v1895
        %v5923 = vpop.f32.mrf.mxu0
        %v5924 = vadd.f32 %v5855, %v5923
        %v5925 = vpop.f32.mrf.mxu0
        %v5926 = vadd.f32 %v5857, %v5925
        %5927 = vmatmul.bf16.gmra.mxu0 %v1901
        %v5928 = vpop.f32.mrf.mxu0
        %v5929 = vadd.f32 %v5860, %v5928
        %v5930 = vpop.f32.mrf.mxu0
        %v5931 = vadd.f32 %v5862, %v5930
        %5932 = vmatmul.bf16.gmra.mxu0 %v1907
        %v5933 = vpop.f32.mrf.mxu0
        %v5934 = vadd.f32 %v5865, %v5933
        %v5935 = vpop.f32.mrf.mxu0
        %v5936 = vadd.f32 %v5867, %v5935
        %5937 = vmatmul.bf16.gmra.mxu0 %v1913
        %v5938 = vpop.f32.mrf.mxu0
        %v5939 = vadd.f32 %v5870, %v5938
        %v5940 = vpop.f32.mrf.mxu0
        %v5941 = vadd.f32 %v5872, %v5940
        %5942 = vmatmul.bf16.gmra.mxu0 %v1919
        %v5943 = vpop.f32.mrf.mxu0
        %v5944 = vadd.f32 %v5875, %v5943
        %v5945 = vpop.f32.mrf.mxu0
        %v5946 = vadd.f32 %v5877, %v5945
        %5947 = vmatmul.bf16.gmra.mxu0 %v1925
        %v5948 = vpop.f32.mrf.mxu0
        %v5949 = vadd.f32 %v5880, %v5948
        %v5950 = vpop.f32.mrf.mxu0
        %v5951 = vadd.f32 %v5882, %v5950
        %5952 = vmatmul.bf16.gmra.mxu0 %v1931
        %v5953 = vpop.f32.mrf.mxu0
        %v5954 = vadd.f32 %v5885, %v5953
        %v5955 = vpop.f32.mrf.mxu0
        %v5956 = vadd.f32 %v5887, %v5955
        %5957 = vmatmul.bf16.gmra.mxu0 %v1937
        %v5958 = vpop.f32.mrf.mxu0
        %v5959 = vadd.f32 %v5890, %v5958
        %v5960 = vpop.f32.mrf.mxu0
        %v5961 = vadd.f32 %v5892, %v5960
        %5962 = vmatmul.bf16.gmra.mxu0 %v1943
        %v5963 = vpop.f32.mrf.mxu0
        %v5964 = vadd.f32 %v5895, %v5963
        %v5965 = vpop.f32.mrf.mxu0
        %v5966 = vadd.f32 %v5897, %v5965
        %5967 = vmatmul.bf16.gmra.mxu0 %v1949
        %v5968 = vpop.f32.mrf.mxu0
        %v5969 = vadd.f32 %v5900, %v5968
        %v5970 = vpop.f32.mrf.mxu0
        %v5971 = vadd.f32 %v5902, %v5970
        %5972 = vmatmul.bf16.gmra.mxu0 %v1955
        %v5973 = vpop.f32.mrf.mxu0
        %v5974 = vadd.f32 %v5905, %v5973
        %v5975 = vpop.f32.mrf.mxu0
        %v5976 = vadd.f32 %v5907, %v5975
        %5977 = vdwg.mxu0
        %5978 = vmatpush.bf16.msra.mxu0 %v3316
        %5979 = vmatpush.bf16.msra.mxu0 %v3310
        %5980 = vmatpush.bf16.msra.mxu0 %v3304
        %5981 = vmatpush.bf16.msra.mxu0 %v3298
        %5982 = vmatpush.bf16.msra.mxu0 %v3292
        %5983 = vmatpush.bf16.msra.mxu0 %v3286
        %5984 = vmatpush.bf16.msra.mxu0 %v3280
        %5985 = vmatpush.bf16.msra.mxu0 %v3274
        %5986 = vmatmul.bf16.gmra.mxu0 %v1890
        %v5987 = vpop.f32.mrf.mxu0
        %v5988 = vadd.f32 %v5919, %v5987
        %v5989 = vpop.f32.mrf.mxu0
        %v5990 = vadd.f32 %v5921, %v5989
        %5991 = vmatmul.bf16.gmra.mxu0 %v1896
        %v5992 = vpop.f32.mrf.mxu0
        %v5993 = vadd.f32 %v5924, %v5992
        %v5994 = vpop.f32.mrf.mxu0
        %v5995 = vadd.f32 %v5926, %v5994
        %5996 = vmatmul.bf16.gmra.mxu0 %v1902
        %v5997 = vpop.f32.mrf.mxu0
        %v5998 = vadd.f32 %v5929, %v5997
        %v5999 = vpop.f32.mrf.mxu0
        %v6000 = vadd.f32 %v5931, %v5999
        %6001 = vmatmul.bf16.gmra.mxu0 %v1908
        %v6002 = vpop.f32.mrf.mxu0
        %v6003 = vadd.f32 %v5934, %v6002
        %v6004 = vpop.f32.mrf.mxu0
        %v6005 = vadd.f32 %v5936, %v6004
        %6006 = vmatmul.bf16.gmra.mxu0 %v1914
        %v6007 = vpop.f32.mrf.mxu0
        %v6008 = vadd.f32 %v5939, %v6007
        %v6009 = vpop.f32.mrf.mxu0
        %v6010 = vadd.f32 %v5941, %v6009
        %6011 = vmatmul.bf16.gmra.mxu0 %v1920
        %v6012 = vpop.f32.mrf.mxu0
        %v6013 = vadd.f32 %v5944, %v6012
        %v6014 = vpop.f32.mrf.mxu0
        %v6015 = vadd.f32 %v5946, %v6014
        %6016 = vmatmul.bf16.gmra.mxu0 %v1926
        %v6017 = vpop.f32.mrf.mxu0
        %v6018 = vadd.f32 %v5949, %v6017
        %v6019 = vpop.f32.mrf.mxu0
        %v6020 = vadd.f32 %v5951, %v6019
        %6021 = vmatmul.bf16.gmra.mxu0 %v1932
        %v6022 = vpop.f32.mrf.mxu0
        %v6023 = vadd.f32 %v5954, %v6022
        %v6024 = vpop.f32.mrf.mxu0
        %v6025 = vadd.f32 %v5956, %v6024
        %6026 = vmatmul.bf16.gmra.mxu0 %v1938
        %v6027 = vpop.f32.mrf.mxu0
        %v6028 = vadd.f32 %v5959, %v6027
        %v6029 = vpop.f32.mrf.mxu0
        %v6030 = vadd.f32 %v5961, %v6029
        %6031 = vmatmul.bf16.gmra.mxu0 %v1944
        %v6032 = vpop.f32.mrf.mxu0
        %v6033 = vadd.f32 %v5964, %v6032
        %v6034 = vpop.f32.mrf.mxu0
        %v6035 = vadd.f32 %v5966, %v6034
        %6036 = vmatmul.bf16.gmra.mxu0 %v1950
        %v6037 = vpop.f32.mrf.mxu0
        %v6038 = vadd.f32 %v5969, %v6037
        %v6039 = vpop.f32.mrf.mxu0
        %v6040 = vadd.f32 %v5971, %v6039
        %6041 = vmatmul.bf16.gmra.mxu0 %v1956
        %v6042 = vpop.f32.mrf.mxu0
        %v6043 = vadd.f32 %v5974, %v6042
        %v6044 = vpop.f32.mrf.mxu0
        %v6045 = vadd.f32 %v5976, %v6044
        %6046 = vdwg.mxu0
        %6047 = vmatpush.bf16.msra.mxu0 %v3364
        %6048 = vmatpush.bf16.msra.mxu0 %v3358
        %6049 = vmatpush.bf16.msra.mxu0 %v3352
        %6050 = vmatpush.bf16.msra.mxu0 %v3346
        %6051 = vmatpush.bf16.msra.mxu0 %v3340
        %6052 = vmatpush.bf16.msra.mxu0 %v3334
        %6053 = vmatpush.bf16.msra.mxu0 %v3328
        %6054 = vmatpush.bf16.msra.mxu0 %v3322
        %6055 = vmatmul.bf16.gmra.mxu0 %v1891
        %v6056 = vpop.f32.mrf.mxu0
        %v6057 = vadd.f32 %v5988, %v6056
        %v6058 = vpop.f32.mrf.mxu0
        %v6059 = vadd.f32 %v5990, %v6058
        %6060 = vmatmul.bf16.gmra.mxu0 %v1897
        %v6061 = vpop.f32.mrf.mxu0
        %v6062 = vadd.f32 %v5993, %v6061
        %v6063 = vpop.f32.mrf.mxu0
        %v6064 = vadd.f32 %v5995, %v6063
        %6065 = vmatmul.bf16.gmra.mxu0 %v1903
        %v6066 = vpop.f32.mrf.mxu0
        %v6067 = vadd.f32 %v5998, %v6066
        %v6068 = vpop.f32.mrf.mxu0
        %v6069 = vadd.f32 %v6000, %v6068
        %6070 = vmatmul.bf16.gmra.mxu0 %v1909
        %v6071 = vpop.f32.mrf.mxu0
        %v6072 = vadd.f32 %v6003, %v6071
        %v6073 = vpop.f32.mrf.mxu0
        %v6074 = vadd.f32 %v6005, %v6073
        %6075 = vmatmul.bf16.gmra.mxu0 %v1915
        %v6076 = vpop.f32.mrf.mxu0
        %v6077 = vadd.f32 %v6008, %v6076
        %v6078 = vpop.f32.mrf.mxu0
        %v6079 = vadd.f32 %v6010, %v6078
        %6080 = vmatmul.bf16.gmra.mxu0 %v1921
        %v6081 = vpop.f32.mrf.mxu0
        %v6082 = vadd.f32 %v6013, %v6081
        %v6083 = vpop.f32.mrf.mxu0
        %v6084 = vadd.f32 %v6015, %v6083
        %6085 = vmatmul.bf16.gmra.mxu0 %v1927
        %v6086 = vpop.f32.mrf.mxu0
        %v6087 = vadd.f32 %v6018, %v6086
        %v6088 = vpop.f32.mrf.mxu0
        %v6089 = vadd.f32 %v6020, %v6088
        %6090 = vmatmul.bf16.gmra.mxu0 %v1933
        %v6091 = vpop.f32.mrf.mxu0
        %v6092 = vadd.f32 %v6023, %v6091
        %v6093 = vpop.f32.mrf.mxu0
        %v6094 = vadd.f32 %v6025, %v6093
        %6095 = vmatmul.bf16.gmra.mxu0 %v1939
        %v6096 = vpop.f32.mrf.mxu0
        %v6097 = vadd.f32 %v6028, %v6096
        %v6098 = vpop.f32.mrf.mxu0
        %v6099 = vadd.f32 %v6030, %v6098
        %6100 = vmatmul.bf16.gmra.mxu0 %v1945
        %v6101 = vpop.f32.mrf.mxu0
        %v6102 = vadd.f32 %v6033, %v6101
        %v6103 = vpop.f32.mrf.mxu0
        %v6104 = vadd.f32 %v6035, %v6103
        %6105 = vmatmul.bf16.gmra.mxu0 %v1951
        %v6106 = vpop.f32.mrf.mxu0
        %v6107 = vadd.f32 %v6038, %v6106
        %v6108 = vpop.f32.mrf.mxu0
        %v6109 = vadd.f32 %v6040, %v6108
        %6110 = vmatmul.bf16.gmra.mxu0 %v1957
        %v6111 = vpop.f32.mrf.mxu0
        %v6112 = vadd.f32 %v6043, %v6111
        %v6113 = vpop.f32.mrf.mxu0
        %v6114 = vadd.f32 %v6045, %v6113
        %6115 = vdwg.mxu0
        %6116 = vmatpush.bf16.msra.mxu0 %v3412
        %6117 = vmatpush.bf16.msra.mxu0 %v3406
        %6118 = vmatpush.bf16.msra.mxu0 %v3400
        %6119 = vmatpush.bf16.msra.mxu0 %v3394
        %6120 = vmatpush.bf16.msra.mxu0 %v3388
        %6121 = vmatpush.bf16.msra.mxu0 %v3382
        %6122 = vmatpush.bf16.msra.mxu0 %v3376
        %6123 = vmatpush.bf16.msra.mxu0 %v3370
        %6124 = vmatmul.bf16.gmra.mxu0 %v1892
        %v6125 = vpop.f32.mrf.mxu0
        %v6126 = vadd.f32 %v6057, %v6125
        %v6127 = vpop.f32.mrf.mxu0
        %v6128 = vadd.f32 %v6059, %v6127
        %6129 = vmatmul.bf16.gmra.mxu0 %v1898
        %v6130 = vpop.f32.mrf.mxu0
        %v6131 = vadd.f32 %v6062, %v6130
        %v6132 = vpop.f32.mrf.mxu0
        %v6133 = vadd.f32 %v6064, %v6132
        %6134 = vmatmul.bf16.gmra.mxu0 %v1904
        %v6135 = vpop.f32.mrf.mxu0
        %v6136 = vadd.f32 %v6067, %v6135
        %v6137 = vpop.f32.mrf.mxu0
        %v6138 = vadd.f32 %v6069, %v6137
        %6139 = vmatmul.bf16.gmra.mxu0 %v1910
        %v6140 = vpop.f32.mrf.mxu0
        %v6141 = vadd.f32 %v6072, %v6140
        %v6142 = vpop.f32.mrf.mxu0
        %v6143 = vadd.f32 %v6074, %v6142
        %6144 = vmatmul.bf16.gmra.mxu0 %v1916
        %v6145 = vpop.f32.mrf.mxu0
        %v6146 = vadd.f32 %v6077, %v6145
        %v6147 = vpop.f32.mrf.mxu0
        %v6148 = vadd.f32 %v6079, %v6147
        %6149 = vmatmul.bf16.gmra.mxu0 %v1922
        %v6150 = vpop.f32.mrf.mxu0
        %v6151 = vadd.f32 %v6082, %v6150
        %v6152 = vpop.f32.mrf.mxu0
        %v6153 = vadd.f32 %v6084, %v6152
        %6154 = vmatmul.bf16.gmra.mxu0 %v1928
        %v6155 = vpop.f32.mrf.mxu0
        %v6156 = vadd.f32 %v6087, %v6155
        %v6157 = vpop.f32.mrf.mxu0
        %v6158 = vadd.f32 %v6089, %v6157
        %6159 = vmatmul.bf16.gmra.mxu0 %v1934
        %v6160 = vpop.f32.mrf.mxu0
        %v6161 = vadd.f32 %v6092, %v6160
        %v6162 = vpop.f32.mrf.mxu0
        %v6163 = vadd.f32 %v6094, %v6162
        %6164 = vmatmul.bf16.gmra.mxu0 %v1940
        %v6165 = vpop.f32.mrf.mxu0
        %v6166 = vadd.f32 %v6097, %v6165
        %v6167 = vpop.f32.mrf.mxu0
        %v6168 = vadd.f32 %v6099, %v6167
        %6169 = vmatmul.bf16.gmra.mxu0 %v1946
        %v6170 = vpop.f32.mrf.mxu0
        %v6171 = vadd.f32 %v6102, %v6170
        %v6172 = vpop.f32.mrf.mxu0
        %v6173 = vadd.f32 %v6104, %v6172
        %6174 = vmatmul.bf16.gmra.mxu0 %v1952
        %v6175 = vpop.f32.mrf.mxu0
        %v6176 = vadd.f32 %v6107, %v6175
        %v6177 = vpop.f32.mrf.mxu0
        %v6178 = vadd.f32 %v6109, %v6177
        %6179 = vmatmul.bf16.gmra.mxu0 %v1958
        %v6180 = vpop.f32.mrf.mxu0
        %v6181 = vadd.f32 %v6112, %v6180
        %v6182 = vpop.f32.mrf.mxu0
        %v6183 = vadd.f32 %v6114, %v6182
        %6184 = vdwg.mxu0
        %6185 = vst [vmem:[%s292] sm:$0xff] %v4056
        %6186 = vst [vmem:[%s292 + $0x8] sm:$0xff] %v4470
        %6187 = vst [vmem:[%s292 + $0x10] sm:$0xff] %v4884
        %6188 = vst [vmem:[%s292 + $0x18] sm:$0xff] %v5298
        %6189 = vst [vmem:[%s292 + $0x20] sm:$0xff] %v5712
        %6190 = vst [vmem:[%s292 + $0x28] sm:$0xff] %v6126
        %6191 = vst [vmem:[%s292 + $0x30] sm:$0xff] %v4058
        %6192 = vst [vmem:[%s292 + $0x38] sm:$0xff] %v4472
        %6193 = vst [vmem:[%s292 + $0x40] sm:$0xff] %v4886
        %6194 = vst [vmem:[%s292 + $0x48] sm:$0xff] %v5300
        %6195 = vst [vmem:[%s292 + $0x50] sm:$0xff] %v5714
        %6196 = vst [vmem:[%s292 + $0x58] sm:$0xff] %v6128
        %6197 = vst [vmem:[%s292 + $0x60] sm:$0xff] %v4061
        %6198 = vst [vmem:[%s292 + $0x68] sm:$0xff] %v4475
        %6199 = vst [vmem:[%s292 + $0x70] sm:$0xff] %v4889
        %6200 = vst [vmem:[%s292 + $0x78] sm:$0xff] %v5303
        %6201 = vst [vmem:[%s292 + $0x80] sm:$0xff] %v5717
        %6202 = vst [vmem:[%s292 + $0x88] sm:$0xff] %v6131
        %6203 = vst [vmem:[%s292 + $0x90] sm:$0xff] %v4063
        %6204 = vst [vmem:[%s292 + $0x98] sm:$0xff] %v4477
        %6205 = vst [vmem:[%s292 + $0xa0] sm:$0xff] %v4891
        %6206 = vst [vmem:[%s292 + $0xa8] sm:$0xff] %v5305
        %6207 = vst [vmem:[%s292 + $0xb0] sm:$0xff] %v5719
        %6208 = vst [vmem:[%s292 + $0xb8] sm:$0xff] %v6133
        %6209 = vst [vmem:[%s292 + $0xc0] sm:$0xff] %v4066
        %6210 = vst [vmem:[%s292 + $0xc8] sm:$0xff] %v4480
        %6211 = vst [vmem:[%s292 + $0xd0] sm:$0xff] %v4894
        %6212 = vst [vmem:[%s292 + $0xd8] sm:$0xff] %v5308
        %6213 = vst [vmem:[%s292 + $0xe0] sm:$0xff] %v5722
        %6214 = vst [vmem:[%s292 + $0xe8] sm:$0xff] %v6136
        %6215 = vst [vmem:[%s292 + $0xf0] sm:$0xff] %v4068
        %6216 = vst [vmem:[%s292 + $0xf8] sm:$0xff] %v4482
        %6217 = vst [vmem:[%s292 + $0x100] sm:$0xff] %v4896
        %6218 = vst [vmem:[%s292 + $0x108] sm:$0xff] %v5310
        %6219 = vst [vmem:[%s292 + $0x110] sm:$0xff] %v5724
        %6220 = vst [vmem:[%s292 + $0x118] sm:$0xff] %v6138
        %6221 = vst [vmem:[%s292 + $0x120] sm:$0xff] %v4071
        %6222 = vst [vmem:[%s292 + $0x128] sm:$0xff] %v4485
        %6223 = vst [vmem:[%s292 + $0x130] sm:$0xff] %v4899
        %6224 = vst [vmem:[%s292 + $0x138] sm:$0xff] %v5313
        %6225 = vst [vmem:[%s292 + $0x140] sm:$0xff] %v5727
        %6226 = vst [vmem:[%s292 + $0x148] sm:$0xff] %v6141
        %6227 = vst [vmem:[%s292 + $0x150] sm:$0xff] %v4073
        %6228 = vst [vmem:[%s292 + $0x158] sm:$0xff] %v4487
        %6229 = vst [vmem:[%s292 + $0x160] sm:$0xff] %v4901
        %6230 = vst [vmem:[%s292 + $0x168] sm:$0xff] %v5315
        %6231 = vst [vmem:[%s292 + $0x170] sm:$0xff] %v5729
        %6232 = vst [vmem:[%s292 + $0x178] sm:$0xff] %v6143
        %6233 = vst [vmem:[%s292 + $0x180] sm:$0xff] %v4076
        %6234 = vst [vmem:[%s292 + $0x188] sm:$0xff] %v4490
        %6235 = vst [vmem:[%s292 + $0x190] sm:$0xff] %v4904
        %6236 = vst [vmem:[%s292 + $0x198] sm:$0xff] %v5318
        %6237 = vst [vmem:[%s292 + $0x1a0] sm:$0xff] %v5732
        %6238 = vst [vmem:[%s292 + $0x1a8] sm:$0xff] %v6146
        %6239 = vst [vmem:[%s292 + $0x1b0] sm:$0xff] %v4078
        %6240 = vst [vmem:[%s292 + $0x1b8] sm:$0xff] %v4492
        %6241 = vst [vmem:[%s292 + $0x1c0] sm:$0xff] %v4906
        %6242 = vst [vmem:[%s292 + $0x1c8] sm:$0xff] %v5320
        %6243 = vst [vmem:[%s292 + $0x1d0] sm:$0xff] %v5734
        %6244 = vst [vmem:[%s292 + $0x1d8] sm:$0xff] %v6148
        %6245 = vst [vmem:[%s292 + $0x1e0] sm:$0xff] %v4081
        %6246 = vst [vmem:[%s292 + $0x1e8] sm:$0xff] %v4495
        %6247 = vst [vmem:[%s292 + $0x1f0] sm:$0xff] %v4909
        %6248 = vst [vmem:[%s292 + $0x1f8] sm:$0xff] %v5323
        %6249 = vst [vmem:[%s292 + $0x200] sm:$0xff] %v5737
        %6250 = vst [vmem:[%s292 + $0x208] sm:$0xff] %v6151
        %6251 = vst [vmem:[%s292 + $0x210] sm:$0xff] %v4083
        %6252 = vst [vmem:[%s292 + $0x218] sm:$0xff] %v4497
        %6253 = vst [vmem:[%s292 + $0x220] sm:$0xff] %v4911
        %6254 = vst [vmem:[%s292 + $0x228] sm:$0xff] %v5325
        %6255 = vst [vmem:[%s292 + $0x230] sm:$0xff] %v5739
        %6256 = vst [vmem:[%s292 + $0x238] sm:$0xff] %v6153
        %6257 = vst [vmem:[%s292 + $0x240] sm:$0xff] %v4086
        %6258 = vst [vmem:[%s292 + $0x248] sm:$0xff] %v4500
        %6259 = vst [vmem:[%s292 + $0x250] sm:$0xff] %v4914
        %6260 = vst [vmem:[%s292 + $0x258] sm:$0xff] %v5328
        %6261 = vst [vmem:[%s292 + $0x260] sm:$0xff] %v5742
        %6262 = vst [vmem:[%s292 + $0x268] sm:$0xff] %v6156
        %6263 = vst [vmem:[%s292 + $0x270] sm:$0xff] %v4088
        %6264 = vst [vmem:[%s292 + $0x278] sm:$0xff] %v4502
        %6265 = vst [vmem:[%s292 + $0x280] sm:$0xff] %v4916
        %6266 = vst [vmem:[%s292 + $0x288] sm:$0xff] %v5330
        %6267 = vst [vmem:[%s292 + $0x290] sm:$0xff] %v5744
        %6268 = vst [vmem:[%s292 + $0x298] sm:$0xff] %v6158
        %6269 = vst [vmem:[%s292 + $0x2a0] sm:$0xff] %v4091
        %6270 = vst [vmem:[%s292 + $0x2a8] sm:$0xff] %v4505
        %6271 = vst [vmem:[%s292 + $0x2b0] sm:$0xff] %v4919
        %6272 = vst [vmem:[%s292 + $0x2b8] sm:$0xff] %v5333
        %6273 = vst [vmem:[%s292 + $0x2c0] sm:$0xff] %v5747
        %6274 = vst [vmem:[%s292 + $0x2c8] sm:$0xff] %v6161
        %6275 = vst [vmem:[%s292 + $0x2d0] sm:$0xff] %v4093
        %6276 = vst [vmem:[%s292 + $0x2d8] sm:$0xff] %v4507
        %6277 = vst [vmem:[%s292 + $0x2e0] sm:$0xff] %v4921
        %6278 = vst [vmem:[%s292 + $0x2e8] sm:$0xff] %v5335
        %6279 = vst [vmem:[%s292 + $0x2f0] sm:$0xff] %v5749
        %6280 = vst [vmem:[%s292 + $0x2f8] sm:$0xff] %v6163
        %6281 = vst [vmem:[%s292 + $0x300] sm:$0xff] %v4096
        %6282 = vst [vmem:[%s292 + $0x308] sm:$0xff] %v4510
        %6283 = vst [vmem:[%s292 + $0x310] sm:$0xff] %v4924
        %6284 = vst [vmem:[%s292 + $0x318] sm:$0xff] %v5338
        %6285 = vst [vmem:[%s292 + $0x320] sm:$0xff] %v5752
        %6286 = vst [vmem:[%s292 + $0x328] sm:$0xff] %v6166
        %6287 = vst [vmem:[%s292 + $0x330] sm:$0xff] %v4098
        %6288 = vst [vmem:[%s292 + $0x338] sm:$0xff] %v4512
        %6289 = vst [vmem:[%s292 + $0x340] sm:$0xff] %v4926
        %6290 = vst [vmem:[%s292 + $0x348] sm:$0xff] %v5340
        %6291 = vst [vmem:[%s292 + $0x350] sm:$0xff] %v5754
        %6292 = vst [vmem:[%s292 + $0x358] sm:$0xff] %v6168
        %6293 = vst [vmem:[%s292 + $0x360] sm:$0xff] %v4101
        %6294 = vst [vmem:[%s292 + $0x368] sm:$0xff] %v4515
        %6295 = vst [vmem:[%s292 + $0x370] sm:$0xff] %v4929
        %6296 = vst [vmem:[%s292 + $0x378] sm:$0xff] %v5343
        %6297 = vst [vmem:[%s292 + $0x380] sm:$0xff] %v5757
        %6298 = vst [vmem:[%s292 + $0x388] sm:$0xff] %v6171
        %6299 = vst [vmem:[%s292 + $0x390] sm:$0xff] %v4103
        %6300 = vst [vmem:[%s292 + $0x398] sm:$0xff] %v4517
        %6301 = vst [vmem:[%s292 + $0x3a0] sm:$0xff] %v4931
        %6302 = vst [vmem:[%s292 + $0x3a8] sm:$0xff] %v5345
        %6303 = vst [vmem:[%s292 + $0x3b0] sm:$0xff] %v5759
        %6304 = vst [vmem:[%s292 + $0x3b8] sm:$0xff] %v6173
        %6305 = vst [vmem:[%s292 + $0x3c0] sm:$0xff] %v4106
        %6306 = vst [vmem:[%s292 + $0x3c8] sm:$0xff] %v4520
        %6307 = vst [vmem:[%s292 + $0x3d0] sm:$0xff] %v4934
        %6308 = vst [vmem:[%s292 + $0x3d8] sm:$0xff] %v5348
        %6309 = vst [vmem:[%s292 + $0x3e0] sm:$0xff] %v5762
        %6310 = vst [vmem:[%s292 + $0x3e8] sm:$0xff] %v6176
        %6311 = vst [vmem:[%s292 + $0x3f0] sm:$0xff] %v4108
        %6312 = vst [vmem:[%s292 + $0x3f8] sm:$0xff] %v4522
        %6313 = vst [vmem:[%s292 + $0x400] sm:$0xff] %v4936
        %6314 = vst [vmem:[%s292 + $0x408] sm:$0xff] %v5350
        %6315 = vst [vmem:[%s292 + $0x410] sm:$0xff] %v5764
        %6316 = vst [vmem:[%s292 + $0x418] sm:$0xff] %v6178
        %6317 = vst [vmem:[%s292 + $0x420] sm:$0xff] %v4111
        %6318 = vst [vmem:[%s292 + $0x428] sm:$0xff] %v4525
        %6319 = vst [vmem:[%s292 + $0x430] sm:$0xff] %v4939
        %6320 = vst [vmem:[%s292 + $0x438] sm:$0xff] %v5353
        %6321 = vst [vmem:[%s292 + $0x440] sm:$0xff] %v5767
        %6322 = vst [vmem:[%s292 + $0x448] sm:$0xff] %v6181
        %6323 = vst [vmem:[%s292 + $0x450] sm:$0xff] %v4113
        %6324 = vst [vmem:[%s292 + $0x458] sm:$0xff] %v4527
        %6325 = vst [vmem:[%s292 + $0x460] sm:$0xff] %v4941
        %6326 = vst [vmem:[%s292 + $0x468] sm:$0xff] %v5355
        %6327 = vst [vmem:[%s292 + $0x470] sm:$0xff] %v5769
        %6328 = vst [vmem:[%s292 + $0x478] sm:$0xff] %v6183
        %s6329 = sand.u32 %s127, 1
        %s6330 = scalar_lea.sflag [#allocation4], %s6329
        %s6331 = sand.u32 %s127, 1
        %s6332 = smul.addr %s6331, 1152
        %s6333 = scalar_lea.vmem [#allocation10], %s6332
        // Predicated region
        $region53: #{fused_add_ln_linear.1} parent=35 // pred_check
          %p6334 = pneg %p137
        $region54: #{fused_add_ln_linear.1} parent=35 // pred_check_branch
          %6336 = sbr.rel (%p6334) target = $region56
        $region55: #{fused_add_ln_linear.1} parent=35 // pred_region
          %s6337 = smul.u32 24, %s25
          %6339 = vsyncadd %s6330, 0
          %s6340 = smul.addr %s6337, 6
          %s6341 = smul.addr %s6340, 8
          %s6342 = scalar_lea.hbm %s4, %s6341
          %s6343 = sshll.u32 %s6333, 4
          %s6344 = int_to_ptr.vmem [resolvable:$true] %s6343
          %s6345 = sshll.u32 %s6342, 4
          %s6346 = int_to_ptr.hbm [resolvable:$true] %s6345
          %6351 = dma.vmem_to_hbm [thread:$0]  %s6344, 18432, %s6346, %s6330, 768, 768, 48
        $region56: #{fused_add_ln_linear.1} parent=35 // pred_fallthru
          _
      $region36: #{fused_add_ln_linear.1} parent=5 // pred_fallthru
        _
      %p6352 = scmp.le.s32.totalorder 2, %s20
      // Predicated region
      $region57: #{fused_add_ln_linear.1} parent=5 // pred_check
        %p6353 = pneg %p6352
      $region58: #{fused_add_ln_linear.1} parent=5 // pred_check_branch
        %6355 = sbr.rel (%p6353) target = $region60
      $region59: #{fused_add_ln_linear.1} parent=5 // pred_region
        %s6356 = ssub.s32 %s20, 2
        // Predicated region
        $region61: #{fused_add_ln_linear.1} parent=59 // pred_check
          %p6357 = pneg %p143
        $region62: #{fused_add_ln_linear.1} parent=59 // pred_check_branch
          %6359 = sbr.rel (%p6357) target = $region64
        $region63: #{fused_add_ln_linear.1} parent=59 // pred_region
          %s6360 = sand.u32 %s128, 1
          %s6361 = scalar_lea.sflag [#allocation4], %s6360
          %s6362 = sand.u32 %s128, 1
          %s6363 = smul.addr %s6362, 1152
          %s6364 = scalar_lea.vmem [#allocation10], %s6363
          %6366 = dma.done %s6361, 18432
        $region64: #{fused_add_ln_linear.1} parent=59 // pred_fallthru
          _
      $region60: #{fused_add_ln_linear.1} parent=5 // pred_fallthru
        _
    $region6: #{fused_add_ln_linear.1} parent=1 // loop_footer
      %s24 = sadd.s32 1, %s20
    $region7: #{fused_add_ln_linear.1} parent=1 // loop_footer_branch
      %19 = sbr.rel target = $region3
    $region8: #{fused_add_ln_linear.1} parent=1 // loop_exit
      _
    %6367 = vsyncpa [#allocation3], 1
    %s6368 = scalar_lea.sflag [#allocation3], 1
    %6369 = vsyncpa %s6368, 1
    %6370 = vsyncpa [#allocation6], 1
    %s6371 = scalar_lea.sflag [#allocation6], 1
    %6372 = vsyncpa %s6371, 1
    %6373 = vsyncpa [#allocation9], 1
    %6374 = vsyncpa [#allocation4], 1
    %s6375 = scalar_lea.sflag [#allocation4], 1
    %6376 = vsyncpa %s6375, 1

</llo_original>
